<compile_context>
chip_gen: v7x
topology: tpu7x:2x2x1
jax: 0.10.0
libtpu: 0.0.40
codegen_flags: <defaults>
</compile_context>

<pallas_src>
import jax
import jax.numpy as jnp
from jax.experimental import pallas as pl
from jax.experimental.pallas import tpu as pltpu

LANE = 128          # FC output padded to a full lane tile (dense stores)
BF16_SUBLANE = 16   # bf16 packs 16 rows per vreg -> batch tile multiple of 16
MXU_ROWS = 256      # MXU height cap for the batch tile (v6e/v7x; 128 on v5e)


def _round_up(x, m):
    return ((x + m - 1) // m) * m


def fused_lstm_kernel(gx1_ref, whh1_ref, wih2_ref, whh2_ref, b2_ref,
                      wfc_ref, bfc_ref,
                      out_ref,
                      h1c_sc, gx2c_sc, h1_sc, c1_sc, h2_sc, c2_sc):
    """One (batch-tile, time-chunk) grid step of the fused 2-layer LSTM + FC.

    gx1_ref : (Tc, BB, 4H) f32   hoisted layer-1 gate pre-acts (x@Wih1 + b1)
    whh1_ref: (H, 4H)      bf16  layer-1 recurrent weights (pre-transposed)
    wih2_ref: (H, 4H)      bf16  layer-2 input weights
    whh2_ref: (H, 4H)      bf16  layer-2 recurrent weights
    b2_ref  : (1, 4H)      f32   layer-2 combined bias (b_ih + b_hh)
    wfc_ref : (H, LANE)    bf16  FC weight, zero-padded to 128 lanes
    bfc_ref : (1, LANE)    f32   FC bias, zero-padded
    out_ref : (BB, LANE)   f32   logits slab (resident across time chunks)
    h1c_sc  : (Tc, BB, H)  bf16  layer-1 hidden chunk (feeds layer-2 proj)
    gx2c_sc : (Tc, BB, 4H) f32   layer-2 gate pre-acts for this chunk
    h1_sc/c1_sc/h2_sc/c2_sc: (BB, H) f32 LSTM carries across time chunks
    """
    Tc, BB, _ = gx1_ref.shape
    H = whh1_ref.shape[0]
    t = pl.program_id(1)
    n_t = pl.num_programs(1)

    @pl.when(t == 0)
    def _():
        h1_sc[...] = jnp.zeros_like(h1_sc)
        c1_sc[...] = jnp.zeros_like(c1_sc)
        h2_sc[...] = jnp.zeros_like(h2_sc)
        c2_sc[...] = jnp.zeros_like(c2_sc)

    def sigmoid(x):
        # One EUP tanh per gate instead of exp + reciprocal.
        return 0.5 * jnp.tanh(0.5 * x) + 0.5

    def cell(gates, c):
        # PyTorch gate order i, f, g, o; H = 128 -> full-lane-tile slices.
        i = sigmoid(gates[:, 0 * H:1 * H])
        f = sigmoid(gates[:, 1 * H:2 * H])
        g = jnp.tanh(gates[:, 2 * H:3 * H])
        o = sigmoid(gates[:, 3 * H:4 * H])
        c_new = f * c + i * g
        h_new = o * jnp.tanh(c_new)
        return h_new, c_new

    # Full unroll only for short chunks; partial unroll keeps live ranges
    # bounded when BB is a full 128/256-row MXU tile.
    unroll = True if Tc <= 16 else 8

    # ---- Layer 1 recurrence over this time chunk ---------------------------
    def step1(i, carry):
        h, c = carry
        gates = gx1_ref[i] + jnp.dot(h.astype(jnp.bfloat16), whh1_ref[...],
                                     preferred_element_type=jnp.float32)
        h, c = cell(gates, c)
        h1c_sc[i] = h.astype(jnp.bfloat16)
        return h, c

    h1, c1 = jax.lax.fori_loop(0, Tc, step1, (h1_sc[...], c1_sc[...]),
                               unroll=unroll)
    h1_sc[...] = h1
    c1_sc[...] = c1

    # ---- Layer 2 hoisted input projection for this chunk -------------------
    # One (Tc*BB, H) @ (H, 4H) bf16 MXU matmul; Tc bounds live vregs/scratch.
    gx2 = jnp.dot(h1c_sc[...].reshape(Tc * BB, H), wih2_ref[...],
                  preferred_element_type=jnp.float32) + b2_ref[...]
    gx2c_sc[...] = gx2.reshape(Tc, BB, 4 * H)

    # ---- Layer 2 recurrence over this time chunk ---------------------------
    def step2(i, carry):
        h, c = carry
        gates = gx2c_sc[i] + jnp.dot(h.astype(jnp.bfloat16), whh2_ref[...],
                                     preferred_element_type=jnp.float32)
        return cell(gates, c)

    h2, c2 = jax.lax.fori_loop(0, Tc, step2, (h2_sc[...], c2_sc[...]),
                               unroll=unroll)
    h2_sc[...] = h2
    c2_sc[...] = c2

    # ---- Fused FC on the final hidden state (lane-dense slab) --------------
    @pl.when(t == n_t - 1)
    def _():
        out_ref[...] = (jnp.dot(h2.astype(jnp.bfloat16), wfc_ref[...],
                                preferred_element_type=jnp.float32)
                        + bfc_ref[...])


def lstm_forward(x_btc, params, *, time_chunk=None):
    """x_btc: (B, T, C) -> logits (B, num_classes).  Single fused kernel."""
    B, T, D = x_btc.shape
    (wih1, whh1, b1), (wih2, whh2, b2) = params["layers"]
    H = whh1.shape[0]
    C = params["b_fc"].shape[1]
    assert H % LANE == 0, "pad hidden_dim to a multiple of 128 (lane width)"

    # Batch tile: >=16 rows (full bf16 sublane tile), capped at MXU height.
    # For v7x megacore, prefer a B that yields an even number of tiles.
    BB = min(MXU_ROWS, _round_up(B, BF16_SUBLANE))
    B_pad = _round_up(B, BB)

    # Time chunk: must divide T (padding time would perturb the recurrence).
    if time_chunk is None:
        time_chunk = T
    assert T % time_chunk == 0, "time_chunk must divide T"
    Tc = time_chunk
    n_b, n_t = B_pad // BB, T // Tc

    # Layer-1 input projection hoisted to XLA: K = D (tiny, e.g. 4) wastes
    # the MXU contraction and forces masked 4-lane x tiles in-kernel.
    gx1 = jnp.einsum("btd,dg->btg", x_btc, wih1) + b1[0]      # (B, T, 4H)
    gx1 = jnp.transpose(gx1, (1, 0, 2))                       # (T, B, 4H)
    gx1 = jnp.pad(gx1, ((0, 0), (0, B_pad - B), (0, 0)))

    # bf16 weights for the MXU (f32 accumulation inside the kernel).
    whh1_bf = whh1.astype(jnp.bfloat16)
    wih2_bf = wih2.astype(jnp.bfloat16)
    whh2_bf = whh2.astype(jnp.bfloat16)
    wfc_bf = jnp.pad(params["w_fc_t"], ((0, 0), (0, LANE - C))).astype(jnp.bfloat16)
    bfc = jnp.pad(params["b_fc"], ((0, 0), (0, LANE - C)))

    out = pl.pallas_call(
        fused_lstm_kernel,
        out_shape=jax.ShapeDtypeStruct((B_pad, LANE), jnp.float32),
        grid_spec=pltpu.PrefetchScalarGridSpec(
            num_scalar_prefetch=0,
            grid=(n_b, n_t),
            in_specs=[
                # Streamed per (batch tile, time chunk); pipeline prefetches
                # the next chunk while the serial recurrence runs.
                pl.BlockSpec((Tc, BB, 4 * H), lambda b, t: (t, b, 0)),
                # Constant weights: constant index maps -> fetched once.
                # (At production H also single-buffer via pl.Buffered(1).)
                pl.BlockSpec(whh1_bf.shape, lambda b, t: (0, 0)),
                pl.BlockSpec(wih2_bf.shape, lambda b, t: (0, 0)),
                pl.BlockSpec(whh2_bf.shape, lambda b, t: (0, 0)),
                pl.BlockSpec(b2.shape, lambda b, t: (0, 0)),
                pl.BlockSpec(wfc_bf.shape, lambda b, t: (0, 0)),
                pl.BlockSpec(bfc.shape, lambda b, t: (0, 0)),
            ],
            # Same output block across the time axis -> resident accumulator;
            # written only on the last time chunk.
            out_specs=pl.BlockSpec((BB, LANE), lambda b, t: (b, 0)),
            scratch_shapes=[
                pltpu.VMEM((Tc, BB, H), jnp.bfloat16),     # layer-1 h chunk
                pltpu.VMEM((Tc, BB, 4 * H), jnp.float32),  # layer-2 gate chunk
                pltpu.VMEM((BB, H), jnp.float32),          # h1 carry
                pltpu.VMEM((BB, H), jnp.float32),          # c1 carry
                pltpu.VMEM((BB, H), jnp.float32),          # h2 carry
                pltpu.VMEM((BB, H), jnp.float32),          # c2 carry
            ],
        ),
        compiler_params=pltpu.CompilerParams(
            # Batch tiles independent -> megacore-shardable; time chunks
            # carry LSTM state -> arbitrary.
            dimension_semantics=("parallel", "arbitrary"),
            vmem_limit_bytes=32 * 1024 * 1024),
    )(gx1, whh1_bf, wih2_bf, whh2_bf, b2, wfc_bf, bfc)

    return out[:B, :C]


def make_params(key, n_vars, hidden_dim, num_layers, num_classes):
    """Deterministic synthetic parameters (PyTorch-style uniform init)."""
    assert num_layers == 2, "fused kernel is specialized for num_layers=2"
    params = {"layers": []}
    bound = 1.0 / jnp.sqrt(hidden_dim)
    d_in = n_vars
    for _ in range(num_layers):
        key, k1, k2, k3, k4 = jax.random.split(key, 5)
        w_ih = jax.random.uniform(k1, (4 * hidden_dim, d_in), jnp.float32, -bound, bound)
        w_hh = jax.random.uniform(k2, (4 * hidden_dim, hidden_dim), jnp.float32, -bound, bound)
        b_ih = jax.random.uniform(k3, (4 * hidden_dim,), jnp.float32, -bound, bound)
        b_hh = jax.random.uniform(k4, (4 * hidden_dim,), jnp.float32, -bound, bound)
        params["layers"].append((w_ih.T, w_hh.T, (b_ih + b_hh)[None, :]))
        d_in = hidden_dim
    key, k5, k6 = jax.random.split(key, 3)
    fc_bound = 1.0 / jnp.sqrt(hidden_dim)
    w_fc = jax.random.uniform(k5, (num_classes, hidden_dim), jnp.float32, -fc_bound, fc_bound)
    b_fc = jax.random.uniform(k6, (num_classes,), jnp.float32, -fc_bound, fc_bound)
    params["w_fc_t"] = w_fc.T
    params["b_fc"] = b_fc[None, :]
    return params


def lstm_forward_ref(x_btc, params):
    """Pure-JAX f32 reference for correctness check."""
    x_tbd = jnp.transpose(x_btc, (1, 0, 2))
    h_seq = x_tbd
    for (w_ih_t, w_hh_t, bias) in params["layers"]:
        B = h_seq.shape[1]
        H = w_hh_t.shape[0]

        def step(carry, x_t):
            h, c = carry
            gates = x_t @ w_ih_t + h @ w_hh_t + bias[0]
            i, f, g, o = jnp.split(gates, 4, axis=-1)
            c = jax.nn.sigmoid(f) * c + jax.nn.sigmoid(i) * jnp.tanh(g)
            h = jax.nn.sigmoid(o) * jnp.tanh(c)
            return (h, c), h

        init = (jnp.zeros((B, H), jnp.float32), jnp.zeros((B, H), jnp.float32))
        _, h_seq = jax.lax.scan(step, init, h_seq)
    return h_seq[-1] @ params["w_fc_t"] + params["b_fc"]


if __name__ == "__main__":
    # small config: batch=2, window_size(T)=8, n_vars(C)=4,
    # hidden_dim=128 (PyTorch default, keeps gate slices lane-aligned),
    # 2 layers, 5 classes.  time_chunk=4 exercises the chunked time grid.
    B, T, C = 2, 8, 4
    hidden_dim, num_layers, num_classes = 128, 2, 5

    key = jax.random.PRNGKey(0)
    key, kx = jax.random.split(key)
    x = jax.random.normal(kx, (B, T, C), jnp.float32)
    params = make_params(key, C, hidden_dim, num_layers, num_classes)

    logits = lstm_forward(x, params, time_chunk=4)
    logits = jax.block_until_ready(logits)

    ref = lstm_forward_ref(x, params)
    assert logits.shape == (B, num_classes)
    # bf16 matmul operands (f32 accumulation) vs. the f32 XLA reference.
    assert jnp.allclose(logits, ref, atol=2e-2, rtol=2e-2), (
        float(jnp.max(jnp.abs(logits - ref))))

    print("KERNEL_OK")
</pallas_src>

<mosaic_0001>
module attributes {stable_mosaic.version = 11 : i64} {
  func.func @fused_lstm_kernel(%arg0: i32, %arg1: i32, %arg2: memref<4x16x512xf32, #tpu.memory_space<vmem>>, %arg3: memref<128x512xbf16, #tpu.memory_space<vmem>>, %arg4: memref<128x512xbf16, #tpu.memory_space<vmem>>, %arg5: memref<128x512xbf16, #tpu.memory_space<vmem>>, %arg6: memref<1x512xf32, #tpu.memory_space<vmem>>, %arg7: memref<128x128xbf16, #tpu.memory_space<vmem>>, %arg8: memref<1x128xf32, #tpu.memory_space<vmem>>, %arg9: memref<16x128xf32, #tpu.memory_space<vmem>>, %arg10: memref<4x16x128xbf16, #tpu.memory_space<vmem>>, %arg11: memref<4x16x512xf32, #tpu.memory_space<vmem>>, %arg12: memref<16x128xf32, #tpu.memory_space<vmem>>, %arg13: memref<16x128xf32, #tpu.memory_space<vmem>>, %arg14: memref<16x128xf32, #tpu.memory_space<vmem>>, %arg15: memref<16x128xf32, #tpu.memory_space<vmem>>) attributes {dimension_semantics = [#tpu.dimension_semantics<parallel>, #tpu.dimension_semantics<arbitrary>], iteration_bounds = array<i64: 1, 2>, scalar_prefetch = 0 : i64, scratch_operands = 6 : i64, tpu.core_type = #tpu.core_type<tc>, window_params = [{transform_indices = @transform_0, window_bounds = array<i64: 4, 16, 512>}, {pipeline_mode = #tpu.pipeline_mode<synchronous>, transform_indices = @transform_1, window_bounds = array<i64: 128, 512>}, {pipeline_mode = #tpu.pipeline_mode<synchronous>, transform_indices = @transform_2, window_bounds = array<i64: 128, 512>}, {pipeline_mode = #tpu.pipeline_mode<synchronous>, transform_indices = @transform_3, window_bounds = array<i64: 128, 512>}, {pipeline_mode = #tpu.pipeline_mode<synchronous>, transform_indices = @transform_4, window_bounds = array<i64: 1, 512>}, {pipeline_mode = #tpu.pipeline_mode<synchronous>, transform_indices = @transform_5, window_bounds = array<i64: 128, 128>}, {pipeline_mode = #tpu.pipeline_mode<synchronous>, transform_indices = @transform_6, window_bounds = array<i64: 1, 128>}, {transform_indices = @transform_7, window_bounds = array<i64: 16, 128>}]} {
    %c0_i32 = arith.constant 0 : i32
    %0 = arith.cmpi eq, %arg1, %c0_i32 : i32
    %1 = arith.extui %0 : i1 to i32
    %c0_i32_0 = arith.constant 0 : i32
    %2 = arith.cmpi ne, %1, %c0_i32_0 : i32
    scf.if %2 {
      %cst_154 = arith.constant 0.000000e+00 : f32
      %347 = vector.broadcast %cst_154 : f32 to vector<16x128xf32>
      %c0_155 = arith.constant 0 : index
      %c0_156 = arith.constant 0 : index
      %348 = vector.load %arg12[%c0_155, %c0_156] : memref<16x128xf32, #tpu.memory_space<vmem>>, vector<16x128xf32>
      tpu.vector_store %arg12[%c0_155, %c0_156], %347 {strides = array<i32>} : memref<16x128xf32, #tpu.memory_space<vmem>>, vector<16x128xf32>,
      %cst_157 = arith.constant 0.000000e+00 : f32
      %349 = vector.broadcast %cst_157 : f32 to vector<16x128xf32>
      %c0_158 = arith.constant 0 : index
      %c0_159 = arith.constant 0 : index
      %350 = vector.load %arg13[%c0_158, %c0_159] : memref<16x128xf32, #tpu.memory_space<vmem>>, vector<16x128xf32>
      tpu.vector_store %arg13[%c0_158, %c0_159], %349 {strides = array<i32>} : memref<16x128xf32, #tpu.memory_space<vmem>>, vector<16x128xf32>,
      %cst_160 = arith.constant 0.000000e+00 : f32
      %351 = vector.broadcast %cst_160 : f32 to vector<16x128xf32>
      %c0_161 = arith.constant 0 : index
      %c0_162 = arith.constant 0 : index
      %352 = vector.load %arg14[%c0_161, %c0_162] : memref<16x128xf32, #tpu.memory_space<vmem>>, vector<16x128xf32>
      tpu.vector_store %arg14[%c0_161, %c0_162], %351 {strides = array<i32>} : memref<16x128xf32, #tpu.memory_space<vmem>>, vector<16x128xf32>,
      %cst_163 = arith.constant 0.000000e+00 : f32
      %353 = vector.broadcast %cst_163 : f32 to vector<16x128xf32>
      %c0_164 = arith.constant 0 : index
      %c0_165 = arith.constant 0 : index
      %354 = vector.load %arg15[%c0_164, %c0_165] : memref<16x128xf32, #tpu.memory_space<vmem>>, vector<16x128xf32>
      tpu.vector_store %arg15[%c0_164, %c0_165], %353 {strides = array<i32>} : memref<16x128xf32, #tpu.memory_space<vmem>>, vector<16x128xf32>,
    } else {
    }
    %c0 = arith.constant 0 : index
    %c0_1 = arith.constant 0 : index
    %3 = vector.load %arg12[%c0, %c0_1] : memref<16x128xf32, #tpu.memory_space<vmem>>, vector<16x128xf32>
    %c0_2 = arith.constant 0 : index
    %c0_3 = arith.constant 0 : index
    %4 = vector.load %arg13[%c0_2, %c0_3] : memref<16x128xf32, #tpu.memory_space<vmem>>, vector<16x128xf32>
    %c0_i32_4 = arith.constant 0 : i32
    %5 = arith.index_cast %c0_i32_4 : i32 to index
    %c0_5 = arith.constant 0 : index
    %c0_6 = arith.constant 0 : index
    %6 = vector.load %arg2[%5, %c0_5, %c0_6] : memref<4x16x512xf32, #tpu.memory_space<vmem>>, vector<1x16x512xf32>
    %7 = vector.shape_cast %6 : vector<1x16x512xf32> to vector<16x512xf32>
    %8 = arith.truncf %3 : vector<16x128xf32> to vector<16x128xbf16>
    %c0_7 = arith.constant 0 : index
    %c0_8 = arith.constant 0 : index
    %9 = vector.load %arg3[%c0_7, %c0_8] : memref<128x512xbf16, #tpu.memory_space<vmem>>, vector<128x512xbf16>
    %cst = arith.constant dense<0.000000e+00> : vector<16x512xf32>
    %10 = tpu.matmul %8, %9, %cst {dimension_numbers = #tpu.dot_dimension_numbers<[1], [0], [0], [1], [0, 0, 1, 1], [], []>} : vector<16x128xbf16>, vector<128x512xbf16>, vector<16x512xf32> -> vector<16x512xf32>
    %11 = arith.addf %7, %10 : vector<16x512xf32>
    %12 = vector.extract_strided_slice %11 {offsets = [0, 0], sizes = [16, 128], strides = [1, 1]} : vector<16x512xf32> to vector<16x128xf32>
    %cst_9 = arith.constant 5.000000e-01 : f32
    %13 = vector.broadcast %cst_9 : f32 to vector<16x128xf32>
    %14 = arith.mulf %13, %12 : vector<16x128xf32>
    %15 = math.tanh %14 : vector<16x128xf32>
    %cst_10 = arith.constant 5.000000e-01 : f32
    %16 = vector.broadcast %cst_10 : f32 to vector<16x128xf32>
    %17 = arith.mulf %16, %15 : vector<16x128xf32>
    %cst_11 = arith.constant 5.000000e-01 : f32
    %18 = vector.broadcast %cst_11 : f32 to vector<16x128xf32>
    %19 = arith.addf %17, %18 : vector<16x128xf32>
    %20 = vector.extract_strided_slice %11 {offsets = [0, 128], sizes = [16, 128], strides = [1, 1]} : vector<16x512xf32> to vector<16x128xf32>
    %cst_12 = arith.constant 5.000000e-01 : f32
    %21 = vector.broadcast %cst_12 : f32 to vector<16x128xf32>
    %22 = arith.mulf %21, %20 : vector<16x128xf32>
    %23 = math.tanh %22 : vector<16x128xf32>
    %cst_13 = arith.constant 5.000000e-01 : f32
    %24 = vector.broadcast %cst_13 : f32 to vector<16x128xf32>
    %25 = arith.mulf %24, %23 : vector<16x128xf32>
    %cst_14 = arith.constant 5.000000e-01 : f32
    %26 = vector.broadcast %cst_14 : f32 to vector<16x128xf32>
    %27 = arith.addf %25, %26 : vector<16x128xf32>
    %28 = vector.extract_strided_slice %11 {offsets = [0, 256], sizes = [16, 128], strides = [1, 1]} : vector<16x512xf32> to vector<16x128xf32>
    %29 = math.tanh %28 : vector<16x128xf32>
    %30 = vector.extract_strided_slice %11 {offsets = [0, 384], sizes = [16, 128], strides = [1, 1]} : vector<16x512xf32> to vector<16x128xf32>
    %cst_15 = arith.constant 5.000000e-01 : f32
    %31 = vector.broadcast %cst_15 : f32 to vector<16x128xf32>
    %32 = arith.mulf %31, %30 : vector<16x128xf32>
    %33 = math.tanh %32 : vector<16x128xf32>
    %cst_16 = arith.constant 5.000000e-01 : f32
    %34 = vector.broadcast %cst_16 : f32 to vector<16x128xf32>
    %35 = arith.mulf %34, %33 : vector<16x128xf32>
    %cst_17 = arith.constant 5.000000e-01 : f32
    %36 = vector.broadcast %cst_17 : f32 to vector<16x128xf32>
    %37 = arith.addf %35, %36 : vector<16x128xf32>
    %38 = arith.mulf %27, %4 : vector<16x128xf32>
    %39 = arith.mulf %19, %29 : vector<16x128xf32>
    %40 = arith.addf %38, %39 : vector<16x128xf32>
    %41 = math.tanh %40 : vector<16x128xf32>
    %42 = arith.mulf %37, %41 : vector<16x128xf32>
    %43 = arith.truncf %42 : vector<16x128xf32> to vector<16x128xbf16>
    %44 = arith.index_cast %c0_i32_4 : i32 to index
    %c0_18 = arith.constant 0 : index
    %c0_19 = arith.constant 0 : index
    %45 = vector.load %arg10[%44, %c0_18, %c0_19] : memref<4x16x128xbf16, #tpu.memory_space<vmem>>, vector<1x16x128xbf16>
    %46 = vector.shape_cast %45 : vector<1x16x128xbf16> to vector<16x128xbf16>
    %47 = vector.shape_cast %43 : vector<16x128xbf16> to vector<1x16x128xbf16>
    tpu.vector_store %arg10[%44, %c0_18, %c0_19], %47 {strides = array<i32>} : memref<4x16x128xbf16, #tpu.memory_space<vmem>>, vector<1x16x128xbf16>,
    %c1_i32 = arith.constant 1 : i32
    %48 = arith.index_cast %c1_i32 : i32 to index
    %c0_20 = arith.constant 0 : index
    %c0_21 = arith.constant 0 : index
    %49 = vector.load %arg2[%48, %c0_20, %c0_21] : memref<4x16x512xf32, #tpu.memory_space<vmem>>, vector<1x16x512xf32>
    %50 = vector.shape_cast %49 : vector<1x16x512xf32> to vector<16x512xf32>
    %51 = arith.truncf %42 : vector<16x128xf32> to vector<16x128xbf16>
    %c0_22 = arith.constant 0 : index
    %c0_23 = arith.constant 0 : index
    %52 = vector.load %arg3[%c0_22, %c0_23] : memref<128x512xbf16, #tpu.memory_space<vmem>>, vector<128x512xbf16>
    %cst_24 = arith.constant dense<0.000000e+00> : vector<16x512xf32>
    %53 = tpu.matmul %51, %52, %cst_24 {dimension_numbers = #tpu.dot_dimension_numbers<[1], [0], [0], [1], [0, 0, 1, 1], [], []>} : vector<16x128xbf16>, vector<128x512xbf16>, vector<16x512xf32> -> vector<16x512xf32>
    %54 = arith.addf %50, %53 : vector<16x512xf32>
    %55 = vector.extract_strided_slice %54 {offsets = [0, 0], sizes = [16, 128], strides = [1, 1]} : vector<16x512xf32> to vector<16x128xf32>
    %cst_25 = arith.constant 5.000000e-01 : f32
    %56 = vector.broadcast %cst_25 : f32 to vector<16x128xf32>
    %57 = arith.mulf %56, %55 : vector<16x128xf32>
    %58 = math.tanh %57 : vector<16x128xf32>
    %cst_26 = arith.constant 5.000000e-01 : f32
    %59 = vector.broadcast %cst_26 : f32 to vector<16x128xf32>
    %60 = arith.mulf %59, %58 : vector<16x128xf32>
    %cst_27 = arith.constant 5.000000e-01 : f32
    %61 = vector.broadcast %cst_27 : f32 to vector<16x128xf32>
    %62 = arith.addf %60, %61 : vector<16x128xf32>
    %63 = vector.extract_strided_slice %54 {offsets = [0, 128], sizes = [16, 128], strides = [1, 1]} : vector<16x512xf32> to vector<16x128xf32>
    %cst_28 = arith.constant 5.000000e-01 : f32
    %64 = vector.broadcast %cst_28 : f32 to vector<16x128xf32>
    %65 = arith.mulf %64, %63 : vector<16x128xf32>
    %66 = math.tanh %65 : vector<16x128xf32>
    %cst_29 = arith.constant 5.000000e-01 : f32
    %67 = vector.broadcast %cst_29 : f32 to vector<16x128xf32>
    %68 = arith.mulf %67, %66 : vector<16x128xf32>
    %cst_30 = arith.constant 5.000000e-01 : f32
    %69 = vector.broadcast %cst_30 : f32 to vector<16x128xf32>
    %70 = arith.addf %68, %69 : vector<16x128xf32>
    %71 = vector.extract_strided_slice %54 {offsets = [0, 256], sizes = [16, 128], strides = [1, 1]} : vector<16x512xf32> to vector<16x128xf32>
    %72 = math.tanh %71 : vector<16x128xf32>
    %73 = vector.extract_strided_slice %54 {offsets = [0, 384], sizes = [16, 128], strides = [1, 1]} : vector<16x512xf32> to vector<16x128xf32>
    %cst_31 = arith.constant 5.000000e-01 : f32
    %74 = vector.broadcast %cst_31 : f32 to vector<16x128xf32>
    %75 = arith.mulf %74, %73 : vector<16x128xf32>
    %76 = math.tanh %75 : vector<16x128xf32>
    %cst_32 = arith.constant 5.000000e-01 : f32
    %77 = vector.broadcast %cst_32 : f32 to vector<16x128xf32>
    %78 = arith.mulf %77, %76 : vector<16x128xf32>
    %cst_33 = arith.constant 5.000000e-01 : f32
    %79 = vector.broadcast %cst_33 : f32 to vector<16x128xf32>
    %80 = arith.addf %78, %79 : vector<16x128xf32>
    %81 = arith.mulf %70, %40 : vector<16x128xf32>
    %82 = arith.mulf %62, %72 : vector<16x128xf32>
    %83 = arith.addf %81, %82 : vector<16x128xf32>
    %84 = math.tanh %83 : vector<16x128xf32>
    %85 = arith.mulf %80, %84 : vector<16x128xf32>
    %86 = arith.truncf %85 : vector<16x128xf32> to vector<16x128xbf16>
    %87 = arith.index_cast %c1_i32 : i32 to index
    %c0_34 = arith.constant 0 : index
    %c0_35 = arith.constant 0 : index
    %88 = vector.load %arg10[%87, %c0_34, %c0_35] : memref<4x16x128xbf16, #tpu.memory_space<vmem>>, vector<1x16x128xbf16>
    %89 = vector.shape_cast %88 : vector<1x16x128xbf16> to vector<16x128xbf16>
    %90 = vector.shape_cast %86 : vector<16x128xbf16> to vector<1x16x128xbf16>
    tpu.vector_store %arg10[%87, %c0_34, %c0_35], %90 {strides = array<i32>} : memref<4x16x128xbf16, #tpu.memory_space<vmem>>, vector<1x16x128xbf16>,
    %c2_i32 = arith.constant 2 : i32
    %91 = arith.index_cast %c2_i32 : i32 to index
    %c0_36 = arith.constant 0 : index
    %c0_37 = arith.constant 0 : index
    %92 = vector.load %arg2[%91, %c0_36, %c0_37] : memref<4x16x512xf32, #tpu.memory_space<vmem>>, vector<1x16x512xf32>
    %93 = vector.shape_cast %92 : vector<1x16x512xf32> to vector<16x512xf32>
    %94 = arith.truncf %85 : vector<16x128xf32> to vector<16x128xbf16>
    %c0_38 = arith.constant 0 : index
    %c0_39 = arith.constant 0 : index
    %95 = vector.load %arg3[%c0_38, %c0_39] : memref<128x512xbf16, #tpu.memory_space<vmem>>, vector<128x512xbf16>
    %cst_40 = arith.constant dense<0.000000e+00> : vector<16x512xf32>
    %96 = tpu.matmul %94, %95, %cst_40 {dimension_numbers = #tpu.dot_dimension_numbers<[1], [0], [0], [1], [0, 0, 1, 1], [], []>} : vector<16x128xbf16>, vector<128x512xbf16>, vector<16x512xf32> -> vector<16x512xf32>
    %97 = arith.addf %93, %96 : vector<16x512xf32>
    %98 = vector.extract_strided_slice %97 {offsets = [0, 0], sizes = [16, 128], strides = [1, 1]} : vector<16x512xf32> to vector<16x128xf32>
    %cst_41 = arith.constant 5.000000e-01 : f32
    %99 = vector.broadcast %cst_41 : f32 to vector<16x128xf32>
    %100 = arith.mulf %99, %98 : vector<16x128xf32>
    %101 = math.tanh %100 : vector<16x128xf32>
    %cst_42 = arith.constant 5.000000e-01 : f32
    %102 = vector.broadcast %cst_42 : f32 to vector<16x128xf32>
    %103 = arith.mulf %102, %101 : vector<16x128xf32>
    %cst_43 = arith.constant 5.000000e-01 : f32
    %104 = vector.broadcast %cst_43 : f32 to vector<16x128xf32>
    %105 = arith.addf %103, %104 : vector<16x128xf32>
    %106 = vector.extract_strided_slice %97 {offsets = [0, 128], sizes = [16, 128], strides = [1, 1]} : vector<16x512xf32> to vector<16x128xf32>
    %cst_44 = arith.constant 5.000000e-01 : f32
    %107 = vector.broadcast %cst_44 : f32 to vector<16x128xf32>
    %108 = arith.mulf %107, %106 : vector<16x128xf32>
    %109 = math.tanh %108 : vector<16x128xf32>
    %cst_45 = arith.constant 5.000000e-01 : f32
    %110 = vector.broadcast %cst_45 : f32 to vector<16x128xf32>
    %111 = arith.mulf %110, %109 : vector<16x128xf32>
    %cst_46 = arith.constant 5.000000e-01 : f32
    %112 = vector.broadcast %cst_46 : f32 to vector<16x128xf32>
    %113 = arith.addf %111, %112 : vector<16x128xf32>
    %114 = vector.extract_strided_slice %97 {offsets = [0, 256], sizes = [16, 128], strides = [1, 1]} : vector<16x512xf32> to vector<16x128xf32>
    %115 = math.tanh %114 : vector<16x128xf32>
    %116 = vector.extract_strided_slice %97 {offsets = [0, 384], sizes = [16, 128], strides = [1, 1]} : vector<16x512xf32> to vector<16x128xf32>
    %cst_47 = arith.constant 5.000000e-01 : f32
    %117 = vector.broadcast %cst_47 : f32 to vector<16x128xf32>
    %118 = arith.mulf %117, %116 : vector<16x128xf32>
    %119 = math.tanh %118 : vector<16x128xf32>
    %cst_48 = arith.constant 5.000000e-01 : f32
    %120 = vector.broadcast %cst_48 : f32 to vector<16x128xf32>
    %121 = arith.mulf %120, %119 : vector<16x128xf32>
    %cst_49 = arith.constant 5.000000e-01 : f32
    %122 = vector.broadcast %cst_49 : f32 to vector<16x128xf32>
    %123 = arith.addf %121, %122 : vector<16x128xf32>
    %124 = arith.mulf %113, %83 : vector<16x128xf32>
    %125 = arith.mulf %105, %115 : vector<16x128xf32>
    %126 = arith.addf %124, %125 : vector<16x128xf32>
    %127 = math.tanh %126 : vector<16x128xf32>
    %128 = arith.mulf %123, %127 : vector<16x128xf32>
    %129 = arith.truncf %128 : vector<16x128xf32> to vector<16x128xbf16>
    %130 = arith.index_cast %c2_i32 : i32 to index
    %c0_50 = arith.constant 0 : index
    %c0_51 = arith.constant 0 : index
    %131 = vector.load %arg10[%130, %c0_50, %c0_51] : memref<4x16x128xbf16, #tpu.memory_space<vmem>>, vector<1x16x128xbf16>
    %132 = vector.shape_cast %131 : vector<1x16x128xbf16> to vector<16x128xbf16>
    %133 = vector.shape_cast %129 : vector<16x128xbf16> to vector<1x16x128xbf16>
    tpu.vector_store %arg10[%130, %c0_50, %c0_51], %133 {strides = array<i32>} : memref<4x16x128xbf16, #tpu.memory_space<vmem>>, vector<1x16x128xbf16>,
    %c3_i32 = arith.constant 3 : i32
    %134 = arith.index_cast %c3_i32 : i32 to index
    %c0_52 = arith.constant 0 : index
    %c0_53 = arith.constant 0 : index
    %135 = vector.load %arg2[%134, %c0_52, %c0_53] : memref<4x16x512xf32, #tpu.memory_space<vmem>>, vector<1x16x512xf32>
    %136 = vector.shape_cast %135 : vector<1x16x512xf32> to vector<16x512xf32>
    %137 = arith.truncf %128 : vector<16x128xf32> to vector<16x128xbf16>
    %c0_54 = arith.constant 0 : index
    %c0_55 = arith.constant 0 : index
    %138 = vector.load %arg3[%c0_54, %c0_55] : memref<128x512xbf16, #tpu.memory_space<vmem>>, vector<128x512xbf16>
    %cst_56 = arith.constant dense<0.000000e+00> : vector<16x512xf32>
    %139 = tpu.matmul %137, %138, %cst_56 {dimension_numbers = #tpu.dot_dimension_numbers<[1], [0], [0], [1], [0, 0, 1, 1], [], []>} : vector<16x128xbf16>, vector<128x512xbf16>, vector<16x512xf32> -> vector<16x512xf32>
    %140 = arith.addf %136, %139 : vector<16x512xf32>
    %141 = vector.extract_strided_slice %140 {offsets = [0, 0], sizes = [16, 128], strides = [1, 1]} : vector<16x512xf32> to vector<16x128xf32>
    %cst_57 = arith.constant 5.000000e-01 : f32
    %142 = vector.broadcast %cst_57 : f32 to vector<16x128xf32>
    %143 = arith.mulf %142, %141 : vector<16x128xf32>
    %144 = math.tanh %143 : vector<16x128xf32>
    %cst_58 = arith.constant 5.000000e-01 : f32
    %145 = vector.broadcast %cst_58 : f32 to vector<16x128xf32>
    %146 = arith.mulf %145, %144 : vector<16x128xf32>
    %cst_59 = arith.constant 5.000000e-01 : f32
    %147 = vector.broadcast %cst_59 : f32 to vector<16x128xf32>
    %148 = arith.addf %146, %147 : vector<16x128xf32>
    %149 = vector.extract_strided_slice %140 {offsets = [0, 128], sizes = [16, 128], strides = [1, 1]} : vector<16x512xf32> to vector<16x128xf32>
    %cst_60 = arith.constant 5.000000e-01 : f32
    %150 = vector.broadcast %cst_60 : f32 to vector<16x128xf32>
    %151 = arith.mulf %150, %149 : vector<16x128xf32>
    %152 = math.tanh %151 : vector<16x128xf32>
    %cst_61 = arith.constant 5.000000e-01 : f32
    %153 = vector.broadcast %cst_61 : f32 to vector<16x128xf32>
    %154 = arith.mulf %153, %152 : vector<16x128xf32>
    %cst_62 = arith.constant 5.000000e-01 : f32
    %155 = vector.broadcast %cst_62 : f32 to vector<16x128xf32>
    %156 = arith.addf %154, %155 : vector<16x128xf32>
    %157 = vector.extract_strided_slice %140 {offsets = [0, 256], sizes = [16, 128], strides = [1, 1]} : vector<16x512xf32> to vector<16x128xf32>
    %158 = math.tanh %157 : vector<16x128xf32>
    %159 = vector.extract_strided_slice %140 {offsets = [0, 384], sizes = [16, 128], strides = [1, 1]} : vector<16x512xf32> to vector<16x128xf32>
    %cst_63 = arith.constant 5.000000e-01 : f32
    %160 = vector.broadcast %cst_63 : f32 to vector<16x128xf32>
    %161 = arith.mulf %160, %159 : vector<16x128xf32>
    %162 = math.tanh %161 : vector<16x128xf32>
    %cst_64 = arith.constant 5.000000e-01 : f32
    %163 = vector.broadcast %cst_64 : f32 to vector<16x128xf32>
    %164 = arith.mulf %163, %162 : vector<16x128xf32>
    %cst_65 = arith.constant 5.000000e-01 : f32
    %165 = vector.broadcast %cst_65 : f32 to vector<16x128xf32>
    %166 = arith.addf %164, %165 : vector<16x128xf32>
    %167 = arith.mulf %156, %126 : vector<16x128xf32>
    %168 = arith.mulf %148, %158 : vector<16x128xf32>
    %169 = arith.addf %167, %168 : vector<16x128xf32>
    %170 = math.tanh %169 : vector<16x128xf32>
    %171 = arith.mulf %166, %170 : vector<16x128xf32>
    %172 = arith.truncf %171 : vector<16x128xf32> to vector<16x128xbf16>
    %173 = arith.index_cast %c3_i32 : i32 to index
    %c0_66 = arith.constant 0 : index
    %c0_67 = arith.constant 0 : index
    %174 = vector.load %arg10[%173, %c0_66, %c0_67] : memref<4x16x128xbf16, #tpu.memory_space<vmem>>, vector<1x16x128xbf16>
    %175 = vector.shape_cast %174 : vector<1x16x128xbf16> to vector<16x128xbf16>
    %176 = vector.shape_cast %172 : vector<16x128xbf16> to vector<1x16x128xbf16>
    tpu.vector_store %arg10[%173, %c0_66, %c0_67], %176 {strides = array<i32>} : memref<4x16x128xbf16, #tpu.memory_space<vmem>>, vector<1x16x128xbf16>,
    %c4_i32 = arith.constant 4 : i32
    %c0_68 = arith.constant 0 : index
    %c0_69 = arith.constant 0 : index
    %177 = vector.load %arg12[%c0_68, %c0_69] : memref<16x128xf32, #tpu.memory_space<vmem>>, vector<16x128xf32>
    tpu.vector_store %arg12[%c0_68, %c0_69], %171 {strides = array<i32>} : memref<16x128xf32, #tpu.memory_space<vmem>>, vector<16x128xf32>,
    %c0_70 = arith.constant 0 : index
    %c0_71 = arith.constant 0 : index
    %178 = vector.load %arg13[%c0_70, %c0_71] : memref<16x128xf32, #tpu.memory_space<vmem>>, vector<16x128xf32>
    tpu.vector_store %arg13[%c0_70, %c0_71], %169 {strides = array<i32>} : memref<16x128xf32, #tpu.memory_space<vmem>>, vector<16x128xf32>,
    %c0_72 = arith.constant 0 : index
    %c0_73 = arith.constant 0 : index
    %c0_74 = arith.constant 0 : index
    %179 = vector.load %arg10[%c0_72, %c0_73, %c0_74] : memref<4x16x128xbf16, #tpu.memory_space<vmem>>, vector<4x16x128xbf16>
    %180 = vector.shape_cast %179 : vector<4x16x128xbf16> to vector<64x128xbf16>
    %c0_75 = arith.constant 0 : index
    %c0_76 = arith.constant 0 : index
    %181 = vector.load %arg4[%c0_75, %c0_76] : memref<128x512xbf16, #tpu.memory_space<vmem>>, vector<128x512xbf16>
    %cst_77 = arith.constant dense<0.000000e+00> : vector<64x512xf32>
    %182 = tpu.matmul %180, %181, %cst_77 {dimension_numbers = #tpu.dot_dimension_numbers<[1], [0], [0], [1], [0, 0, 1, 1], [], []>} : vector<64x128xbf16>, vector<128x512xbf16>, vector<64x512xf32> -> vector<64x512xf32>
    %c0_78 = arith.constant 0 : index
    %c0_79 = arith.constant 0 : index
    %183 = vector.load %arg6[%c0_78, %c0_79] : memref<1x512xf32, #tpu.memory_space<vmem>>, vector<1x512xf32>
    %184 = vector.broadcast %183 : vector<1x512xf32> to vector<64x512xf32>
    %185 = arith.addf %182, %184 : vector<64x512xf32>
    %186 = vector.shape_cast %185 : vector<64x512xf32> to vector<4x16x512xf32>
    %c0_80 = arith.constant 0 : index
    %c0_81 = arith.constant 0 : index
    %c0_82 = arith.constant 0 : index
    %187 = vector.load %arg11[%c0_80, %c0_81, %c0_82] : memref<4x16x512xf32, #tpu.memory_space<vmem>>, vector<4x16x512xf32>
    tpu.vector_store %arg11[%c0_80, %c0_81, %c0_82], %186 {strides = array<i32>} : memref<4x16x512xf32, #tpu.memory_space<vmem>>, vector<4x16x512xf32>,
    %c0_83 = arith.constant 0 : index
    %c0_84 = arith.constant 0 : index
    %188 = vector.load %arg14[%c0_83, %c0_84] : memref<16x128xf32, #tpu.memory_space<vmem>>, vector<16x128xf32>
    %c0_85 = arith.constant 0 : index
    %c0_86 = arith.constant 0 : index
    %189 = vector.load %arg15[%c0_85, %c0_86] : memref<16x128xf32, #tpu.memory_space<vmem>>, vector<16x128xf32>
    %c0_i32_87 = arith.constant 0 : i32
    %190 = arith.index_cast %c0_i32_87 : i32 to index
    %c0_88 = arith.constant 0 : index
    %c0_89 = arith.constant 0 : index
    %191 = vector.load %arg11[%190, %c0_88, %c0_89] : memref<4x16x512xf32, #tpu.memory_space<vmem>>, vector<1x16x512xf32>
    %192 = vector.shape_cast %191 : vector<1x16x512xf32> to vector<16x512xf32>
    %193 = arith.truncf %188 : vector<16x128xf32> to vector<16x128xbf16>
    %c0_90 = arith.constant 0 : index
    %c0_91 = arith.constant 0 : index
    %194 = vector.load %arg5[%c0_90, %c0_91] : memref<128x512xbf16, #tpu.memory_space<vmem>>, vector<128x512xbf16>
    %cst_92 = arith.constant dense<0.000000e+00> : vector<16x512xf32>
    %195 = tpu.matmul %193, %194, %cst_92 {dimension_numbers = #tpu.dot_dimension_numbers<[1], [0], [0], [1], [0, 0, 1, 1], [], []>} : vector<16x128xbf16>, vector<128x512xbf16>, vector<16x512xf32> -> vector<16x512xf32>
    %196 = arith.addf %192, %195 : vector<16x512xf32>
    %197 = vector.extract_strided_slice %196 {offsets = [0, 0], sizes = [16, 128], strides = [1, 1]} : vector<16x512xf32> to vector<16x128xf32>
    %cst_93 = arith.constant 5.000000e-01 : f32
    %198 = vector.broadcast %cst_93 : f32 to vector<16x128xf32>
    %199 = arith.mulf %198, %197 : vector<16x128xf32>
    %200 = math.tanh %199 : vector<16x128xf32>
    %cst_94 = arith.constant 5.000000e-01 : f32
    %201 = vector.broadcast %cst_94 : f32 to vector<16x128xf32>
    %202 = arith.mulf %201, %200 : vector<16x128xf32>
    %cst_95 = arith.constant 5.000000e-01 : f32
    %203 = vector.broadcast %cst_95 : f32 to vector<16x128xf32>
    %204 = arith.addf %202, %203 : vector<16x128xf32>
    %205 = vector.extract_strided_slice %196 {offsets = [0, 128], sizes = [16, 128], strides = [1, 1]} : vector<16x512xf32> to vector<16x128xf32>
    %cst_96 = arith.constant 5.000000e-01 : f32
    %206 = vector.broadcast %cst_96 : f32 to vector<16x128xf32>
    %207 = arith.mulf %206, %205 : vector<16x128xf32>
    %208 = math.tanh %207 : vector<16x128xf32>
    %cst_97 = arith.constant 5.000000e-01 : f32
    %209 = vector.broadcast %cst_97 : f32 to vector<16x128xf32>
    %210 = arith.mulf %209, %208 : vector<16x128xf32>
    %cst_98 = arith.constant 5.000000e-01 : f32
    %211 = vector.broadcast %cst_98 : f32 to vector<16x128xf32>
    %212 = arith.addf %210, %211 : vector<16x128xf32>
    %213 = vector.extract_strided_slice %196 {offsets = [0, 256], sizes = [16, 128], strides = [1, 1]} : vector<16x512xf32> to vector<16x128xf32>
    %214 = math.tanh %213 : vector<16x128xf32>
    %215 = vector.extract_strided_slice %196 {offsets = [0, 384], sizes = [16, 128], strides = [1, 1]} : vector<16x512xf32> to vector<16x128xf32>
    %cst_99 = arith.constant 5.000000e-01 : f32
    %216 = vector.broadcast %cst_99 : f32 to vector<16x128xf32>
    %217 = arith.mulf %216, %215 : vector<16x128xf32>
    %218 = math.tanh %217 : vector<16x128xf32>
    %cst_100 = arith.constant 5.000000e-01 : f32
    %219 = vector.broadcast %cst_100 : f32 to vector<16x128xf32>
    %220 = arith.mulf %219, %218 : vector<16x128xf32>
    %cst_101 = arith.constant 5.000000e-01 : f32
    %221 = vector.broadcast %cst_101 : f32 to vector<16x128xf32>
    %222 = arith.addf %220, %221 : vector<16x128xf32>
    %223 = arith.mulf %212, %189 : vector<16x128xf32>
    %224 = arith.mulf %204, %214 : vector<16x128xf32>
    %225 = arith.addf %223, %224 : vector<16x128xf32>
    %226 = math.tanh %225 : vector<16x128xf32>
    %227 = arith.mulf %222, %226 : vector<16x128xf32>
    %c1_i32_102 = arith.constant 1 : i32
    %228 = arith.index_cast %c1_i32_102 : i32 to index
    %c0_103 = arith.constant 0 : index
    %c0_104 = arith.constant 0 : index
    %229 = vector.load %arg11[%228, %c0_103, %c0_104] : memref<4x16x512xf32, #tpu.memory_space<vmem>>, vector<1x16x512xf32>
    %230 = vector.shape_cast %229 : vector<1x16x512xf32> to vector<16x512xf32>
    %231 = arith.truncf %227 : vector<16x128xf32> to vector<16x128xbf16>
    %c0_105 = arith.constant 0 : index
    %c0_106 = arith.constant 0 : index
    %232 = vector.load %arg5[%c0_105, %c0_106] : memref<128x512xbf16, #tpu.memory_space<vmem>>, vector<128x512xbf16>
    %cst_107 = arith.constant dense<0.000000e+00> : vector<16x512xf32>
    %233 = tpu.matmul %231, %232, %cst_107 {dimension_numbers = #tpu.dot_dimension_numbers<[1], [0], [0], [1], [0, 0, 1, 1], [], []>} : vector<16x128xbf16>, vector<128x512xbf16>, vector<16x512xf32> -> vector<16x512xf32>
    %234 = arith.addf %230, %233 : vector<16x512xf32>
    %235 = vector.extract_strided_slice %234 {offsets = [0, 0], sizes = [16, 128], strides = [1, 1]} : vector<16x512xf32> to vector<16x128xf32>
    %cst_108 = arith.constant 5.000000e-01 : f32
    %236 = vector.broadcast %cst_108 : f32 to vector<16x128xf32>
    %237 = arith.mulf %236, %235 : vector<16x128xf32>
    %238 = math.tanh %237 : vector<16x128xf32>
    %cst_109 = arith.constant 5.000000e-01 : f32
    %239 = vector.broadcast %cst_109 : f32 to vector<16x128xf32>
    %240 = arith.mulf %239, %238 : vector<16x128xf32>
    %cst_110 = arith.constant 5.000000e-01 : f32
    %241 = vector.broadcast %cst_110 : f32 to vector<16x128xf32>
    %242 = arith.addf %240, %241 : vector<16x128xf32>
    %243 = vector.extract_strided_slice %234 {offsets = [0, 128], sizes = [16, 128], strides = [1, 1]} : vector<16x512xf32> to vector<16x128xf32>
    %cst_111 = arith.constant 5.000000e-01 : f32
    %244 = vector.broadcast %cst_111 : f32 to vector<16x128xf32>
    %245 = arith.mulf %244, %243 : vector<16x128xf32>
    %246 = math.tanh %245 : vector<16x128xf32>
    %cst_112 = arith.constant 5.000000e-01 : f32
    %247 = vector.broadcast %cst_112 : f32 to vector<16x128xf32>
    %248 = arith.mulf %247, %246 : vector<16x128xf32>
    %cst_113 = arith.constant 5.000000e-01 : f32
    %249 = vector.broadcast %cst_113 : f32 to vector<16x128xf32>
    %250 = arith.addf %248, %249 : vector<16x128xf32>
    %251 = vector.extract_strided_slice %234 {offsets = [0, 256], sizes = [16, 128], strides = [1, 1]} : vector<16x512xf32> to vector<16x128xf32>
    %252 = math.tanh %251 : vector<16x128xf32>
    %253 = vector.extract_strided_slice %234 {offsets = [0, 384], sizes = [16, 128], strides = [1, 1]} : vector<16x512xf32> to vector<16x128xf32>
    %cst_114 = arith.constant 5.000000e-01 : f32
    %254 = vector.broadcast %cst_114 : f32 to vector<16x128xf32>
    %255 = arith.mulf %254, %253 : vector<16x128xf32>
    %256 = math.tanh %255 : vector<16x128xf32>
    %cst_115 = arith.constant 5.000000e-01 : f32
    %257 = vector.broadcast %cst_115 : f32 to vector<16x128xf32>
    %258 = arith.mulf %257, %256 : vector<16x128xf32>
    %cst_116 = arith.constant 5.000000e-01 : f32
    %259 = vector.broadcast %cst_116 : f32 to vector<16x128xf32>
    %260 = arith.addf %258, %259 : vector<16x128xf32>
    %261 = arith.mulf %250, %225 : vector<16x128xf32>
    %262 = arith.mulf %242, %252 : vector<16x128xf32>
    %263 = arith.addf %261, %262 : vector<16x128xf32>
    %264 = math.tanh %263 : vector<16x128xf32>
    %265 = arith.mulf %260, %264 : vector<16x128xf32>
    %c2_i32_117 = arith.constant 2 : i32
    %266 = arith.index_cast %c2_i32_117 : i32 to index
    %c0_118 = arith.constant 0 : index
    %c0_119 = arith.constant 0 : index
    %267 = vector.load %arg11[%266, %c0_118, %c0_119] : memref<4x16x512xf32, #tpu.memory_space<vmem>>, vector<1x16x512xf32>
    %268 = vector.shape_cast %267 : vector<1x16x512xf32> to vector<16x512xf32>
    %269 = arith.truncf %265 : vector<16x128xf32> to vector<16x128xbf16>
    %c0_120 = arith.constant 0 : index
    %c0_121 = arith.constant 0 : index
    %270 = vector.load %arg5[%c0_120, %c0_121] : memref<128x512xbf16, #tpu.memory_space<vmem>>, vector<128x512xbf16>
    %cst_122 = arith.constant dense<0.000000e+00> : vector<16x512xf32>
    %271 = tpu.matmul %269, %270, %cst_122 {dimension_numbers = #tpu.dot_dimension_numbers<[1], [0], [0], [1], [0, 0, 1, 1], [], []>} : vector<16x128xbf16>, vector<128x512xbf16>, vector<16x512xf32> -> vector<16x512xf32>
    %272 = arith.addf %268, %271 : vector<16x512xf32>
    %273 = vector.extract_strided_slice %272 {offsets = [0, 0], sizes = [16, 128], strides = [1, 1]} : vector<16x512xf32> to vector<16x128xf32>
    %cst_123 = arith.constant 5.000000e-01 : f32
    %274 = vector.broadcast %cst_123 : f32 to vector<16x128xf32>
    %275 = arith.mulf %274, %273 : vector<16x128xf32>
    %276 = math.tanh %275 : vector<16x128xf32>
    %cst_124 = arith.constant 5.000000e-01 : f32
    %277 = vector.broadcast %cst_124 : f32 to vector<16x128xf32>
    %278 = arith.mulf %277, %276 : vector<16x128xf32>
    %cst_125 = arith.constant 5.000000e-01 : f32
    %279 = vector.broadcast %cst_125 : f32 to vector<16x128xf32>
    %280 = arith.addf %278, %279 : vector<16x128xf32>
    %281 = vector.extract_strided_slice %272 {offsets = [0, 128], sizes = [16, 128], strides = [1, 1]} : vector<16x512xf32> to vector<16x128xf32>
    %cst_126 = arith.constant 5.000000e-01 : f32
    %282 = vector.broadcast %cst_126 : f32 to vector<16x128xf32>
    %283 = arith.mulf %282, %281 : vector<16x128xf32>
    %284 = math.tanh %283 : vector<16x128xf32>
    %cst_127 = arith.constant 5.000000e-01 : f32
    %285 = vector.broadcast %cst_127 : f32 to vector<16x128xf32>
    %286 = arith.mulf %285, %284 : vector<16x128xf32>
    %cst_128 = arith.constant 5.000000e-01 : f32
    %287 = vector.broadcast %cst_128 : f32 to vector<16x128xf32>
    %288 = arith.addf %286, %287 : vector<16x128xf32>
    %289 = vector.extract_strided_slice %272 {offsets = [0, 256], sizes = [16, 128], strides = [1, 1]} : vector<16x512xf32> to vector<16x128xf32>
    %290 = math.tanh %289 : vector<16x128xf32>
    %291 = vector.extract_strided_slice %272 {offsets = [0, 384], sizes = [16, 128], strides = [1, 1]} : vector<16x512xf32> to vector<16x128xf32>
    %cst_129 = arith.constant 5.000000e-01 : f32
    %292 = vector.broadcast %cst_129 : f32 to vector<16x128xf32>
    %293 = arith.mulf %292, %291 : vector<16x128xf32>
    %294 = math.tanh %293 : vector<16x128xf32>
    %cst_130 = arith.constant 5.000000e-01 : f32
    %295 = vector.broadcast %cst_130 : f32 to vector<16x128xf32>
    %296 = arith.mulf %295, %294 : vector<16x128xf32>
    %cst_131 = arith.constant 5.000000e-01 : f32
    %297 = vector.broadcast %cst_131 : f32 to vector<16x128xf32>
    %298 = arith.addf %296, %297 : vector<16x128xf32>
    %299 = arith.mulf %288, %263 : vector<16x128xf32>
    %300 = arith.mulf %280, %290 : vector<16x128xf32>
    %301 = arith.addf %299, %300 : vector<16x128xf32>
    %302 = math.tanh %301 : vector<16x128xf32>
    %303 = arith.mulf %298, %302 : vector<16x128xf32>
    %c3_i32_132 = arith.constant 3 : i32
    %304 = arith.index_cast %c3_i32_132 : i32 to index
    %c0_133 = arith.constant 0 : index
    %c0_134 = arith.constant 0 : index
    %305 = vector.load %arg11[%304, %c0_133, %c0_134] : memref<4x16x512xf32, #tpu.memory_space<vmem>>, vector<1x16x512xf32>
    %306 = vector.shape_cast %305 : vector<1x16x512xf32> to vector<16x512xf32>
    %307 = arith.truncf %303 : vector<16x128xf32> to vector<16x128xbf16>
    %c0_135 = arith.constant 0 : index
    %c0_136 = arith.constant 0 : index
    %308 = vector.load %arg5[%c0_135, %c0_136] : memref<128x512xbf16, #tpu.memory_space<vmem>>, vector<128x512xbf16>
    %cst_137 = arith.constant dense<0.000000e+00> : vector<16x512xf32>
    %309 = tpu.matmul %307, %308, %cst_137 {dimension_numbers = #tpu.dot_dimension_numbers<[1], [0], [0], [1], [0, 0, 1, 1], [], []>} : vector<16x128xbf16>, vector<128x512xbf16>, vector<16x512xf32> -> vector<16x512xf32>
    %310 = arith.addf %306, %309 : vector<16x512xf32>
    %311 = vector.extract_strided_slice %310 {offsets = [0, 0], sizes = [16, 128], strides = [1, 1]} : vector<16x512xf32> to vector<16x128xf32>
    %cst_138 = arith.constant 5.000000e-01 : f32
    %312 = vector.broadcast %cst_138 : f32 to vector<16x128xf32>
    %313 = arith.mulf %312, %311 : vector<16x128xf32>
    %314 = math.tanh %313 : vector<16x128xf32>
    %cst_139 = arith.constant 5.000000e-01 : f32
    %315 = vector.broadcast %cst_139 : f32 to vector<16x128xf32>
    %316 = arith.mulf %315, %314 : vector<16x128xf32>
    %cst_140 = arith.constant 5.000000e-01 : f32
    %317 = vector.broadcast %cst_140 : f32 to vector<16x128xf32>
    %318 = arith.addf %316, %317 : vector<16x128xf32>
    %319 = vector.extract_strided_slice %310 {offsets = [0, 128], sizes = [16, 128], strides = [1, 1]} : vector<16x512xf32> to vector<16x128xf32>
    %cst_141 = arith.constant 5.000000e-01 : f32
    %320 = vector.broadcast %cst_141 : f32 to vector<16x128xf32>
    %321 = arith.mulf %320, %319 : vector<16x128xf32>
    %322 = math.tanh %321 : vector<16x128xf32>
    %cst_142 = arith.constant 5.000000e-01 : f32
    %323 = vector.broadcast %cst_142 : f32 to vector<16x128xf32>
    %324 = arith.mulf %323, %322 : vector<16x128xf32>
    %cst_143 = arith.constant 5.000000e-01 : f32
    %325 = vector.broadcast %cst_143 : f32 to vector<16x128xf32>
    %326 = arith.addf %324, %325 : vector<16x128xf32>
    %327 = vector.extract_strided_slice %310 {offsets = [0, 256], sizes = [16, 128], strides = [1, 1]} : vector<16x512xf32> to vector<16x128xf32>
    %328 = math.tanh %327 : vector<16x128xf32>
    %329 = vector.extract_strided_slice %310 {offsets = [0, 384], sizes = [16, 128], strides = [1, 1]} : vector<16x512xf32> to vector<16x128xf32>
    %cst_144 = arith.constant 5.000000e-01 : f32
    %330 = vector.broadcast %cst_144 : f32 to vector<16x128xf32>
    %331 = arith.mulf %330, %329 : vector<16x128xf32>
    %332 = math.tanh %331 : vector<16x128xf32>
    %cst_145 = arith.constant 5.000000e-01 : f32
    %333 = vector.broadcast %cst_145 : f32 to vector<16x128xf32>
    %334 = arith.mulf %333, %332 : vector<16x128xf32>
    %cst_146 = arith.constant 5.000000e-01 : f32
    %335 = vector.broadcast %cst_146 : f32 to vector<16x128xf32>
    %336 = arith.addf %334, %335 : vector<16x128xf32>
    %337 = arith.mulf %326, %301 : vector<16x128xf32>
    %338 = arith.mulf %318, %328 : vector<16x128xf32>
    %339 = arith.addf %337, %338 : vector<16x128xf32>
    %340 = math.tanh %339 : vector<16x128xf32>
    %341 = arith.mulf %336, %340 : vector<16x128xf32>
    %c4_i32_147 = arith.constant 4 : i32
    %c0_148 = arith.constant 0 : index
    %c0_149 = arith.constant 0 : index
    %342 = vector.load %arg14[%c0_148, %c0_149] : memref<16x128xf32, #tpu.memory_space<vmem>>, vector<16x128xf32>
    tpu.vector_store %arg14[%c0_148, %c0_149], %341 {strides = array<i32>} : memref<16x128xf32, #tpu.memory_space<vmem>>, vector<16x128xf32>,
    %c0_150 = arith.constant 0 : index
    %c0_151 = arith.constant 0 : index
    %343 = vector.load %arg15[%c0_150, %c0_151] : memref<16x128xf32, #tpu.memory_space<vmem>>, vector<16x128xf32>
    tpu.vector_store %arg15[%c0_150, %c0_151], %339 {strides = array<i32>} : memref<16x128xf32, #tpu.memory_space<vmem>>, vector<16x128xf32>,
    %c1_i32_152 = arith.constant 1 : i32
    %344 = arith.cmpi eq, %arg1, %c1_i32_152 : i32
    %345 = arith.extui %344 : i1 to i32
    %c0_i32_153 = arith.constant 0 : i32
    %346 = arith.cmpi ne, %345, %c0_i32_153 : i32
    scf.if %346 {
      %347 = arith.truncf %341 : vector<16x128xf32> to vector<16x128xbf16>
      %c0_154 = arith.constant 0 : index
      %c0_155 = arith.constant 0 : index
      %348 = vector.load %arg7[%c0_154, %c0_155] : memref<128x128xbf16, #tpu.memory_space<vmem>>, vector<128x128xbf16>
      %cst_156 = arith.constant dense<0.000000e+00> : vector<16x128xf32>
      %349 = tpu.matmul %347, %348, %cst_156 {dimension_numbers = #tpu.dot_dimension_numbers<[1], [0], [0], [1], [0, 0, 1, 1], [], []>} : vector<16x128xbf16>, vector<128x128xbf16>, vector<16x128xf32> -> vector<16x128xf32>
      %c0_157 = arith.constant 0 : index
      %c0_158 = arith.constant 0 : index
      %350 = vector.load %arg8[%c0_157, %c0_158] : memref<1x128xf32, #tpu.memory_space<vmem>>, vector<1x128xf32>
      %351 = vector.broadcast %350 : vector<1x128xf32> to vector<16x128xf32>
      %352 = arith.addf %349, %351 : vector<16x128xf32>
      %c0_159 = arith.constant 0 : index
      %c0_160 = arith.constant 0 : index
      %353 = vector.load %arg9[%c0_159, %c0_160] : memref<16x128xf32, #tpu.memory_space<vmem>>, vector<16x128xf32>
      tpu.vector_store %arg9[%c0_159, %c0_160], %352 {strides = array<i32>} : memref<16x128xf32, #tpu.memory_space<vmem>>, vector<16x128xf32>,
    } else {
    }
    return
  }
  func.func @transform_0(%arg0: i32, %arg1: i32) -> (i32, i32, i32) {
    %c0_i32 = arith.constant 0 : i32
    %c0_i32_0 = arith.constant 0 : i32
    return %arg1, %arg0, %c0_i32 : i32, i32, i32
  }
  func.func @transform_1(%arg0: i32, %arg1: i32) -> (i32, i32) {
    %c0_i32 = arith.constant 0 : i32
    %c0_i32_0 = arith.constant 0 : i32
    %c0_i32_1 = arith.constant 0 : i32
    return %c0_i32, %c0_i32_0 : i32, i32
  }
  func.func @transform_2(%arg0: i32, %arg1: i32) -> (i32, i32) {
    %c0_i32 = arith.constant 0 : i32
    %c0_i32_0 = arith.constant 0 : i32
    %c0_i32_1 = arith.constant 0 : i32
    return %c0_i32, %c0_i32_0 : i32, i32
  }
  func.func @transform_3(%arg0: i32, %arg1: i32) -> (i32, i32) {
    %c0_i32 = arith.constant 0 : i32
    %c0_i32_0 = arith.constant 0 : i32
    %c0_i32_1 = arith.constant 0 : i32
    return %c0_i32, %c0_i32_0 : i32, i32
  }
  func.func @transform_4(%arg0: i32, %arg1: i32) -> (i32, i32) {
    %c0_i32 = arith.constant 0 : i32
    %c0_i32_0 = arith.constant 0 : i32
    %c0_i32_1 = arith.constant 0 : i32
    return %c0_i32, %c0_i32_0 : i32, i32
  }
  func.func @transform_5(%arg0: i32, %arg1: i32) -> (i32, i32) {
    %c0_i32 = arith.constant 0 : i32
    %c0_i32_0 = arith.constant 0 : i32
    %c0_i32_1 = arith.constant 0 : i32
    return %c0_i32, %c0_i32_0 : i32, i32
  }
  func.func @transform_6(%arg0: i32, %arg1: i32) -> (i32, i32) {
    %c0_i32 = arith.constant 0 : i32
    %c0_i32_0 = arith.constant 0 : i32
    %c0_i32_1 = arith.constant 0 : i32
    return %c0_i32, %c0_i32_0 : i32, i32
  }
  func.func @transform_7(%arg0: i32, %arg1: i32) -> (i32, i32) {
    %c0_i32 = arith.constant 0 : i32
    %c0_i32_0 = arith.constant 0 : i32
    return %arg0, %c0_i32 : i32, i32
  }
}

</mosaic_0001>

<llo_original>
// kernel: tpu_custom_call.1
$region0: #{tpu_custom_call.1}
  #allocation0 [shape = 'u32[]', space=smem, size = 0x4, offset = 0x4, fixed_abs, tag = 'smem constant byte address 0x4 - core index']
  #allocation1 [shape = 'u32[144,128]{1,0:T(1,128)}', space=vmem, size = 0x12000, scoped, tag = 'internal scratch']
  #allocation2 [shape = 'bf16[4,16,128]{2,1,0:T(16,128)(2,1)}', space=vmem, size = 0x4000, scoped, tag = 'scratch operand']
  #allocation3 [shape = 'f32[4,16,512]{2,1,0:T(8,128)}', space=vmem, size = 0x20000, scoped, tag = 'scratch operand']
  #allocation4 [shape = 'f32[16,128]{1,0:T(8,128)}', space=vmem, size = 0x2000, scoped, tag = 'scratch operand']
  #allocation5 [shape = 'f32[16,128]{1,0:T(8,128)}', space=vmem, size = 0x2000, scoped, tag = 'scratch operand']
  #allocation6 [shape = 'f32[16,128]{1,0:T(8,128)}', space=vmem, size = 0x2000, scoped, tag = 'scratch operand']
  #allocation7 [shape = 'f32[16,128]{1,0:T(8,128)}', space=vmem, size = 0x2000, scoped, tag = 'scratch operand']
  %s0 = inlined_call_operand.hbm [shape: f32[8,16,512], index: 0, kind: input, shape index: {}]
  %s1 = inlined_call_operand.hbm [shape: bf16[128,512], index: 1, kind: input, shape index: {}]
  %s2 = inlined_call_operand.hbm [shape: bf16[128,512], index: 2, kind: input, shape index: {}]
  %s3 = inlined_call_operand.hbm [shape: bf16[128,512], index: 3, kind: input, shape index: {}]
  %s4 = inlined_call_operand.vmem [shape: f32[1,512], index: 4, kind: input, shape index: {}]
  %s5 = inlined_call_operand.hbm [shape: bf16[128,128], index: 5, kind: input, shape index: {}]
  %s6 = inlined_call_operand.vmem [shape: f32[1,128], index: 6, kind: input, shape index: {}]
  %s7 = inlined_call_operand.hbm [shape: f32[16,128], index: 7, kind: output, shape index: {}]
  %s8 = sld [smem:[#allocation0]]
  $region89: #{tpu_custom_call.1} parent=0
    _
  %s10 = ssub.s32 1, %s8
  %s11 = scalar_select 0, %s10, %s8
  $region1: #{tpu_custom_call.1} parent=0
    #allocation8 [shape = 'u8[262144]{0}', space=vmem, size = 0x40000, scoped, tag = 'input window, operand 0']
    #allocation9 [shape = 's32[2]{0}', space=sflag, size = 0x8, scoped, tag = 'scoped memory for tpu_custom_call.1']
    #allocation10 [shape = 's32[2]{0}', space=sflag, size = 0x8, scoped, tag = 'scoped memory for tpu_custom_call.1']
    #allocation11 [shape = 'u8[131072]{0}', space=vmem, size = 0x20000, scoped, tag = 'input window, operand 1, single buffered']
    #allocation12 [shape = 's32[1]{0}', space=sflag, size = 0x4, scoped, tag = 'scoped memory for tpu_custom_call.1']
    #allocation13 [shape = 'u8[131072]{0}', space=vmem, size = 0x20000, scoped, tag = 'input window, operand 2, single buffered']
    #allocation14 [shape = 'u8[131072]{0}', space=vmem, size = 0x20000, scoped, tag = 'input window, operand 3, single buffered']
    #allocation15 [shape = 's32[1]{0}', space=sflag, size = 0x4, scoped, tag = 'scoped memory for tpu_custom_call.1']
    #allocation16 [shape = 'u8[32768]{0}', space=vmem, size = 0x8000, scoped, tag = 'input window, operand 5, single buffered']
    #allocation17 [shape = 'u8[8192]{0}', space=vmem, size = 0x2000, scoped, tag = 'output window, operand 0, single buffered']
    %12 = vsyncpa [#allocation9], 0
    %s13 = scalar_lea.sflag [#allocation9], 1
    %14 = vsyncpa %s13, 0
    %15 = vsyncpa [#allocation12], 0
    %16 = vsyncpa [#allocation15], 0
    %17 = vsyncpa [#allocation10], 0
    loop: start=0, step=1, limit=4
    $region2: #{tpu_custom_call.1} parent=1 // loop_pre_header
      _
    $region3: #{tpu_custom_call.1} parent=1 // loop_header
      %s19 = sphi 0, %s23
      %p20 = scmp.ge.s32.totalorder %s19, 4
      %s26 = sphi 0, %s38
      %s27 = sphi 0, %s34
      %s28 = sphi 0, %s26
      %s29 = sphi 0, %s27
      %s30 = sphi 0, %s28
      %s31 = sphi 0, %s29
      %s43 = sphi 0, %s45
      %s46 = sphi 0, %s43
      %s47 = sphi 0, %s46
      %s63 = sphi 0, %s47
      %s67 = sphi 0, %s67
      %s69 = sphi 0, %s67
      %s70 = sphi 0, %s69
      %s84 = sphi 0, %s70
      %s88 = sphi 0, %s88
      %s90 = sphi 0, %s88
      %s91 = sphi 0, %s90
      %s105 = sphi 0, %s91
      %s109 = sphi 0, %s109
      %s111 = sphi 0, %s109
      %s112 = sphi 0, %s111
      %s126 = sphi 0, %s112
      %s130 = sphi 0, %s130
      %s132 = sphi 0, %s130
      %s133 = sphi 0, %s132
      %s147 = sphi 0, %s133
      %s151 = sphi 0, %s151
      %s153 = sphi 0, %s151
      %s154 = sphi 0, %s153
      %s168 = sphi 0, %s154
      %s172 = sphi 0, %s172
      %s174 = sphi 0, %s172
      %s175 = sphi 0, %s174
      %s189 = sphi 0, %s175
      %s195 = sphi 0, %s197
      %s198 = sphi 0, %s195
      %s199 = sphi 0, %s198
      %s215 = sphi 0, %s199
    $region4: #{tpu_custom_call.1} parent=1 // loop_header_branch
      %22 = sbr.rel (%p20) target = $region8
    $region5: #{tpu_custom_call.1} parent=1 // loop_body
      %s24 = ssub.s32 %s19, 1
      %s25 = ssub.s32 %s19, 2
      %s32 = sadd.s32 1, %s27
      %p33 = scmp.ge.s32.totalorder %s32, 2
      %s34 = scalar_select %p33, 0, %s32
      %s35 = sadd.s32 1, %s26
      %s36 = scalar_select %p33, %s35, %s26
      %p37 = scmp.ge.s32.totalorder %s36, 1
      %s38 = scalar_select %p37, 0, %s36
      %s39 = ssub.s32 %s27, %s34
      %s40 = ssub.s32 %s26, %s38
      %s41 = sor.u32 %s39, %s40
      %p42 = scmp.eq.s32.totalorder %s41, 0
      %s44 = sadd.s32 %s43, 1
      %s45 = scalar_select %p42, %s43, %s44
      %p48 = pneg %p42
      %p49 = scmp.eq.s32.totalorder %s19, 1
      %p50 = por %p48, %p49
      %p51 = scmp.ne.s32.totalorder %s43, %s46
      %p52 = scmp.eq.s32.totalorder %s19, 0
      %p53 = por %p51, %p52
      %p54 = scmp.ne.s32.totalorder %s43, %s46
      %p55 = scmp.eq.s32.totalorder %s24, 1
      %p56 = por %p54, %p55
      %p57 = scmp.ne.s32.totalorder %s46, %s47
      %p58 = scmp.eq.s32.totalorder %s24, 0
      %p59 = por %p57, %p58
      %p60 = scmp.ne.s32.totalorder %s46, %s47
      %p61 = scmp.eq.s32.totalorder %s25, 1
      %p62 = por %p60, %p61
      %p64 = scmp.ne.s32.totalorder %s47, %s63
      %p65 = scmp.eq.s32.totalorder %s25, 0
      %p66 = por %p64, %p65
      %s68 = sadd.s32 %s67, 1
      %p71 = scmp.eq.s32.totalorder %s19, 1
      %p72 = scmp.ne.s32.totalorder %s67, %s69
      %p73 = scmp.eq.s32.totalorder %s19, 0
      %p74 = por %p72, %p73
      %p75 = scmp.ne.s32.totalorder %s67, %s69
      %p76 = scmp.eq.s32.totalorder %s24, 1
      %p77 = por %p75, %p76
      %p78 = scmp.ne.s32.totalorder %s69, %s70
      %p79 = scmp.eq.s32.totalorder %s24, 0
      %p80 = por %p78, %p79
      %p81 = scmp.ne.s32.totalorder %s69, %s70
      %p82 = scmp.eq.s32.totalorder %s25, 1
      %p83 = por %p81, %p82
      %p85 = scmp.ne.s32.totalorder %s70, %s84
      %p86 = scmp.eq.s32.totalorder %s25, 0
      %p87 = por %p85, %p86
      %s89 = sadd.s32 %s88, 1
      %p92 = scmp.eq.s32.totalorder %s19, 1
      %p93 = scmp.ne.s32.totalorder %s88, %s90
      %p94 = scmp.eq.s32.totalorder %s19, 0
      %p95 = por %p93, %p94
      %p96 = scmp.ne.s32.totalorder %s88, %s90
      %p97 = scmp.eq.s32.totalorder %s24, 1
      %p98 = por %p96, %p97
      %p99 = scmp.ne.s32.totalorder %s90, %s91
      %p100 = scmp.eq.s32.totalorder %s24, 0
      %p101 = por %p99, %p100
      %p102 = scmp.ne.s32.totalorder %s90, %s91
      %p103 = scmp.eq.s32.totalorder %s25, 1
      %p104 = por %p102, %p103
      %p106 = scmp.ne.s32.totalorder %s91, %s105
      %p107 = scmp.eq.s32.totalorder %s25, 0
      %p108 = por %p106, %p107
      %s110 = sadd.s32 %s109, 1
      %p113 = scmp.eq.s32.totalorder %s19, 1
      %p114 = scmp.ne.s32.totalorder %s109, %s111
      %p115 = scmp.eq.s32.totalorder %s19, 0
      %p116 = por %p114, %p115
      %p117 = scmp.ne.s32.totalorder %s109, %s111
      %p118 = scmp.eq.s32.totalorder %s24, 1
      %p119 = por %p117, %p118
      %p120 = scmp.ne.s32.totalorder %s111, %s112
      %p121 = scmp.eq.s32.totalorder %s24, 0
      %p122 = por %p120, %p121
      %p123 = scmp.ne.s32.totalorder %s111, %s112
      %p124 = scmp.eq.s32.totalorder %s25, 1
      %p125 = por %p123, %p124
      %p127 = scmp.ne.s32.totalorder %s112, %s126
      %p128 = scmp.eq.s32.totalorder %s25, 0
      %p129 = por %p127, %p128
      %s131 = sadd.s32 %s130, 1
      %p134 = scmp.eq.s32.totalorder %s19, 1
      %p135 = scmp.ne.s32.totalorder %s130, %s132
      %p136 = scmp.eq.s32.totalorder %s19, 0
      %p137 = por %p135, %p136
      %p138 = scmp.ne.s32.totalorder %s130, %s132
      %p139 = scmp.eq.s32.totalorder %s24, 1
      %p140 = por %p138, %p139
      %p141 = scmp.ne.s32.totalorder %s132, %s133
      %p142 = scmp.eq.s32.totalorder %s24, 0
      %p143 = por %p141, %p142
      %p144 = scmp.ne.s32.totalorder %s132, %s133
      %p145 = scmp.eq.s32.totalorder %s25, 1
      %p146 = por %p144, %p145
      %p148 = scmp.ne.s32.totalorder %s133, %s147
      %p149 = scmp.eq.s32.totalorder %s25, 0
      %p150 = por %p148, %p149
      %s152 = sadd.s32 %s151, 1
      %p155 = scmp.eq.s32.totalorder %s19, 1
      %p156 = scmp.ne.s32.totalorder %s151, %s153
      %p157 = scmp.eq.s32.totalorder %s19, 0
      %p158 = por %p156, %p157
      %p159 = scmp.ne.s32.totalorder %s151, %s153
      %p160 = scmp.eq.s32.totalorder %s24, 1
      %p161 = por %p159, %p160
      %p162 = scmp.ne.s32.totalorder %s153, %s154
      %p163 = scmp.eq.s32.totalorder %s24, 0
      %p164 = por %p162, %p163
      %p165 = scmp.ne.s32.totalorder %s153, %s154
      %p166 = scmp.eq.s32.totalorder %s25, 1
      %p167 = por %p165, %p166
      %p169 = scmp.ne.s32.totalorder %s154, %s168
      %p170 = scmp.eq.s32.totalorder %s25, 0
      %p171 = por %p169, %p170
      %s173 = sadd.s32 %s172, 1
      %p176 = scmp.eq.s32.totalorder %s19, 1
      %p177 = scmp.ne.s32.totalorder %s172, %s174
      %p178 = scmp.eq.s32.totalorder %s19, 0
      %p179 = por %p177, %p178
      %p180 = scmp.ne.s32.totalorder %s172, %s174
      %p181 = scmp.eq.s32.totalorder %s24, 1
      %p182 = por %p180, %p181
      %p183 = scmp.ne.s32.totalorder %s174, %s175
      %p184 = scmp.eq.s32.totalorder %s24, 0
      %p185 = por %p183, %p184
      %p186 = scmp.ne.s32.totalorder %s174, %s175
      %p187 = scmp.eq.s32.totalorder %s25, 1
      %p188 = por %p186, %p187
      %p190 = scmp.ne.s32.totalorder %s175, %s189
      %p191 = scmp.eq.s32.totalorder %s25, 0
      %p192 = por %p190, %p191
      %s193 = ssub.s32 %s26, %s38
      %p194 = scmp.eq.s32.totalorder %s193, 0
      %s196 = sadd.s32 %s195, 1
      %s197 = scalar_select %p194, %s195, %s196
      %p200 = pneg %p194
      %p201 = scmp.eq.s32.totalorder %s19, 1
      %p202 = por %p200, %p201
      %p203 = scmp.ne.s32.totalorder %s195, %s198
      %p204 = scmp.eq.s32.totalorder %s19, 0
      %p205 = por %p203, %p204
      %p206 = scmp.ne.s32.totalorder %s195, %s198
      %p207 = scmp.eq.s32.totalorder %s24, 1
      %p208 = por %p206, %p207
      %p209 = scmp.ne.s32.totalorder %s198, %s199
      %p210 = scmp.eq.s32.totalorder %s24, 0
      %p211 = por %p209, %p210
      %p212 = scmp.ne.s32.totalorder %s198, %s199
      %p213 = scmp.eq.s32.totalorder %s25, 1
      %p214 = por %p212, %p213
      %p216 = scmp.ne.s32.totalorder %s199, %s215
      %p217 = scmp.eq.s32.totalorder %s25, 0
      %p218 = por %p216, %p217
      %p219 = scmp.le.s32.totalorder 1, %s19
      %p220 = scmp.lt.s32.totalorder %s19, 3
      %p221 = pnand %p219, %p220
      %p222 = pneg %p221
      // Predicated region
      $region9: #{tpu_custom_call.1} parent=5 // pred_check
        _
      $region10: #{tpu_custom_call.1} parent=5 // pred_check_branch
        %224 = sbr.rel (%p221) target = $region12
      $region11: #{tpu_custom_call.1} parent=5 // pred_region
        %s225 = ssub.s32 %s19, 1
        // Predicated region
        $region13: #{tpu_custom_call.1} parent=11 // pred_check
          %p226 = pneg %p80
        $region14: #{tpu_custom_call.1} parent=11 // pred_check_branch
          %228 = sbr.rel (%p226) target = $region16
        $region15: #{tpu_custom_call.1} parent=11 // pred_region
          %s230 = ssub.s32 4096, 4096
          %231 = vsyncadd [#allocation12], %s230
          %s232 = sshll.u32 [#allocation11], 4
          %s233 = int_to_ptr.vmem [resolvable:$true] %s232
          %238 = dma.hbm_to_vmem [thread:$0]  %s1, 4096, %s233, [#allocation12], 256, 256, 16
        $region16: #{tpu_custom_call.1} parent=11 // pred_fallthru
          _
        // Predicated region
        $region17: #{tpu_custom_call.1} parent=11 // pred_check
          %p239 = pneg %p101
        $region18: #{tpu_custom_call.1} parent=11 // pred_check_branch
          %241 = sbr.rel (%p239) target = $region20
        $region19: #{tpu_custom_call.1} parent=11 // pred_region
          %s243 = ssub.s32 4096, 4096
          %244 = vsyncadd [#allocation12], %s243
          %s245 = sshll.u32 [#allocation13], 4
          %s246 = int_to_ptr.vmem [resolvable:$true] %s245
          %251 = dma.hbm_to_vmem [thread:$0]  %s2, 4096, %s246, [#allocation12], 256, 256, 16
        $region20: #{tpu_custom_call.1} parent=11 // pred_fallthru
          _
        // Predicated region
        $region21: #{tpu_custom_call.1} parent=11 // pred_check
          %p252 = pneg %p122
        $region22: #{tpu_custom_call.1} parent=11 // pred_check_branch
          %254 = sbr.rel (%p252) target = $region24
        $region23: #{tpu_custom_call.1} parent=11 // pred_region
          %s256 = ssub.s32 4096, 4096
          %257 = vsyncadd [#allocation15], %s256
          %s258 = sshll.u32 [#allocation14], 4
          %s259 = int_to_ptr.vmem [resolvable:$true] %s258
          %264 = dma.hbm_to_vmem [thread:$0]  %s3, 4096, %s259, [#allocation15], 256, 256, 16
        $region24: #{tpu_custom_call.1} parent=11 // pred_fallthru
          _
        // Predicated region
        $region25: #{tpu_custom_call.1} parent=11 // pred_check
          %p265 = pneg %p143
        $region26: #{tpu_custom_call.1} parent=11 // pred_check_branch
          %267 = sbr.rel (%p265) target = $region28
        $region27: #{tpu_custom_call.1} parent=11 // pred_region
          _
        $region28: #{tpu_custom_call.1} parent=11 // pred_fallthru
          _
        // Predicated region
        $region29: #{tpu_custom_call.1} parent=11 // pred_check
          %p268 = pneg %p164
        $region30: #{tpu_custom_call.1} parent=11 // pred_check_branch
          %270 = sbr.rel (%p268) target = $region32
        $region31: #{tpu_custom_call.1} parent=11 // pred_region
          %s272 = ssub.s32 1024, 1024
          %273 = vsyncadd [#allocation15], %s272
          %s274 = sshll.u32 [#allocation16], 4
          %s275 = int_to_ptr.vmem [resolvable:$true] %s274
          %280 = dma.hbm_to_vmem [thread:$0]  %s5, 1024, %s275, [#allocation15], 64, 64, 4
        $region32: #{tpu_custom_call.1} parent=11 // pred_fallthru
          _
        // Predicated region
        $region33: #{tpu_custom_call.1} parent=11 // pred_check
          %p281 = pneg %p185
        $region34: #{tpu_custom_call.1} parent=11 // pred_check_branch
          %283 = sbr.rel (%p281) target = $region36
        $region35: #{tpu_custom_call.1} parent=11 // pred_region
          _
        $region36: #{tpu_custom_call.1} parent=11 // pred_fallthru
          _
      $region12: #{tpu_custom_call.1} parent=5 // pred_fallthru
        _
      %p284 = scmp.lt.s32.totalorder %s19, 2
      // Predicated region
      $region37: #{tpu_custom_call.1} parent=5 // pred_check
        %p285 = pneg %p284
      $region38: #{tpu_custom_call.1} parent=5 // pred_check_branch
        %287 = sbr.rel (%p285) target = $region40
      $region39: #{tpu_custom_call.1} parent=5 // pred_region
        // Predicated region
        $region41: #{tpu_custom_call.1} parent=39 // pred_check
          %p288 = pneg %p53
        $region42: #{tpu_custom_call.1} parent=39 // pred_check_branch
          %290 = sbr.rel (%p288) target = $region44
        $region43: #{tpu_custom_call.1} parent=39 // pred_region
          %s291 = sand.u32 %s43, 1
          %s292 = scalar_lea.sflag [#allocation9], %s291
          %s293 = sand.u32 %s43, 1
          %s294 = smul.addr %s293, 256
          %s295 = scalar_lea.vmem [#allocation8], %s294
          %s296 = smul.u32 4, %s27
          %s297 = smul.u32 2, %s26
          %s299 = ssub.s32 4096, 4096
          %300 = vsyncadd %s292, %s299
          %s301 = smul.addr %s297, 4
          %s302 = smul.addr %s296, 8
          %s303 = sadd.s32 %s301, %s302
          %s304 = smul.addr %s303, 128
          %s305 = scalar_lea.hbm %s0, %s304
          %s306 = sshll.u32 %s295, 4
          %s307 = int_to_ptr.vmem [resolvable:$true] %s306
          %312 = dma.hbm_to_vmem [thread:$0]  %s305, 4096, %s307, %s292, 512, 512, 32
        $region44: #{tpu_custom_call.1} parent=39 // pred_fallthru
          _
      $region40: #{tpu_custom_call.1} parent=5 // pred_fallthru
        _
      %p313 = scmp.le.s32.totalorder 1, %s19
      %p314 = scmp.lt.s32.totalorder %s19, 3
      %p315 = pnand %p313, %p314
      %p316 = pneg %p315
      // Predicated region
      $region45: #{tpu_custom_call.1} parent=5 // pred_check
        _
      $region46: #{tpu_custom_call.1} parent=5 // pred_check_branch
        %318 = sbr.rel (%p315) target = $region48
      $region47: #{tpu_custom_call.1} parent=5 // pred_region
        %s319 = ssub.s32 %s19, 1
        %s320 = sand.u32 %s46, 1
        %s321 = scalar_lea.sflag [#allocation9], %s320
        %s322 = sand.u32 %s46, 1
        %s323 = smul.addr %s322, 256
        %s324 = scalar_lea.vmem [#allocation8], %s323
        // Predicated region
        $region49: #{tpu_custom_call.1} parent=47 // pred_check
          %p325 = pneg %p59
        $region50: #{tpu_custom_call.1} parent=47 // pred_check_branch
          %327 = sbr.rel (%p325) target = $region52
        $region51: #{tpu_custom_call.1} parent=47 // pred_region
          %328 = dma.done %s321, 4096
        $region52: #{tpu_custom_call.1} parent=47 // pred_fallthru
          _
        // Predicated region
        $region53: #{tpu_custom_call.1} parent=47 // pred_check
          %p329 = pneg %p80
        $region54: #{tpu_custom_call.1} parent=47 // pred_check_branch
          %331 = sbr.rel (%p329) target = $region56
        $region55: #{tpu_custom_call.1} parent=47 // pred_region
          %332 = dma.done [#allocation12], 4096
        $region56: #{tpu_custom_call.1} parent=47 // pred_fallthru
          _
        // Predicated region
        $region57: #{tpu_custom_call.1} parent=47 // pred_check
          %p333 = pneg %p101
        $region58: #{tpu_custom_call.1} parent=47 // pred_check_branch
          %335 = sbr.rel (%p333) target = $region60
        $region59: #{tpu_custom_call.1} parent=47 // pred_region
          %336 = dma.done [#allocation12], 4096
        $region60: #{tpu_custom_call.1} parent=47 // pred_fallthru
          _
        // Predicated region
        $region61: #{tpu_custom_call.1} parent=47 // pred_check
          %p337 = pneg %p122
        $region62: #{tpu_custom_call.1} parent=47 // pred_check_branch
          %339 = sbr.rel (%p337) target = $region64
        $region63: #{tpu_custom_call.1} parent=47 // pred_region
          %340 = dma.done [#allocation15], 4096
        $region64: #{tpu_custom_call.1} parent=47 // pred_fallthru
          _
        // Predicated region
        $region65: #{tpu_custom_call.1} parent=47 // pred_check
          %p341 = pneg %p164
        $region66: #{tpu_custom_call.1} parent=47 // pred_check_branch
          %343 = sbr.rel (%p341) target = $region68
        $region67: #{tpu_custom_call.1} parent=47 // pred_region
          %344 = dma.done [#allocation15], 1024
        $region68: #{tpu_custom_call.1} parent=47 // pred_fallthru
          _
        %s345 = sand.u32 %s46, 1
        %s346 = scalar_lea.sflag [#allocation9], %s345
        %s347 = sand.u32 %s46, 1
        %s348 = smul.addr %s347, 256
        %s349 = scalar_lea.vmem [#allocation8], %s348
        %p350 = pneg %p59
        %p351 = pneg %p56
        %p352 = pneg %p80
        %p353 = pneg %p77
        %p354 = pneg %p101
        %p355 = pneg %p98
        %p356 = pneg %p122
        %p357 = pneg %p119
        %p358 = pneg %p143
        %p359 = pneg %p140
        %p360 = pneg %p164
        %p361 = pneg %p161
        %p362 = pneg %p185
        %p363 = pneg %p182
        %p364 = pneg %p211
        %p365 = pneg %p208
        %s366 = smul.u32 4, %s29
        %s367 = smul.u32 2, %s28
        %s368 = smul.u32 2, %s28
        %p370 = scmp.eq.s32.totalorder %s29, 0
        // Predicated region
        $region69: #{tpu_custom_call.1} parent=47 // pred_check
          %p371 = pneg %p370
        $region70: #{tpu_custom_call.1} parent=47 // pred_check_branch
          %373 = sbr.rel (%p371) target = $region72
        $region71: #{tpu_custom_call.1} parent=47 // pred_region
          %374 = vst [vmem:[#allocation4] sm:$0xff] 0.0
          %375 = vst [vmem:[#allocation4 + $0x8] sm:$0xff] 0.0
          %376 = vst [vmem:[#allocation5] sm:$0xff] 0.0
          %377 = vst [vmem:[#allocation5 + $0x8] sm:$0xff] 0.0
          %378 = vst [vmem:[#allocation6] sm:$0xff] 0.0
          %379 = vst [vmem:[#allocation6 + $0x8] sm:$0xff] 0.0
          %380 = vst [vmem:[#allocation7] sm:$0xff] 0.0
          %381 = vst [vmem:[#allocation7 + $0x8] sm:$0xff] 0.0
        $region72: #{tpu_custom_call.1} parent=47 // pred_fallthru
          _
        %v382 = vld [vmem:[#allocation4] sm:$0xff]
        %v383 = vld [vmem:[#allocation4 + $0x8] sm:$0xff]
        %v384 = vld [vmem:[#allocation5] sm:$0xff]
        %v385 = vld [vmem:[#allocation5 + $0x8] sm:$0xff]
        %v386 = vld [vmem:[%s324] sm:$0xff]
        %v387 = vld [vmem:[%s324 + $0x8] sm:$0xff]
        %v388 = vld [vmem:[%s324 + $0x10] sm:$0xff]
        %v389 = vld [vmem:[%s324 + $0x18] sm:$0xff]
        %v390 = vld [vmem:[%s324 + $0x20] sm:$0xff]
        %v391 = vld [vmem:[%s324 + $0x28] sm:$0xff]
        %v392 = vld [vmem:[%s324 + $0x30] sm:$0xff]
        %v393 = vld [vmem:[%s324 + $0x38] sm:$0xff]
        %v394 = vpack.c.bf16 %v383, %v382
        %v395 = vld [vmem:[#allocation11] sm:$0xff]
        %v396 = vld [vmem:[#allocation11 + $0x8] sm:$0xff]
        %v397 = vld [vmem:[#allocation11 + $0x10] sm:$0xff]
        %v398 = vld [vmem:[#allocation11 + $0x18] sm:$0xff]
        %v399 = vld [vmem:[#allocation11 + $0x20] sm:$0xff]
        %v400 = vld [vmem:[#allocation11 + $0x28] sm:$0xff]
        %v401 = vld [vmem:[#allocation11 + $0x30] sm:$0xff]
        %v402 = vld [vmem:[#allocation11 + $0x38] sm:$0xff]
        %v403 = vld [vmem:[#allocation11 + $0x40] sm:$0xff]
        %v404 = vld [vmem:[#allocation11 + $0x48] sm:$0xff]
        %v405 = vld [vmem:[#allocation11 + $0x50] sm:$0xff]
        %v406 = vld [vmem:[#allocation11 + $0x58] sm:$0xff]
        %v407 = vld [vmem:[#allocation11 + $0x60] sm:$0xff]
        %v408 = vld [vmem:[#allocation11 + $0x68] sm:$0xff]
        %v409 = vld [vmem:[#allocation11 + $0x70] sm:$0xff]
        %v410 = vld [vmem:[#allocation11 + $0x78] sm:$0xff]
        %v411 = vld [vmem:[#allocation11 + $0x80] sm:$0xff]
        %v412 = vld [vmem:[#allocation11 + $0x88] sm:$0xff]
        %v413 = vld [vmem:[#allocation11 + $0x90] sm:$0xff]
        %v414 = vld [vmem:[#allocation11 + $0x98] sm:$0xff]
        %v415 = vld [vmem:[#allocation11 + $0xa0] sm:$0xff]
        %v416 = vld [vmem:[#allocation11 + $0xa8] sm:$0xff]
        %v417 = vld [vmem:[#allocation11 + $0xb0] sm:$0xff]
        %v418 = vld [vmem:[#allocation11 + $0xb8] sm:$0xff]
        %v419 = vld [vmem:[#allocation11 + $0xc0] sm:$0xff]
        %v420 = vld [vmem:[#allocation11 + $0xc8] sm:$0xff]
        %v421 = vld [vmem:[#allocation11 + $0xd0] sm:$0xff]
        %v422 = vld [vmem:[#allocation11 + $0xd8] sm:$0xff]
        %v423 = vld [vmem:[#allocation11 + $0xe0] sm:$0xff]
        %v424 = vld [vmem:[#allocation11 + $0xe8] sm:$0xff]
        %v425 = vld [vmem:[#allocation11 + $0xf0] sm:$0xff]
        %v426 = vld [vmem:[#allocation11 + $0xf8] sm:$0xff]
        %v459 = vunpack.c.l.b16 %v395
        %v460 = vunpack.c.h.b16 %v395
        %v461 = vunpack.c.l.b16 %v396
        %v462 = vunpack.c.h.b16 %v396
        %v463 = vunpack.c.l.b16 %v397
        %v464 = vunpack.c.h.b16 %v397
        %v465 = vunpack.c.l.b16 %v398
        %v466 = vunpack.c.h.b16 %v398
        %v467 = vunpack.c.l.b16 %v399
        %v468 = vunpack.c.h.b16 %v399
        %v469 = vunpack.c.l.b16 %v400
        %v470 = vunpack.c.h.b16 %v400
        %v471 = vunpack.c.l.b16 %v401
        %v472 = vunpack.c.h.b16 %v401
        %v473 = vunpack.c.l.b16 %v402
        %v474 = vunpack.c.h.b16 %v402
        %v475 = vunpack.c.l.b16 %v403
        %v476 = vunpack.c.h.b16 %v403
        %v477 = vunpack.c.l.b16 %v404
        %v478 = vunpack.c.h.b16 %v404
        %v479 = vunpack.c.l.b16 %v405
        %v480 = vunpack.c.h.b16 %v405
        %v481 = vunpack.c.l.b16 %v406
        %v482 = vunpack.c.h.b16 %v406
        %v483 = vunpack.c.l.b16 %v407
        %v484 = vunpack.c.h.b16 %v407
        %v485 = vunpack.c.l.b16 %v408
        %v486 = vunpack.c.h.b16 %v408
        %v487 = vunpack.c.l.b16 %v409
        %v488 = vunpack.c.h.b16 %v409
        %v489 = vunpack.c.l.b16 %v410
        %v490 = vunpack.c.h.b16 %v410
        %v491 = vunpack.c.l.b16 %v411
        %v492 = vunpack.c.h.b16 %v411
        %v493 = vunpack.c.l.b16 %v412
        %v494 = vunpack.c.h.b16 %v412
        %v495 = vunpack.c.l.b16 %v413
        %v496 = vunpack.c.h.b16 %v413
        %v497 = vunpack.c.l.b16 %v414
        %v498 = vunpack.c.h.b16 %v414
        %v499 = vunpack.c.l.b16 %v415
        %v500 = vunpack.c.h.b16 %v415
        %v501 = vunpack.c.l.b16 %v416
        %v502 = vunpack.c.h.b16 %v416
        %v503 = vunpack.c.l.b16 %v417
        %v504 = vunpack.c.h.b16 %v417
        %v505 = vunpack.c.l.b16 %v418
        %v506 = vunpack.c.h.b16 %v418
        %v507 = vunpack.c.l.b16 %v419
        %v508 = vunpack.c.h.b16 %v419
        %v509 = vunpack.c.l.b16 %v420
        %v510 = vunpack.c.h.b16 %v420
        %v511 = vunpack.c.l.b16 %v421
        %v512 = vunpack.c.h.b16 %v421
        %v513 = vunpack.c.l.b16 %v422
        %v514 = vunpack.c.h.b16 %v422
        %v515 = vunpack.c.l.b16 %v423
        %v516 = vunpack.c.h.b16 %v423
        %v517 = vunpack.c.l.b16 %v424
        %v518 = vunpack.c.h.b16 %v424
        %v519 = vunpack.c.l.b16 %v425
        %v520 = vunpack.c.h.b16 %v425
        %v521 = vunpack.c.l.b16 %v426
        %v522 = vunpack.c.h.b16 %v426
        %v523 = vpack.c.b16 %v463, %v459
        %v524 = vpack.c.b16 %v464, %v460
        %v525 = vpack.c.b16 %v465, %v461
        %v526 = vpack.c.b16 %v466, %v462
        %v527 = vpack.c.b16 %v471, %v467
        %v528 = vpack.c.b16 %v472, %v468
        %v529 = vpack.c.b16 %v473, %v469
        %v530 = vpack.c.b16 %v474, %v470
        %v531 = vpack.c.b16 %v479, %v475
        %v532 = vpack.c.b16 %v480, %v476
        %v533 = vpack.c.b16 %v481, %v477
        %v534 = vpack.c.b16 %v482, %v478
        %v535 = vpack.c.b16 %v487, %v483
        %v536 = vpack.c.b16 %v488, %v484
        %v537 = vpack.c.b16 %v489, %v485
        %v538 = vpack.c.b16 %v490, %v486
        %v539 = vpack.c.b16 %v495, %v491
        %v540 = vpack.c.b16 %v496, %v492
        %v541 = vpack.c.b16 %v497, %v493
        %v542 = vpack.c.b16 %v498, %v494
        %v543 = vpack.c.b16 %v503, %v499
        %v544 = vpack.c.b16 %v504, %v500
        %v545 = vpack.c.b16 %v505, %v501
        %v546 = vpack.c.b16 %v506, %v502
        %v547 = vpack.c.b16 %v511, %v507
        %v548 = vpack.c.b16 %v512, %v508
        %v549 = vpack.c.b16 %v513, %v509
        %v550 = vpack.c.b16 %v514, %v510
        %v551 = vpack.c.b16 %v519, %v515
        %v552 = vpack.c.b16 %v520, %v516
        %v553 = vpack.c.b16 %v521, %v517
        %v554 = vpack.c.b16 %v522, %v518
        %587 = vmatprep.subr.bf16.mxu0 %v524
        %588 = vmatpush1.bf16.msra.mxu0 %v523
        %589 = vmatprep.subr.bf16.mxu0 %v528
        %590 = vmatpush1.bf16.msra.mxu0 %v527
        %591 = vmatprep.subr.bf16.mxu0 %v532
        %592 = vmatpush1.bf16.msra.mxu0 %v531
        %593 = vmatprep.subr.bf16.mxu0 %v536
        %594 = vmatpush1.bf16.msra.mxu0 %v535
        %595 = vmatprep.subr.bf16.mxu0 %v540
        %596 = vmatpush1.bf16.msra.mxu0 %v539
        %597 = vmatprep.subr.bf16.mxu0 %v544
        %598 = vmatpush1.bf16.msra.mxu0 %v543
        %599 = vmatprep.subr.bf16.mxu0 %v548
        %600 = vmatpush1.bf16.msra.mxu0 %v547
        %601 = vmatprep.subr.bf16.mxu0 %v552
        %602 = vmatpush1.bf16.msra.mxu0 %v551
        %603 = vmatprep.subr.bf16.mxu0 0
        %604 = vmatpush1.bf16.msra.mxu0 0
        %605 = vmatprep.subr.bf16.mxu0 0
        %606 = vmatpush1.bf16.msra.mxu0 0
        %607 = vmatprep.subr.bf16.mxu0 0
        %608 = vmatpush1.bf16.msra.mxu0 0
        %609 = vmatprep.subr.bf16.mxu0 0
        %610 = vmatpush1.bf16.msra.mxu0 0
        %611 = vmatprep.subr.bf16.mxu0 0
        %612 = vmatpush1.bf16.msra.mxu0 0
        %613 = vmatprep.subr.bf16.mxu0 0
        %614 = vmatpush1.bf16.msra.mxu0 0
        %615 = vmatprep.subr.bf16.mxu0 0
        %616 = vmatpush1.bf16.msra.mxu0 0
        %617 = vmatprep.subr.bf16.mxu0 0
        %618 = vmatpush1.bf16.msra.mxu0 0
        %619 = vmatprep.mubr.bf16.mxu0 0
        %620 = vmatmul.mubr.bf16.gmra.mrb[0].mxu0 %v394
        %v621 = vpop.f32.mrb[0].mxu0
        %v622 = vadd.f32 0.0, %v621
        %v623 = vpop.f32.mrb[0].mxu0
        %v624 = vadd.f32 0.0, %v623
        %v625 = vpop.f32.mrb[0].mxu0
        %v626 = vadd.f32 0.0, %v625
        %v627 = vpop.f32.mrb[0].mxu0
        %v628 = vadd.f32 0.0, %v627
        %629 = vdwg.mxu0
        %630 = vmatprep.subr.bf16.mxu0 %v526
        %631 = vmatpush1.bf16.msra.mxu0 %v525
        %632 = vmatprep.subr.bf16.mxu0 %v530
        %633 = vmatpush1.bf16.msra.mxu0 %v529
        %634 = vmatprep.subr.bf16.mxu0 %v534
        %635 = vmatpush1.bf16.msra.mxu0 %v533
        %636 = vmatprep.subr.bf16.mxu0 %v538
        %637 = vmatpush1.bf16.msra.mxu0 %v537
        %638 = vmatprep.subr.bf16.mxu0 %v542
        %639 = vmatpush1.bf16.msra.mxu0 %v541
        %640 = vmatprep.subr.bf16.mxu0 %v546
        %641 = vmatpush1.bf16.msra.mxu0 %v545
        %642 = vmatprep.subr.bf16.mxu0 %v550
        %643 = vmatpush1.bf16.msra.mxu0 %v549
        %644 = vmatprep.subr.bf16.mxu0 %v554
        %645 = vmatpush1.bf16.msra.mxu0 %v553
        %646 = vmatprep.subr.bf16.mxu0 0
        %647 = vmatpush1.bf16.msra.mxu0 0
        %648 = vmatprep.subr.bf16.mxu0 0
        %649 = vmatpush1.bf16.msra.mxu0 0
        %650 = vmatprep.subr.bf16.mxu0 0
        %651 = vmatpush1.bf16.msra.mxu0 0
        %652 = vmatprep.subr.bf16.mxu0 0
        %653 = vmatpush1.bf16.msra.mxu0 0
        %654 = vmatprep.subr.bf16.mxu0 0
        %655 = vmatpush1.bf16.msra.mxu0 0
        %656 = vmatprep.subr.bf16.mxu0 0
        %657 = vmatpush1.bf16.msra.mxu0 0
        %658 = vmatprep.subr.bf16.mxu0 0
        %659 = vmatpush1.bf16.msra.mxu0 0
        %660 = vmatprep.subr.bf16.mxu0 0
        %661 = vmatpush1.bf16.msra.mxu0 0
        %662 = vmatprep.mubr.bf16.mxu0 0
        %663 = vmatmul.mubr.bf16.gmra.mrb[0].mxu0 %v394
        %v664 = vpop.f32.mrb[0].mxu0
        %v665 = vadd.f32 0.0, %v664
        %v666 = vpop.f32.mrb[0].mxu0
        %v667 = vadd.f32 0.0, %v666
        %v668 = vpop.f32.mrb[0].mxu0
        %v669 = vadd.f32 0.0, %v668
        %v670 = vpop.f32.mrb[0].mxu0
        %v671 = vadd.f32 0.0, %v670
        %672 = vdwg.mxu0
        %v673 = vadd.f32 %v386, %v622
        %v674 = vadd.f32 %v387, %v624
        %v675 = vadd.f32 %v388, %v665
        %v676 = vadd.f32 %v389, %v667
        %v677 = vadd.f32 %v390, %v626
        %v678 = vadd.f32 %v391, %v628
        %v679 = vadd.f32 %v392, %v669
        %v680 = vadd.f32 %v393, %v671
        %v681 = vmul.f32 %v673, 0.5
        %v682 = vmul.f32 %v677, 0.5
        %v683 = vtanh.pop %v681
        %v684 = vtanh.pop %v682
        %v685 = vmul.f32 %v683, 0.5
        %v686 = vmul.f32 %v684, 0.5
        %v687 = vadd.f32 %v685, 0.5
        %v688 = vadd.f32 %v686, 0.5
        %v689 = vmul.f32 %v674, 0.5
        %v690 = vmul.f32 %v678, 0.5
        %v691 = vtanh.pop %v689
        %v692 = vtanh.pop %v690
        %v693 = vmul.f32 %v691, 0.5
        %v694 = vmul.f32 %v692, 0.5
        %v695 = vadd.f32 %v693, 0.5
        %v696 = vadd.f32 %v694, 0.5
        %v697 = vtanh.pop %v675
        %v698 = vtanh.pop %v679
        %v699 = vmul.f32 %v676, 0.5
        %v700 = vmul.f32 %v680, 0.5
        %v701 = vtanh.pop %v699
        %v702 = vtanh.pop %v700
        %v703 = vmul.f32 %v701, 0.5
        %v704 = vmul.f32 %v702, 0.5
        %v705 = vadd.f32 %v703, 0.5
        %v706 = vadd.f32 %v704, 0.5
        %v707 = vmul.f32 %v695, %v384
        %v708 = vmul.f32 %v696, %v385
        %v709 = vmul.f32 %v687, %v697
        %v710 = vmul.f32 %v688, %v698
        %v711 = vadd.f32 %v707, %v709
        %v712 = vadd.f32 %v708, %v710
        %v713 = vtanh.pop %v711
        %v714 = vtanh.pop %v712
        %v715 = vmul.f32 %v705, %v713
        %v716 = vmul.f32 %v706, %v714
        %v717 = vpack.c.bf16 %v716, %v715
        %718 = vst [vmem:[#allocation2] sm:$0xff] %v717
        %s719 = scalar_lea.vmem %s324, 64 [#allocation8]
        %v720 = vld [vmem:[%s719] sm:$0xff]
        %v721 = vld [vmem:[%s719 + $0x8] sm:$0xff]
        %v722 = vld [vmem:[%s719 + $0x10] sm:$0xff]
        %v723 = vld [vmem:[%s719 + $0x18] sm:$0xff]
        %v724 = vld [vmem:[%s719 + $0x20] sm:$0xff]
        %v725 = vld [vmem:[%s719 + $0x28] sm:$0xff]
        %v726 = vld [vmem:[%s719 + $0x30] sm:$0xff]
        %v727 = vld [vmem:[%s719 + $0x38] sm:$0xff]
        %v728 = vld [vmem:[#allocation11] sm:$0xff]
        %v729 = vld [vmem:[#allocation11 + $0x8] sm:$0xff]
        %v730 = vld [vmem:[#allocation11 + $0x10] sm:$0xff]
        %v731 = vld [vmem:[#allocation11 + $0x18] sm:$0xff]
        %v732 = vld [vmem:[#allocation11 + $0x20] sm:$0xff]
        %v733 = vld [vmem:[#allocation11 + $0x28] sm:$0xff]
        %v734 = vld [vmem:[#allocation11 + $0x30] sm:$0xff]
        %v735 = vld [vmem:[#allocation11 + $0x38] sm:$0xff]
        %v736 = vld [vmem:[#allocation11 + $0x40] sm:$0xff]
        %v737 = vld [vmem:[#allocation11 + $0x48] sm:$0xff]
        %v738 = vld [vmem:[#allocation11 + $0x50] sm:$0xff]
        %v739 = vld [vmem:[#allocation11 + $0x58] sm:$0xff]
        %v740 = vld [vmem:[#allocation11 + $0x60] sm:$0xff]
        %v741 = vld [vmem:[#allocation11 + $0x68] sm:$0xff]
        %v742 = vld [vmem:[#allocation11 + $0x70] sm:$0xff]
        %v743 = vld [vmem:[#allocation11 + $0x78] sm:$0xff]
        %v744 = vld [vmem:[#allocation11 + $0x80] sm:$0xff]
        %v745 = vld [vmem:[#allocation11 + $0x88] sm:$0xff]
        %v746 = vld [vmem:[#allocation11 + $0x90] sm:$0xff]
        %v747 = vld [vmem:[#allocation11 + $0x98] sm:$0xff]
        %v748 = vld [vmem:[#allocation11 + $0xa0] sm:$0xff]
        %v749 = vld [vmem:[#allocation11 + $0xa8] sm:$0xff]
        %v750 = vld [vmem:[#allocation11 + $0xb0] sm:$0xff]
        %v751 = vld [vmem:[#allocation11 + $0xb8] sm:$0xff]
        %v752 = vld [vmem:[#allocation11 + $0xc0] sm:$0xff]
        %v753 = vld [vmem:[#allocation11 + $0xc8] sm:$0xff]
        %v754 = vld [vmem:[#allocation11 + $0xd0] sm:$0xff]
        %v755 = vld [vmem:[#allocation11 + $0xd8] sm:$0xff]
        %v756 = vld [vmem:[#allocation11 + $0xe0] sm:$0xff]
        %v757 = vld [vmem:[#allocation11 + $0xe8] sm:$0xff]
        %v758 = vld [vmem:[#allocation11 + $0xf0] sm:$0xff]
        %v759 = vld [vmem:[#allocation11 + $0xf8] sm:$0xff]
        %v792 = vunpack.c.l.b16 %v728
        %v793 = vunpack.c.h.b16 %v728
        %v794 = vunpack.c.l.b16 %v729
        %v795 = vunpack.c.h.b16 %v729
        %v796 = vunpack.c.l.b16 %v730
        %v797 = vunpack.c.h.b16 %v730
        %v798 = vunpack.c.l.b16 %v731
        %v799 = vunpack.c.h.b16 %v731
        %v800 = vunpack.c.l.b16 %v732
        %v801 = vunpack.c.h.b16 %v732
        %v802 = vunpack.c.l.b16 %v733
        %v803 = vunpack.c.h.b16 %v733
        %v804 = vunpack.c.l.b16 %v734
        %v805 = vunpack.c.h.b16 %v734
        %v806 = vunpack.c.l.b16 %v735
        %v807 = vunpack.c.h.b16 %v735
        %v808 = vunpack.c.l.b16 %v736
        %v809 = vunpack.c.h.b16 %v736
        %v810 = vunpack.c.l.b16 %v737
        %v811 = vunpack.c.h.b16 %v737
        %v812 = vunpack.c.l.b16 %v738
        %v813 = vunpack.c.h.b16 %v738
        %v814 = vunpack.c.l.b16 %v739
        %v815 = vunpack.c.h.b16 %v739
        %v816 = vunpack.c.l.b16 %v740
        %v817 = vunpack.c.h.b16 %v740
        %v818 = vunpack.c.l.b16 %v741
        %v819 = vunpack.c.h.b16 %v741
        %v820 = vunpack.c.l.b16 %v742
        %v821 = vunpack.c.h.b16 %v742
        %v822 = vunpack.c.l.b16 %v743
        %v823 = vunpack.c.h.b16 %v743
        %v824 = vunpack.c.l.b16 %v744
        %v825 = vunpack.c.h.b16 %v744
        %v826 = vunpack.c.l.b16 %v745
        %v827 = vunpack.c.h.b16 %v745
        %v828 = vunpack.c.l.b16 %v746
        %v829 = vunpack.c.h.b16 %v746
        %v830 = vunpack.c.l.b16 %v747
        %v831 = vunpack.c.h.b16 %v747
        %v832 = vunpack.c.l.b16 %v748
        %v833 = vunpack.c.h.b16 %v748
        %v834 = vunpack.c.l.b16 %v749
        %v835 = vunpack.c.h.b16 %v749
        %v836 = vunpack.c.l.b16 %v750
        %v837 = vunpack.c.h.b16 %v750
        %v838 = vunpack.c.l.b16 %v751
        %v839 = vunpack.c.h.b16 %v751
        %v840 = vunpack.c.l.b16 %v752
        %v841 = vunpack.c.h.b16 %v752
        %v842 = vunpack.c.l.b16 %v753
        %v843 = vunpack.c.h.b16 %v753
        %v844 = vunpack.c.l.b16 %v754
        %v845 = vunpack.c.h.b16 %v754
        %v846 = vunpack.c.l.b16 %v755
        %v847 = vunpack.c.h.b16 %v755
        %v848 = vunpack.c.l.b16 %v756
        %v849 = vunpack.c.h.b16 %v756
        %v850 = vunpack.c.l.b16 %v757
        %v851 = vunpack.c.h.b16 %v757
        %v852 = vunpack.c.l.b16 %v758
        %v853 = vunpack.c.h.b16 %v758
        %v854 = vunpack.c.l.b16 %v759
        %v855 = vunpack.c.h.b16 %v759
        %v856 = vpack.c.b16 %v796, %v792
        %v857 = vpack.c.b16 %v797, %v793
        %v858 = vpack.c.b16 %v798, %v794
        %v859 = vpack.c.b16 %v799, %v795
        %v860 = vpack.c.b16 %v804, %v800
        %v861 = vpack.c.b16 %v805, %v801
        %v862 = vpack.c.b16 %v806, %v802
        %v863 = vpack.c.b16 %v807, %v803
        %v864 = vpack.c.b16 %v812, %v808
        %v865 = vpack.c.b16 %v813, %v809
        %v866 = vpack.c.b16 %v814, %v810
        %v867 = vpack.c.b16 %v815, %v811
        %v868 = vpack.c.b16 %v820, %v816
        %v869 = vpack.c.b16 %v821, %v817
        %v870 = vpack.c.b16 %v822, %v818
        %v871 = vpack.c.b16 %v823, %v819
        %v872 = vpack.c.b16 %v828, %v824
        %v873 = vpack.c.b16 %v829, %v825
        %v874 = vpack.c.b16 %v830, %v826
        %v875 = vpack.c.b16 %v831, %v827
        %v876 = vpack.c.b16 %v836, %v832
        %v877 = vpack.c.b16 %v837, %v833
        %v878 = vpack.c.b16 %v838, %v834
        %v879 = vpack.c.b16 %v839, %v835
        %v880 = vpack.c.b16 %v844, %v840
        %v881 = vpack.c.b16 %v845, %v841
        %v882 = vpack.c.b16 %v846, %v842
        %v883 = vpack.c.b16 %v847, %v843
        %v884 = vpack.c.b16 %v852, %v848
        %v885 = vpack.c.b16 %v853, %v849
        %v886 = vpack.c.b16 %v854, %v850
        %v887 = vpack.c.b16 %v855, %v851
        %920 = vmatprep.subr.bf16.mxu0 %v857
        %921 = vmatpush1.bf16.msra.mxu0 %v856
        %922 = vmatprep.subr.bf16.mxu0 %v861
        %923 = vmatpush1.bf16.msra.mxu0 %v860
        %924 = vmatprep.subr.bf16.mxu0 %v865
        %925 = vmatpush1.bf16.msra.mxu0 %v864
        %926 = vmatprep.subr.bf16.mxu0 %v869
        %927 = vmatpush1.bf16.msra.mxu0 %v868
        %928 = vmatprep.subr.bf16.mxu0 %v873
        %929 = vmatpush1.bf16.msra.mxu0 %v872
        %930 = vmatprep.subr.bf16.mxu0 %v877
        %931 = vmatpush1.bf16.msra.mxu0 %v876
        %932 = vmatprep.subr.bf16.mxu0 %v881
        %933 = vmatpush1.bf16.msra.mxu0 %v880
        %934 = vmatprep.subr.bf16.mxu0 %v885
        %935 = vmatpush1.bf16.msra.mxu0 %v884
        %936 = vmatprep.subr.bf16.mxu0 0
        %937 = vmatpush1.bf16.msra.mxu0 0
        %938 = vmatprep.subr.bf16.mxu0 0
        %939 = vmatpush1.bf16.msra.mxu0 0
        %940 = vmatprep.subr.bf16.mxu0 0
        %941 = vmatpush1.bf16.msra.mxu0 0
        %942 = vmatprep.subr.bf16.mxu0 0
        %943 = vmatpush1.bf16.msra.mxu0 0
        %944 = vmatprep.subr.bf16.mxu0 0
        %945 = vmatpush1.bf16.msra.mxu0 0
        %946 = vmatprep.subr.bf16.mxu0 0
        %947 = vmatpush1.bf16.msra.mxu0 0
        %948 = vmatprep.subr.bf16.mxu0 0
        %949 = vmatpush1.bf16.msra.mxu0 0
        %950 = vmatprep.subr.bf16.mxu0 0
        %951 = vmatpush1.bf16.msra.mxu0 0
        %952 = vmatprep.mubr.bf16.mxu0 0
        %953 = vmatmul.mubr.bf16.gmra.mrb[0].mxu0 %v717
        %v954 = vpop.f32.mrb[0].mxu0
        %v955 = vadd.f32 0.0, %v954
        %v956 = vpop.f32.mrb[0].mxu0
        %v957 = vadd.f32 0.0, %v956
        %v958 = vpop.f32.mrb[0].mxu0
        %v959 = vadd.f32 0.0, %v958
        %v960 = vpop.f32.mrb[0].mxu0
        %v961 = vadd.f32 0.0, %v960
        %962 = vdwg.mxu0
        %963 = vmatprep.subr.bf16.mxu0 %v859
        %964 = vmatpush1.bf16.msra.mxu0 %v858
        %965 = vmatprep.subr.bf16.mxu0 %v863
        %966 = vmatpush1.bf16.msra.mxu0 %v862
        %967 = vmatprep.subr.bf16.mxu0 %v867
        %968 = vmatpush1.bf16.msra.mxu0 %v866
        %969 = vmatprep.subr.bf16.mxu0 %v871
        %970 = vmatpush1.bf16.msra.mxu0 %v870
        %971 = vmatprep.subr.bf16.mxu0 %v875
        %972 = vmatpush1.bf16.msra.mxu0 %v874
        %973 = vmatprep.subr.bf16.mxu0 %v879
        %974 = vmatpush1.bf16.msra.mxu0 %v878
        %975 = vmatprep.subr.bf16.mxu0 %v883
        %976 = vmatpush1.bf16.msra.mxu0 %v882
        %977 = vmatprep.subr.bf16.mxu0 %v887
        %978 = vmatpush1.bf16.msra.mxu0 %v886
        %979 = vmatprep.subr.bf16.mxu0 0
        %980 = vmatpush1.bf16.msra.mxu0 0
        %981 = vmatprep.subr.bf16.mxu0 0
        %982 = vmatpush1.bf16.msra.mxu0 0
        %983 = vmatprep.subr.bf16.mxu0 0
        %984 = vmatpush1.bf16.msra.mxu0 0
        %985 = vmatprep.subr.bf16.mxu0 0
        %986 = vmatpush1.bf16.msra.mxu0 0
        %987 = vmatprep.subr.bf16.mxu0 0
        %988 = vmatpush1.bf16.msra.mxu0 0
        %989 = vmatprep.subr.bf16.mxu0 0
        %990 = vmatpush1.bf16.msra.mxu0 0
        %991 = vmatprep.subr.bf16.mxu0 0
        %992 = vmatpush1.bf16.msra.mxu0 0
        %993 = vmatprep.subr.bf16.mxu0 0
        %994 = vmatpush1.bf16.msra.mxu0 0
        %995 = vmatprep.mubr.bf16.mxu0 0
        %996 = vmatmul.mubr.bf16.gmra.mrb[0].mxu0 %v717
        %v997 = vpop.f32.mrb[0].mxu0
        %v998 = vadd.f32 0.0, %v997
        %v999 = vpop.f32.mrb[0].mxu0
        %v1000 = vadd.f32 0.0, %v999
        %v1001 = vpop.f32.mrb[0].mxu0
        %v1002 = vadd.f32 0.0, %v1001
        %v1003 = vpop.f32.mrb[0].mxu0
        %v1004 = vadd.f32 0.0, %v1003
        %1005 = vdwg.mxu0
        %v1006 = vadd.f32 %v720, %v955
        %v1007 = vadd.f32 %v721, %v957
        %v1008 = vadd.f32 %v722, %v998
        %v1009 = vadd.f32 %v723, %v1000
        %v1010 = vadd.f32 %v724, %v959
        %v1011 = vadd.f32 %v725, %v961
        %v1012 = vadd.f32 %v726, %v1002
        %v1013 = vadd.f32 %v727, %v1004
        %v1014 = vmul.f32 %v1006, 0.5
        %v1015 = vmul.f32 %v1010, 0.5
        %v1016 = vtanh.pop %v1014
        %v1017 = vtanh.pop %v1015
        %v1018 = vmul.f32 %v1016, 0.5
        %v1019 = vmul.f32 %v1017, 0.5
        %v1020 = vadd.f32 %v1018, 0.5
        %v1021 = vadd.f32 %v1019, 0.5
        %v1022 = vmul.f32 %v1007, 0.5
        %v1023 = vmul.f32 %v1011, 0.5
        %v1024 = vtanh.pop %v1022
        %v1025 = vtanh.pop %v1023
        %v1026 = vmul.f32 %v1024, 0.5
        %v1027 = vmul.f32 %v1025, 0.5
        %v1028 = vadd.f32 %v1026, 0.5
        %v1029 = vadd.f32 %v1027, 0.5
        %v1030 = vtanh.pop %v1008
        %v1031 = vtanh.pop %v1012
        %v1032 = vmul.f32 %v1009, 0.5
        %v1033 = vmul.f32 %v1013, 0.5
        %v1034 = vtanh.pop %v1032
        %v1035 = vtanh.pop %v1033
        %v1036 = vmul.f32 %v1034, 0.5
        %v1037 = vmul.f32 %v1035, 0.5
        %v1038 = vadd.f32 %v1036, 0.5
        %v1039 = vadd.f32 %v1037, 0.5
        %v1040 = vmul.f32 %v1028, %v711
        %v1041 = vmul.f32 %v1029, %v712
        %v1042 = vmul.f32 %v1020, %v1030
        %v1043 = vmul.f32 %v1021, %v1031
        %v1044 = vadd.f32 %v1040, %v1042
        %v1045 = vadd.f32 %v1041, %v1043
        %v1046 = vtanh.pop %v1044
        %v1047 = vtanh.pop %v1045
        %v1048 = vmul.f32 %v1038, %v1046
        %v1049 = vmul.f32 %v1039, %v1047
        %v1050 = vpack.c.bf16 %v1049, %v1048
        %s1051 = scalar_lea.vmem [#allocation2], 8
        %1052 = vst [vmem:[%s1051] sm:$0xff] %v1050
        %s1053 = scalar_lea.vmem %s324, 128 [#allocation8]
        %v1054 = vld [vmem:[%s1053] sm:$0xff]
        %v1055 = vld [vmem:[%s1053 + $0x8] sm:$0xff]
        %v1056 = vld [vmem:[%s1053 + $0x10] sm:$0xff]
        %v1057 = vld [vmem:[%s1053 + $0x18] sm:$0xff]
        %v1058 = vld [vmem:[%s1053 + $0x20] sm:$0xff]
        %v1059 = vld [vmem:[%s1053 + $0x28] sm:$0xff]
        %v1060 = vld [vmem:[%s1053 + $0x30] sm:$0xff]
        %v1061 = vld [vmem:[%s1053 + $0x38] sm:$0xff]
        %v1062 = vld [vmem:[#allocation11] sm:$0xff]
        %v1063 = vld [vmem:[#allocation11 + $0x8] sm:$0xff]
        %v1064 = vld [vmem:[#allocation11 + $0x10] sm:$0xff]
        %v1065 = vld [vmem:[#allocation11 + $0x18] sm:$0xff]
        %v1066 = vld [vmem:[#allocation11 + $0x20] sm:$0xff]
        %v1067 = vld [vmem:[#allocation11 + $0x28] sm:$0xff]
        %v1068 = vld [vmem:[#allocation11 + $0x30] sm:$0xff]
        %v1069 = vld [vmem:[#allocation11 + $0x38] sm:$0xff]
        %v1070 = vld [vmem:[#allocation11 + $0x40] sm:$0xff]
        %v1071 = vld [vmem:[#allocation11 + $0x48] sm:$0xff]
        %v1072 = vld [vmem:[#allocation11 + $0x50] sm:$0xff]
        %v1073 = vld [vmem:[#allocation11 + $0x58] sm:$0xff]
        %v1074 = vld [vmem:[#allocation11 + $0x60] sm:$0xff]
        %v1075 = vld [vmem:[#allocation11 + $0x68] sm:$0xff]
        %v1076 = vld [vmem:[#allocation11 + $0x70] sm:$0xff]
        %v1077 = vld [vmem:[#allocation11 + $0x78] sm:$0xff]
        %v1078 = vld [vmem:[#allocation11 + $0x80] sm:$0xff]
        %v1079 = vld [vmem:[#allocation11 + $0x88] sm:$0xff]
        %v1080 = vld [vmem:[#allocation11 + $0x90] sm:$0xff]
        %v1081 = vld [vmem:[#allocation11 + $0x98] sm:$0xff]
        %v1082 = vld [vmem:[#allocation11 + $0xa0] sm:$0xff]
        %v1083 = vld [vmem:[#allocation11 + $0xa8] sm:$0xff]
        %v1084 = vld [vmem:[#allocation11 + $0xb0] sm:$0xff]
        %v1085 = vld [vmem:[#allocation11 + $0xb8] sm:$0xff]
        %v1086 = vld [vmem:[#allocation11 + $0xc0] sm:$0xff]
        %v1087 = vld [vmem:[#allocation11 + $0xc8] sm:$0xff]
        %v1088 = vld [vmem:[#allocation11 + $0xd0] sm:$0xff]
        %v1089 = vld [vmem:[#allocation11 + $0xd8] sm:$0xff]
        %v1090 = vld [vmem:[#allocation11 + $0xe0] sm:$0xff]
        %v1091 = vld [vmem:[#allocation11 + $0xe8] sm:$0xff]
        %v1092 = vld [vmem:[#allocation11 + $0xf0] sm:$0xff]
        %v1093 = vld [vmem:[#allocation11 + $0xf8] sm:$0xff]
        %v1126 = vunpack.c.l.b16 %v1062
        %v1127 = vunpack.c.h.b16 %v1062
        %v1128 = vunpack.c.l.b16 %v1063
        %v1129 = vunpack.c.h.b16 %v1063
        %v1130 = vunpack.c.l.b16 %v1064
        %v1131 = vunpack.c.h.b16 %v1064
        %v1132 = vunpack.c.l.b16 %v1065
        %v1133 = vunpack.c.h.b16 %v1065
        %v1134 = vunpack.c.l.b16 %v1066
        %v1135 = vunpack.c.h.b16 %v1066
        %v1136 = vunpack.c.l.b16 %v1067
        %v1137 = vunpack.c.h.b16 %v1067
        %v1138 = vunpack.c.l.b16 %v1068
        %v1139 = vunpack.c.h.b16 %v1068
        %v1140 = vunpack.c.l.b16 %v1069
        %v1141 = vunpack.c.h.b16 %v1069
        %v1142 = vunpack.c.l.b16 %v1070
        %v1143 = vunpack.c.h.b16 %v1070
        %v1144 = vunpack.c.l.b16 %v1071
        %v1145 = vunpack.c.h.b16 %v1071
        %v1146 = vunpack.c.l.b16 %v1072
        %v1147 = vunpack.c.h.b16 %v1072
        %v1148 = vunpack.c.l.b16 %v1073
        %v1149 = vunpack.c.h.b16 %v1073
        %v1150 = vunpack.c.l.b16 %v1074
        %v1151 = vunpack.c.h.b16 %v1074
        %v1152 = vunpack.c.l.b16 %v1075
        %v1153 = vunpack.c.h.b16 %v1075
        %v1154 = vunpack.c.l.b16 %v1076
        %v1155 = vunpack.c.h.b16 %v1076
        %v1156 = vunpack.c.l.b16 %v1077
        %v1157 = vunpack.c.h.b16 %v1077
        %v1158 = vunpack.c.l.b16 %v1078
        %v1159 = vunpack.c.h.b16 %v1078
        %v1160 = vunpack.c.l.b16 %v1079
        %v1161 = vunpack.c.h.b16 %v1079
        %v1162 = vunpack.c.l.b16 %v1080
        %v1163 = vunpack.c.h.b16 %v1080
        %v1164 = vunpack.c.l.b16 %v1081
        %v1165 = vunpack.c.h.b16 %v1081
        %v1166 = vunpack.c.l.b16 %v1082
        %v1167 = vunpack.c.h.b16 %v1082
        %v1168 = vunpack.c.l.b16 %v1083
        %v1169 = vunpack.c.h.b16 %v1083
        %v1170 = vunpack.c.l.b16 %v1084
        %v1171 = vunpack.c.h.b16 %v1084
        %v1172 = vunpack.c.l.b16 %v1085
        %v1173 = vunpack.c.h.b16 %v1085
        %v1174 = vunpack.c.l.b16 %v1086
        %v1175 = vunpack.c.h.b16 %v1086
        %v1176 = vunpack.c.l.b16 %v1087
        %v1177 = vunpack.c.h.b16 %v1087
        %v1178 = vunpack.c.l.b16 %v1088
        %v1179 = vunpack.c.h.b16 %v1088
        %v1180 = vunpack.c.l.b16 %v1089
        %v1181 = vunpack.c.h.b16 %v1089
        %v1182 = vunpack.c.l.b16 %v1090
        %v1183 = vunpack.c.h.b16 %v1090
        %v1184 = vunpack.c.l.b16 %v1091
        %v1185 = vunpack.c.h.b16 %v1091
        %v1186 = vunpack.c.l.b16 %v1092
        %v1187 = vunpack.c.h.b16 %v1092
        %v1188 = vunpack.c.l.b16 %v1093
        %v1189 = vunpack.c.h.b16 %v1093
        %v1190 = vpack.c.b16 %v1130, %v1126
        %v1191 = vpack.c.b16 %v1131, %v1127
        %v1192 = vpack.c.b16 %v1132, %v1128
        %v1193 = vpack.c.b16 %v1133, %v1129
        %v1194 = vpack.c.b16 %v1138, %v1134
        %v1195 = vpack.c.b16 %v1139, %v1135
        %v1196 = vpack.c.b16 %v1140, %v1136
        %v1197 = vpack.c.b16 %v1141, %v1137
        %v1198 = vpack.c.b16 %v1146, %v1142
        %v1199 = vpack.c.b16 %v1147, %v1143
        %v1200 = vpack.c.b16 %v1148, %v1144
        %v1201 = vpack.c.b16 %v1149, %v1145
        %v1202 = vpack.c.b16 %v1154, %v1150
        %v1203 = vpack.c.b16 %v1155, %v1151
        %v1204 = vpack.c.b16 %v1156, %v1152
        %v1205 = vpack.c.b16 %v1157, %v1153
        %v1206 = vpack.c.b16 %v1162, %v1158
        %v1207 = vpack.c.b16 %v1163, %v1159
        %v1208 = vpack.c.b16 %v1164, %v1160
        %v1209 = vpack.c.b16 %v1165, %v1161
        %v1210 = vpack.c.b16 %v1170, %v1166
        %v1211 = vpack.c.b16 %v1171, %v1167
        %v1212 = vpack.c.b16 %v1172, %v1168
        %v1213 = vpack.c.b16 %v1173, %v1169
        %v1214 = vpack.c.b16 %v1178, %v1174
        %v1215 = vpack.c.b16 %v1179, %v1175
        %v1216 = vpack.c.b16 %v1180, %v1176
        %v1217 = vpack.c.b16 %v1181, %v1177
        %v1218 = vpack.c.b16 %v1186, %v1182
        %v1219 = vpack.c.b16 %v1187, %v1183
        %v1220 = vpack.c.b16 %v1188, %v1184
        %v1221 = vpack.c.b16 %v1189, %v1185
        %1254 = vmatprep.subr.bf16.mxu0 %v1191
        %1255 = vmatpush1.bf16.msra.mxu0 %v1190
        %1256 = vmatprep.subr.bf16.mxu0 %v1195
        %1257 = vmatpush1.bf16.msra.mxu0 %v1194
        %1258 = vmatprep.subr.bf16.mxu0 %v1199
        %1259 = vmatpush1.bf16.msra.mxu0 %v1198
        %1260 = vmatprep.subr.bf16.mxu0 %v1203
        %1261 = vmatpush1.bf16.msra.mxu0 %v1202
        %1262 = vmatprep.subr.bf16.mxu0 %v1207
        %1263 = vmatpush1.bf16.msra.mxu0 %v1206
        %1264 = vmatprep.subr.bf16.mxu0 %v1211
        %1265 = vmatpush1.bf16.msra.mxu0 %v1210
        %1266 = vmatprep.subr.bf16.mxu0 %v1215
        %1267 = vmatpush1.bf16.msra.mxu0 %v1214
        %1268 = vmatprep.subr.bf16.mxu0 %v1219
        %1269 = vmatpush1.bf16.msra.mxu0 %v1218
        %1270 = vmatprep.subr.bf16.mxu0 0
        %1271 = vmatpush1.bf16.msra.mxu0 0
        %1272 = vmatprep.subr.bf16.mxu0 0
        %1273 = vmatpush1.bf16.msra.mxu0 0
        %1274 = vmatprep.subr.bf16.mxu0 0
        %1275 = vmatpush1.bf16.msra.mxu0 0
        %1276 = vmatprep.subr.bf16.mxu0 0
        %1277 = vmatpush1.bf16.msra.mxu0 0
        %1278 = vmatprep.subr.bf16.mxu0 0
        %1279 = vmatpush1.bf16.msra.mxu0 0
        %1280 = vmatprep.subr.bf16.mxu0 0
        %1281 = vmatpush1.bf16.msra.mxu0 0
        %1282 = vmatprep.subr.bf16.mxu0 0
        %1283 = vmatpush1.bf16.msra.mxu0 0
        %1284 = vmatprep.subr.bf16.mxu0 0
        %1285 = vmatpush1.bf16.msra.mxu0 0
        %1286 = vmatprep.mubr.bf16.mxu0 0
        %1287 = vmatmul.mubr.bf16.gmra.mrb[0].mxu0 %v1050
        %v1288 = vpop.f32.mrb[0].mxu0
        %v1289 = vadd.f32 0.0, %v1288
        %v1290 = vpop.f32.mrb[0].mxu0
        %v1291 = vadd.f32 0.0, %v1290
        %v1292 = vpop.f32.mrb[0].mxu0
        %v1293 = vadd.f32 0.0, %v1292
        %v1294 = vpop.f32.mrb[0].mxu0
        %v1295 = vadd.f32 0.0, %v1294
        %1296 = vdwg.mxu0
        %1297 = vmatprep.subr.bf16.mxu0 %v1193
        %1298 = vmatpush1.bf16.msra.mxu0 %v1192
        %1299 = vmatprep.subr.bf16.mxu0 %v1197
        %1300 = vmatpush1.bf16.msra.mxu0 %v1196
        %1301 = vmatprep.subr.bf16.mxu0 %v1201
        %1302 = vmatpush1.bf16.msra.mxu0 %v1200
        %1303 = vmatprep.subr.bf16.mxu0 %v1205
        %1304 = vmatpush1.bf16.msra.mxu0 %v1204
        %1305 = vmatprep.subr.bf16.mxu0 %v1209
        %1306 = vmatpush1.bf16.msra.mxu0 %v1208
        %1307 = vmatprep.subr.bf16.mxu0 %v1213
        %1308 = vmatpush1.bf16.msra.mxu0 %v1212
        %1309 = vmatprep.subr.bf16.mxu0 %v1217
        %1310 = vmatpush1.bf16.msra.mxu0 %v1216
        %1311 = vmatprep.subr.bf16.mxu0 %v1221
        %1312 = vmatpush1.bf16.msra.mxu0 %v1220
        %1313 = vmatprep.subr.bf16.mxu0 0
        %1314 = vmatpush1.bf16.msra.mxu0 0
        %1315 = vmatprep.subr.bf16.mxu0 0
        %1316 = vmatpush1.bf16.msra.mxu0 0
        %1317 = vmatprep.subr.bf16.mxu0 0
        %1318 = vmatpush1.bf16.msra.mxu0 0
        %1319 = vmatprep.subr.bf16.mxu0 0
        %1320 = vmatpush1.bf16.msra.mxu0 0
        %1321 = vmatprep.subr.bf16.mxu0 0
        %1322 = vmatpush1.bf16.msra.mxu0 0
        %1323 = vmatprep.subr.bf16.mxu0 0
        %1324 = vmatpush1.bf16.msra.mxu0 0
        %1325 = vmatprep.subr.bf16.mxu0 0
        %1326 = vmatpush1.bf16.msra.mxu0 0
        %1327 = vmatprep.subr.bf16.mxu0 0
        %1328 = vmatpush1.bf16.msra.mxu0 0
        %1329 = vmatprep.mubr.bf16.mxu0 0
        %1330 = vmatmul.mubr.bf16.gmra.mrb[0].mxu0 %v1050
        %v1331 = vpop.f32.mrb[0].mxu0
        %v1332 = vadd.f32 0.0, %v1331
        %v1333 = vpop.f32.mrb[0].mxu0
        %v1334 = vadd.f32 0.0, %v1333
        %v1335 = vpop.f32.mrb[0].mxu0
        %v1336 = vadd.f32 0.0, %v1335
        %v1337 = vpop.f32.mrb[0].mxu0
        %v1338 = vadd.f32 0.0, %v1337
        %1339 = vdwg.mxu0
        %v1340 = vadd.f32 %v1054, %v1289
        %v1341 = vadd.f32 %v1055, %v1291
        %v1342 = vadd.f32 %v1056, %v1332
        %v1343 = vadd.f32 %v1057, %v1334
        %v1344 = vadd.f32 %v1058, %v1293
        %v1345 = vadd.f32 %v1059, %v1295
        %v1346 = vadd.f32 %v1060, %v1336
        %v1347 = vadd.f32 %v1061, %v1338
        %v1348 = vmul.f32 %v1340, 0.5
        %v1349 = vmul.f32 %v1344, 0.5
        %v1350 = vtanh.pop %v1348
        %v1351 = vtanh.pop %v1349
        %v1352 = vmul.f32 %v1350, 0.5
        %v1353 = vmul.f32 %v1351, 0.5
        %v1354 = vadd.f32 %v1352, 0.5
        %v1355 = vadd.f32 %v1353, 0.5
        %v1356 = vmul.f32 %v1341, 0.5
        %v1357 = vmul.f32 %v1345, 0.5
        %v1358 = vtanh.pop %v1356
        %v1359 = vtanh.pop %v1357
        %v1360 = vmul.f32 %v1358, 0.5
        %v1361 = vmul.f32 %v1359, 0.5
        %v1362 = vadd.f32 %v1360, 0.5
        %v1363 = vadd.f32 %v1361, 0.5
        %v1364 = vtanh.pop %v1342
        %v1365 = vtanh.pop %v1346
        %v1366 = vmul.f32 %v1343, 0.5
        %v1367 = vmul.f32 %v1347, 0.5
        %v1368 = vtanh.pop %v1366
        %v1369 = vtanh.pop %v1367
        %v1370 = vmul.f32 %v1368, 0.5
        %v1371 = vmul.f32 %v1369, 0.5
        %v1372 = vadd.f32 %v1370, 0.5
        %v1373 = vadd.f32 %v1371, 0.5
        %v1374 = vmul.f32 %v1362, %v1044
        %v1375 = vmul.f32 %v1363, %v1045
        %v1376 = vmul.f32 %v1354, %v1364
        %v1377 = vmul.f32 %v1355, %v1365
        %v1378 = vadd.f32 %v1374, %v1376
        %v1379 = vadd.f32 %v1375, %v1377
        %v1380 = vtanh.pop %v1378
        %v1381 = vtanh.pop %v1379
        %v1382 = vmul.f32 %v1372, %v1380
        %v1383 = vmul.f32 %v1373, %v1381
        %v1384 = vpack.c.bf16 %v1383, %v1382
        %s1385 = scalar_lea.vmem [#allocation2], 16
        %1386 = vst [vmem:[%s1385] sm:$0xff] %v1384
        %s1387 = scalar_lea.vmem %s324, 192 [#allocation8]
        %v1388 = vld [vmem:[%s1387] sm:$0xff]
        %v1389 = vld [vmem:[%s1387 + $0x8] sm:$0xff]
        %v1390 = vld [vmem:[%s1387 + $0x10] sm:$0xff]
        %v1391 = vld [vmem:[%s1387 + $0x18] sm:$0xff]
        %v1392 = vld [vmem:[%s1387 + $0x20] sm:$0xff]
        %v1393 = vld [vmem:[%s1387 + $0x28] sm:$0xff]
        %v1394 = vld [vmem:[%s1387 + $0x30] sm:$0xff]
        %v1395 = vld [vmem:[%s1387 + $0x38] sm:$0xff]
        %v1396 = vld [vmem:[#allocation11] sm:$0xff]
        %v1397 = vld [vmem:[#allocation11 + $0x8] sm:$0xff]
        %v1398 = vld [vmem:[#allocation11 + $0x10] sm:$0xff]
        %v1399 = vld [vmem:[#allocation11 + $0x18] sm:$0xff]
        %v1400 = vld [vmem:[#allocation11 + $0x20] sm:$0xff]
        %v1401 = vld [vmem:[#allocation11 + $0x28] sm:$0xff]
        %v1402 = vld [vmem:[#allocation11 + $0x30] sm:$0xff]
        %v1403 = vld [vmem:[#allocation11 + $0x38] sm:$0xff]
        %v1404 = vld [vmem:[#allocation11 + $0x40] sm:$0xff]
        %v1405 = vld [vmem:[#allocation11 + $0x48] sm:$0xff]
        %v1406 = vld [vmem:[#allocation11 + $0x50] sm:$0xff]
        %v1407 = vld [vmem:[#allocation11 + $0x58] sm:$0xff]
        %v1408 = vld [vmem:[#allocation11 + $0x60] sm:$0xff]
        %v1409 = vld [vmem:[#allocation11 + $0x68] sm:$0xff]
        %v1410 = vld [vmem:[#allocation11 + $0x70] sm:$0xff]
        %v1411 = vld [vmem:[#allocation11 + $0x78] sm:$0xff]
        %v1412 = vld [vmem:[#allocation11 + $0x80] sm:$0xff]
        %v1413 = vld [vmem:[#allocation11 + $0x88] sm:$0xff]
        %v1414 = vld [vmem:[#allocation11 + $0x90] sm:$0xff]
        %v1415 = vld [vmem:[#allocation11 + $0x98] sm:$0xff]
        %v1416 = vld [vmem:[#allocation11 + $0xa0] sm:$0xff]
        %v1417 = vld [vmem:[#allocation11 + $0xa8] sm:$0xff]
        %v1418 = vld [vmem:[#allocation11 + $0xb0] sm:$0xff]
        %v1419 = vld [vmem:[#allocation11 + $0xb8] sm:$0xff]
        %v1420 = vld [vmem:[#allocation11 + $0xc0] sm:$0xff]
        %v1421 = vld [vmem:[#allocation11 + $0xc8] sm:$0xff]
        %v1422 = vld [vmem:[#allocation11 + $0xd0] sm:$0xff]
        %v1423 = vld [vmem:[#allocation11 + $0xd8] sm:$0xff]
        %v1424 = vld [vmem:[#allocation11 + $0xe0] sm:$0xff]
        %v1425 = vld [vmem:[#allocation11 + $0xe8] sm:$0xff]
        %v1426 = vld [vmem:[#allocation11 + $0xf0] sm:$0xff]
        %v1427 = vld [vmem:[#allocation11 + $0xf8] sm:$0xff]
        %v1460 = vunpack.c.l.b16 %v1396
        %v1461 = vunpack.c.h.b16 %v1396
        %v1462 = vunpack.c.l.b16 %v1397
        %v1463 = vunpack.c.h.b16 %v1397
        %v1464 = vunpack.c.l.b16 %v1398
        %v1465 = vunpack.c.h.b16 %v1398
        %v1466 = vunpack.c.l.b16 %v1399
        %v1467 = vunpack.c.h.b16 %v1399
        %v1468 = vunpack.c.l.b16 %v1400
        %v1469 = vunpack.c.h.b16 %v1400
        %v1470 = vunpack.c.l.b16 %v1401
        %v1471 = vunpack.c.h.b16 %v1401
        %v1472 = vunpack.c.l.b16 %v1402
        %v1473 = vunpack.c.h.b16 %v1402
        %v1474 = vunpack.c.l.b16 %v1403
        %v1475 = vunpack.c.h.b16 %v1403
        %v1476 = vunpack.c.l.b16 %v1404
        %v1477 = vunpack.c.h.b16 %v1404
        %v1478 = vunpack.c.l.b16 %v1405
        %v1479 = vunpack.c.h.b16 %v1405
        %v1480 = vunpack.c.l.b16 %v1406
        %v1481 = vunpack.c.h.b16 %v1406
        %v1482 = vunpack.c.l.b16 %v1407
        %v1483 = vunpack.c.h.b16 %v1407
        %v1484 = vunpack.c.l.b16 %v1408
        %v1485 = vunpack.c.h.b16 %v1408
        %v1486 = vunpack.c.l.b16 %v1409
        %v1487 = vunpack.c.h.b16 %v1409
        %v1488 = vunpack.c.l.b16 %v1410
        %v1489 = vunpack.c.h.b16 %v1410
        %v1490 = vunpack.c.l.b16 %v1411
        %v1491 = vunpack.c.h.b16 %v1411
        %v1492 = vunpack.c.l.b16 %v1412
        %v1493 = vunpack.c.h.b16 %v1412
        %v1494 = vunpack.c.l.b16 %v1413
        %v1495 = vunpack.c.h.b16 %v1413
        %v1496 = vunpack.c.l.b16 %v1414
        %v1497 = vunpack.c.h.b16 %v1414
        %v1498 = vunpack.c.l.b16 %v1415
        %v1499 = vunpack.c.h.b16 %v1415
        %v1500 = vunpack.c.l.b16 %v1416
        %v1501 = vunpack.c.h.b16 %v1416
        %v1502 = vunpack.c.l.b16 %v1417
        %v1503 = vunpack.c.h.b16 %v1417
        %v1504 = vunpack.c.l.b16 %v1418
        %v1505 = vunpack.c.h.b16 %v1418
        %v1506 = vunpack.c.l.b16 %v1419
        %v1507 = vunpack.c.h.b16 %v1419
        %v1508 = vunpack.c.l.b16 %v1420
        %v1509 = vunpack.c.h.b16 %v1420
        %v1510 = vunpack.c.l.b16 %v1421
        %v1511 = vunpack.c.h.b16 %v1421
        %v1512 = vunpack.c.l.b16 %v1422
        %v1513 = vunpack.c.h.b16 %v1422
        %v1514 = vunpack.c.l.b16 %v1423
        %v1515 = vunpack.c.h.b16 %v1423
        %v1516 = vunpack.c.l.b16 %v1424
        %v1517 = vunpack.c.h.b16 %v1424
        %v1518 = vunpack.c.l.b16 %v1425
        %v1519 = vunpack.c.h.b16 %v1425
        %v1520 = vunpack.c.l.b16 %v1426
        %v1521 = vunpack.c.h.b16 %v1426
        %v1522 = vunpack.c.l.b16 %v1427
        %v1523 = vunpack.c.h.b16 %v1427
        %v1524 = vpack.c.b16 %v1464, %v1460
        %v1525 = vpack.c.b16 %v1465, %v1461
        %v1526 = vpack.c.b16 %v1466, %v1462
        %v1527 = vpack.c.b16 %v1467, %v1463
        %v1528 = vpack.c.b16 %v1472, %v1468
        %v1529 = vpack.c.b16 %v1473, %v1469
        %v1530 = vpack.c.b16 %v1474, %v1470
        %v1531 = vpack.c.b16 %v1475, %v1471
        %v1532 = vpack.c.b16 %v1480, %v1476
        %v1533 = vpack.c.b16 %v1481, %v1477
        %v1534 = vpack.c.b16 %v1482, %v1478
        %v1535 = vpack.c.b16 %v1483, %v1479
        %v1536 = vpack.c.b16 %v1488, %v1484
        %v1537 = vpack.c.b16 %v1489, %v1485
        %v1538 = vpack.c.b16 %v1490, %v1486
        %v1539 = vpack.c.b16 %v1491, %v1487
        %v1540 = vpack.c.b16 %v1496, %v1492
        %v1541 = vpack.c.b16 %v1497, %v1493
        %v1542 = vpack.c.b16 %v1498, %v1494
        %v1543 = vpack.c.b16 %v1499, %v1495
        %v1544 = vpack.c.b16 %v1504, %v1500
        %v1545 = vpack.c.b16 %v1505, %v1501
        %v1546 = vpack.c.b16 %v1506, %v1502
        %v1547 = vpack.c.b16 %v1507, %v1503
        %v1548 = vpack.c.b16 %v1512, %v1508
        %v1549 = vpack.c.b16 %v1513, %v1509
        %v1550 = vpack.c.b16 %v1514, %v1510
        %v1551 = vpack.c.b16 %v1515, %v1511
        %v1552 = vpack.c.b16 %v1520, %v1516
        %v1553 = vpack.c.b16 %v1521, %v1517
        %v1554 = vpack.c.b16 %v1522, %v1518
        %v1555 = vpack.c.b16 %v1523, %v1519
        %1588 = vmatprep.subr.bf16.mxu0 %v1525
        %1589 = vmatpush1.bf16.msra.mxu0 %v1524
        %1590 = vmatprep.subr.bf16.mxu0 %v1529
        %1591 = vmatpush1.bf16.msra.mxu0 %v1528
        %1592 = vmatprep.subr.bf16.mxu0 %v1533
        %1593 = vmatpush1.bf16.msra.mxu0 %v1532
        %1594 = vmatprep.subr.bf16.mxu0 %v1537
        %1595 = vmatpush1.bf16.msra.mxu0 %v1536
        %1596 = vmatprep.subr.bf16.mxu0 %v1541
        %1597 = vmatpush1.bf16.msra.mxu0 %v1540
        %1598 = vmatprep.subr.bf16.mxu0 %v1545
        %1599 = vmatpush1.bf16.msra.mxu0 %v1544
        %1600 = vmatprep.subr.bf16.mxu0 %v1549
        %1601 = vmatpush1.bf16.msra.mxu0 %v1548
        %1602 = vmatprep.subr.bf16.mxu0 %v1553
        %1603 = vmatpush1.bf16.msra.mxu0 %v1552
        %1604 = vmatprep.subr.bf16.mxu0 0
        %1605 = vmatpush1.bf16.msra.mxu0 0
        %1606 = vmatprep.subr.bf16.mxu0 0
        %1607 = vmatpush1.bf16.msra.mxu0 0
        %1608 = vmatprep.subr.bf16.mxu0 0
        %1609 = vmatpush1.bf16.msra.mxu0 0
        %1610 = vmatprep.subr.bf16.mxu0 0
        %1611 = vmatpush1.bf16.msra.mxu0 0
        %1612 = vmatprep.subr.bf16.mxu0 0
        %1613 = vmatpush1.bf16.msra.mxu0 0
        %1614 = vmatprep.subr.bf16.mxu0 0
        %1615 = vmatpush1.bf16.msra.mxu0 0
        %1616 = vmatprep.subr.bf16.mxu0 0
        %1617 = vmatpush1.bf16.msra.mxu0 0
        %1618 = vmatprep.subr.bf16.mxu0 0
        %1619 = vmatpush1.bf16.msra.mxu0 0
        %1620 = vmatprep.mubr.bf16.mxu0 0
        %1621 = vmatmul.mubr.bf16.gmra.mrb[0].mxu0 %v1384
        %v1622 = vpop.f32.mrb[0].mxu0
        %v1623 = vadd.f32 0.0, %v1622
        %v1624 = vpop.f32.mrb[0].mxu0
        %v1625 = vadd.f32 0.0, %v1624
        %v1626 = vpop.f32.mrb[0].mxu0
        %v1627 = vadd.f32 0.0, %v1626
        %v1628 = vpop.f32.mrb[0].mxu0
        %v1629 = vadd.f32 0.0, %v1628
        %1630 = vdwg.mxu0
        %1631 = vmatprep.subr.bf16.mxu0 %v1527
        %1632 = vmatpush1.bf16.msra.mxu0 %v1526
        %1633 = vmatprep.subr.bf16.mxu0 %v1531
        %1634 = vmatpush1.bf16.msra.mxu0 %v1530
        %1635 = vmatprep.subr.bf16.mxu0 %v1535
        %1636 = vmatpush1.bf16.msra.mxu0 %v1534
        %1637 = vmatprep.subr.bf16.mxu0 %v1539
        %1638 = vmatpush1.bf16.msra.mxu0 %v1538
        %1639 = vmatprep.subr.bf16.mxu0 %v1543
        %1640 = vmatpush1.bf16.msra.mxu0 %v1542
        %1641 = vmatprep.subr.bf16.mxu0 %v1547
        %1642 = vmatpush1.bf16.msra.mxu0 %v1546
        %1643 = vmatprep.subr.bf16.mxu0 %v1551
        %1644 = vmatpush1.bf16.msra.mxu0 %v1550
        %1645 = vmatprep.subr.bf16.mxu0 %v1555
        %1646 = vmatpush1.bf16.msra.mxu0 %v1554
        %1647 = vmatprep.subr.bf16.mxu0 0
        %1648 = vmatpush1.bf16.msra.mxu0 0
        %1649 = vmatprep.subr.bf16.mxu0 0
        %1650 = vmatpush1.bf16.msra.mxu0 0
        %1651 = vmatprep.subr.bf16.mxu0 0
        %1652 = vmatpush1.bf16.msra.mxu0 0
        %1653 = vmatprep.subr.bf16.mxu0 0
        %1654 = vmatpush1.bf16.msra.mxu0 0
        %1655 = vmatprep.subr.bf16.mxu0 0
        %1656 = vmatpush1.bf16.msra.mxu0 0
        %1657 = vmatprep.subr.bf16.mxu0 0
        %1658 = vmatpush1.bf16.msra.mxu0 0
        %1659 = vmatprep.subr.bf16.mxu0 0
        %1660 = vmatpush1.bf16.msra.mxu0 0
        %1661 = vmatprep.subr.bf16.mxu0 0
        %1662 = vmatpush1.bf16.msra.mxu0 0
        %1663 = vmatprep.mubr.bf16.mxu0 0
        %1664 = vmatmul.mubr.bf16.gmra.mrb[0].mxu0 %v1384
        %v1665 = vpop.f32.mrb[0].mxu0
        %v1666 = vadd.f32 0.0, %v1665
        %v1667 = vpop.f32.mrb[0].mxu0
        %v1668 = vadd.f32 0.0, %v1667
        %v1669 = vpop.f32.mrb[0].mxu0
        %v1670 = vadd.f32 0.0, %v1669
        %v1671 = vpop.f32.mrb[0].mxu0
        %v1672 = vadd.f32 0.0, %v1671
        %1673 = vdwg.mxu0
        %v1674 = vadd.f32 %v1388, %v1623
        %v1675 = vadd.f32 %v1389, %v1625
        %v1676 = vadd.f32 %v1390, %v1666
        %v1677 = vadd.f32 %v1391, %v1668
        %v1678 = vadd.f32 %v1392, %v1627
        %v1679 = vadd.f32 %v1393, %v1629
        %v1680 = vadd.f32 %v1394, %v1670
        %v1681 = vadd.f32 %v1395, %v1672
        %v1682 = vmul.f32 %v1674, 0.5
        %v1683 = vmul.f32 %v1678, 0.5
        %v1684 = vtanh.pop %v1682
        %v1685 = vtanh.pop %v1683
        %v1686 = vmul.f32 %v1684, 0.5
        %v1687 = vmul.f32 %v1685, 0.5
        %v1688 = vadd.f32 %v1686, 0.5
        %v1689 = vadd.f32 %v1687, 0.5
        %v1690 = vmul.f32 %v1675, 0.5
        %v1691 = vmul.f32 %v1679, 0.5
        %v1692 = vtanh.pop %v1690
        %v1693 = vtanh.pop %v1691
        %v1694 = vmul.f32 %v1692, 0.5
        %v1695 = vmul.f32 %v1693, 0.5
        %v1696 = vadd.f32 %v1694, 0.5
        %v1697 = vadd.f32 %v1695, 0.5
        %v1698 = vtanh.pop %v1676
        %v1699 = vtanh.pop %v1680
        %v1700 = vmul.f32 %v1677, 0.5
        %v1701 = vmul.f32 %v1681, 0.5
        %v1702 = vtanh.pop %v1700
        %v1703 = vtanh.pop %v1701
        %v1704 = vmul.f32 %v1702, 0.5
        %v1705 = vmul.f32 %v1703, 0.5
        %v1706 = vadd.f32 %v1704, 0.5
        %v1707 = vadd.f32 %v1705, 0.5
        %v1708 = vmul.f32 %v1696, %v1378
        %v1709 = vmul.f32 %v1697, %v1379
        %v1710 = vmul.f32 %v1688, %v1698
        %v1711 = vmul.f32 %v1689, %v1699
        %v1712 = vadd.f32 %v1708, %v1710
        %v1713 = vadd.f32 %v1709, %v1711
        %v1714 = vtanh.pop %v1712
        %v1715 = vtanh.pop %v1713
        %v1716 = vmul.f32 %v1706, %v1714
        %v1717 = vmul.f32 %v1707, %v1715
        %v1718 = vpack.c.bf16 %v1717, %v1716
        %s1719 = scalar_lea.vmem [#allocation2], 24
        %1720 = vst [vmem:[%s1719] sm:$0xff] %v1718
        %1721 = vst [vmem:[#allocation4] sm:$0xff] %v1716
        %1722 = vst [vmem:[#allocation4 + $0x8] sm:$0xff] %v1717
        %1723 = vst [vmem:[#allocation5] sm:$0xff] %v1712
        %1724 = vst [vmem:[#allocation5 + $0x8] sm:$0xff] %v1713
        %v1725 = vld [vmem:[#allocation2] sm:$0xff]
        %v1726 = vld [vmem:[#allocation2 + $0x8] sm:$0xff]
        %v1727 = vld [vmem:[#allocation2 + $0x10] sm:$0xff]
        %v1728 = vld [vmem:[#allocation2 + $0x18] sm:$0xff]
        %v1729 = vld [vmem:[#allocation13] sm:$0xff]
        %v1730 = vld [vmem:[#allocation13 + $0x8] sm:$0xff]
        %v1731 = vld [vmem:[#allocation13 + $0x10] sm:$0xff]
        %v1732 = vld [vmem:[#allocation13 + $0x18] sm:$0xff]
        %v1733 = vld [vmem:[#allocation13 + $0x20] sm:$0xff]
        %v1734 = vld [vmem:[#allocation13 + $0x28] sm:$0xff]
        %v1735 = vld [vmem:[#allocation13 + $0x30] sm:$0xff]
        %v1736 = vld [vmem:[#allocation13 + $0x38] sm:$0xff]
        %v1737 = vld [vmem:[#allocation13 + $0x40] sm:$0xff]
        %v1738 = vld [vmem:[#allocation13 + $0x48] sm:$0xff]
        %v1739 = vld [vmem:[#allocation13 + $0x50] sm:$0xff]
        %v1740 = vld [vmem:[#allocation13 + $0x58] sm:$0xff]
        %v1741 = vld [vmem:[#allocation13 + $0x60] sm:$0xff]
        %v1742 = vld [vmem:[#allocation13 + $0x68] sm:$0xff]
        %v1743 = vld [vmem:[#allocation13 + $0x70] sm:$0xff]
        %v1744 = vld [vmem:[#allocation13 + $0x78] sm:$0xff]
        %v1745 = vld [vmem:[#allocation13 + $0x80] sm:$0xff]
        %v1746 = vld [vmem:[#allocation13 + $0x88] sm:$0xff]
        %v1747 = vld [vmem:[#allocation13 + $0x90] sm:$0xff]
        %v1748 = vld [vmem:[#allocation13 + $0x98] sm:$0xff]
        %v1749 = vld [vmem:[#allocation13 + $0xa0] sm:$0xff]
        %v1750 = vld [vmem:[#allocation13 + $0xa8] sm:$0xff]
        %v1751 = vld [vmem:[#allocation13 + $0xb0] sm:$0xff]
        %v1752 = vld [vmem:[#allocation13 + $0xb8] sm:$0xff]
        %v1753 = vld [vmem:[#allocation13 + $0xc0] sm:$0xff]
        %v1754 = vld [vmem:[#allocation13 + $0xc8] sm:$0xff]
        %v1755 = vld [vmem:[#allocation13 + $0xd0] sm:$0xff]
        %v1756 = vld [vmem:[#allocation13 + $0xd8] sm:$0xff]
        %v1757 = vld [vmem:[#allocation13 + $0xe0] sm:$0xff]
        %v1758 = vld [vmem:[#allocation13 + $0xe8] sm:$0xff]
        %v1759 = vld [vmem:[#allocation13 + $0xf0] sm:$0xff]
        %v1760 = vld [vmem:[#allocation13 + $0xf8] sm:$0xff]
        %v1761 = vld [vmem:[%s4] sm:$0xf]
        %v1763 = vlaneseq
        %v1764 = vshrl.u32 %v1763, 7
        %v1765 = vsub.s32 0, %v1764
        %v1766 = vrot.slane %v1761, %v1765
        %v1767 = vlaneseq
        %v1768 = vshrl.u32 %v1767, 7
        %v1769 = vsub.s32 1, %v1768
        %v1770 = vrot.slane %v1761, %v1769
        %v1771 = vlaneseq
        %v1772 = vshrl.u32 %v1771, 7
        %v1773 = vsub.s32 2, %v1772
        %v1774 = vrot.slane %v1761, %v1773
        %v1775 = vlaneseq
        %v1776 = vshrl.u32 %v1775, 7
        %v1777 = vsub.s32 3, %v1776
        %v1778 = vrot.slane %v1761, %v1777
        %v1815 = vunpack.c.l.b16 %v1729
        %v1816 = vunpack.c.h.b16 %v1729
        %v1817 = vunpack.c.l.b16 %v1730
        %v1818 = vunpack.c.h.b16 %v1730
        %v1819 = vunpack.c.l.b16 %v1731
        %v1820 = vunpack.c.h.b16 %v1731
        %v1821 = vunpack.c.l.b16 %v1732
        %v1822 = vunpack.c.h.b16 %v1732
        %v1823 = vunpack.c.l.b16 %v1733
        %v1824 = vunpack.c.h.b16 %v1733
        %v1825 = vunpack.c.l.b16 %v1734
        %v1826 = vunpack.c.h.b16 %v1734
        %v1827 = vunpack.c.l.b16 %v1735
        %v1828 = vunpack.c.h.b16 %v1735
        %v1829 = vunpack.c.l.b16 %v1736
        %v1830 = vunpack.c.h.b16 %v1736
        %v1831 = vunpack.c.l.b16 %v1737
        %v1832 = vunpack.c.h.b16 %v1737
        %v1833 = vunpack.c.l.b16 %v1738
        %v1834 = vunpack.c.h.b16 %v1738
        %v1835 = vunpack.c.l.b16 %v1739
        %v1836 = vunpack.c.h.b16 %v1739
        %v1837 = vunpack.c.l.b16 %v1740
        %v1838 = vunpack.c.h.b16 %v1740
        %v1839 = vunpack.c.l.b16 %v1741
        %v1840 = vunpack.c.h.b16 %v1741
        %v1841 = vunpack.c.l.b16 %v1742
        %v1842 = vunpack.c.h.b16 %v1742
        %v1843 = vunpack.c.l.b16 %v1743
        %v1844 = vunpack.c.h.b16 %v1743
        %v1845 = vunpack.c.l.b16 %v1744
        %v1846 = vunpack.c.h.b16 %v1744
        %v1847 = vunpack.c.l.b16 %v1745
        %v1848 = vunpack.c.h.b16 %v1745
        %v1849 = vunpack.c.l.b16 %v1746
        %v1850 = vunpack.c.h.b16 %v1746
        %v1851 = vunpack.c.l.b16 %v1747
        %v1852 = vunpack.c.h.b16 %v1747
        %v1853 = vunpack.c.l.b16 %v1748
        %v1854 = vunpack.c.h.b16 %v1748
        %v1855 = vunpack.c.l.b16 %v1749
        %v1856 = vunpack.c.h.b16 %v1749
        %v1857 = vunpack.c.l.b16 %v1750
        %v1858 = vunpack.c.h.b16 %v1750
        %v1859 = vunpack.c.l.b16 %v1751
        %v1860 = vunpack.c.h.b16 %v1751
        %v1861 = vunpack.c.l.b16 %v1752
        %v1862 = vunpack.c.h.b16 %v1752
        %v1863 = vunpack.c.l.b16 %v1753
        %v1864 = vunpack.c.h.b16 %v1753
        %v1865 = vunpack.c.l.b16 %v1754
        %v1866 = vunpack.c.h.b16 %v1754
        %v1867 = vunpack.c.l.b16 %v1755
        %v1868 = vunpack.c.h.b16 %v1755
        %v1869 = vunpack.c.l.b16 %v1756
        %v1870 = vunpack.c.h.b16 %v1756
        %v1871 = vunpack.c.l.b16 %v1757
        %v1872 = vunpack.c.h.b16 %v1757
        %v1873 = vunpack.c.l.b16 %v1758
        %v1874 = vunpack.c.h.b16 %v1758
        %v1875 = vunpack.c.l.b16 %v1759
        %v1876 = vunpack.c.h.b16 %v1759
        %v1877 = vunpack.c.l.b16 %v1760
        %v1878 = vunpack.c.h.b16 %v1760
        %v1879 = vpack.c.b16 %v1819, %v1815
        %v1880 = vpack.c.b16 %v1820, %v1816
        %v1881 = vpack.c.b16 %v1821, %v1817
        %v1882 = vpack.c.b16 %v1822, %v1818
        %v1883 = vpack.c.b16 %v1827, %v1823
        %v1884 = vpack.c.b16 %v1828, %v1824
        %v1885 = vpack.c.b16 %v1829, %v1825
        %v1886 = vpack.c.b16 %v1830, %v1826
        %v1887 = vpack.c.b16 %v1835, %v1831
        %v1888 = vpack.c.b16 %v1836, %v1832
        %v1889 = vpack.c.b16 %v1837, %v1833
        %v1890 = vpack.c.b16 %v1838, %v1834
        %v1891 = vpack.c.b16 %v1843, %v1839
        %v1892 = vpack.c.b16 %v1844, %v1840
        %v1893 = vpack.c.b16 %v1845, %v1841
        %v1894 = vpack.c.b16 %v1846, %v1842
        %v1895 = vpack.c.b16 %v1851, %v1847
        %v1896 = vpack.c.b16 %v1852, %v1848
        %v1897 = vpack.c.b16 %v1853, %v1849
        %v1898 = vpack.c.b16 %v1854, %v1850
        %v1899 = vpack.c.b16 %v1859, %v1855
        %v1900 = vpack.c.b16 %v1860, %v1856
        %v1901 = vpack.c.b16 %v1861, %v1857
        %v1902 = vpack.c.b16 %v1862, %v1858
        %v1903 = vpack.c.b16 %v1867, %v1863
        %v1904 = vpack.c.b16 %v1868, %v1864
        %v1905 = vpack.c.b16 %v1869, %v1865
        %v1906 = vpack.c.b16 %v1870, %v1866
        %v1907 = vpack.c.b16 %v1875, %v1871
        %v1908 = vpack.c.b16 %v1876, %v1872
        %v1909 = vpack.c.b16 %v1877, %v1873
        %v1910 = vpack.c.b16 %v1878, %v1874
        %1943 = vmatprep.subr.bf16.mxu0 %v1880
        %1944 = vmatpush1.bf16.msra.mxu0 %v1879
        %1945 = vmatprep.subr.bf16.mxu0 %v1884
        %1946 = vmatpush1.bf16.msra.mxu0 %v1883
        %1947 = vmatprep.subr.bf16.mxu0 %v1888
        %1948 = vmatpush1.bf16.msra.mxu0 %v1887
        %1949 = vmatprep.subr.bf16.mxu0 %v1892
        %1950 = vmatpush1.bf16.msra.mxu0 %v1891
        %1951 = vmatprep.subr.bf16.mxu0 %v1896
        %1952 = vmatpush1.bf16.msra.mxu0 %v1895
        %1953 = vmatprep.subr.bf16.mxu0 %v1900
        %1954 = vmatpush1.bf16.msra.mxu0 %v1899
        %1955 = vmatprep.subr.bf16.mxu0 %v1904
        %1956 = vmatpush1.bf16.msra.mxu0 %v1903
        %1957 = vmatprep.subr.bf16.mxu0 %v1908
        %1958 = vmatpush1.bf16.msra.mxu0 %v1907
        %1959 = vmatprep.subr.bf16.mxu0 0
        %1960 = vmatpush1.bf16.msra.mxu0 0
        %1961 = vmatprep.subr.bf16.mxu0 0
        %1962 = vmatpush1.bf16.msra.mxu0 0
        %1963 = vmatprep.subr.bf16.mxu0 0
        %1964 = vmatpush1.bf16.msra.mxu0 0
        %1965 = vmatprep.subr.bf16.mxu0 0
        %1966 = vmatpush1.bf16.msra.mxu0 0
        %1967 = vmatprep.subr.bf16.mxu0 0
        %1968 = vmatpush1.bf16.msra.mxu0 0
        %1969 = vmatprep.subr.bf16.mxu0 0
        %1970 = vmatpush1.bf16.msra.mxu0 0
        %1971 = vmatprep.subr.bf16.mxu0 0
        %1972 = vmatpush1.bf16.msra.mxu0 0
        %1973 = vmatprep.subr.bf16.mxu0 0
        %1974 = vmatpush1.bf16.msra.mxu0 0
        %1975 = vmatprep.mubr.bf16.mxu0 0
        %1976 = vmatmul.mubr.bf16.gmra.mrb[0].mxu0 %v1725
        %v1977 = vpop.f32.mrb[0].mxu0
        %v1978 = vadd.f32 %v1766, %v1977
        %v1979 = vpop.f32.mrb[0].mxu0
        %v1980 = vadd.f32 %v1770, %v1979
        %v1981 = vpop.f32.mrb[0].mxu0
        %v1982 = vadd.f32 %v1766, %v1981
        %v1983 = vpop.f32.mrb[0].mxu0
        %v1984 = vadd.f32 %v1770, %v1983
        %1985 = vmatprep.mubr.bf16.mxu0 0
        %1986 = vmatmul.mubr.bf16.gmra.mrb[0].mxu0 %v1726
        %v1987 = vpop.f32.mrb[0].mxu0
        %v1988 = vadd.f32 %v1766, %v1987
        %v1989 = vpop.f32.mrb[0].mxu0
        %v1990 = vadd.f32 %v1770, %v1989
        %v1991 = vpop.f32.mrb[0].mxu0
        %v1992 = vadd.f32 %v1766, %v1991
        %v1993 = vpop.f32.mrb[0].mxu0
        %v1994 = vadd.f32 %v1770, %v1993
        %1995 = vmatprep.mubr.bf16.mxu0 0
        %1996 = vmatmul.mubr.bf16.gmra.mrb[0].mxu0 %v1727
        %v1997 = vpop.f32.mrb[0].mxu0
        %v1998 = vadd.f32 %v1766, %v1997
        %v1999 = vpop.f32.mrb[0].mxu0
        %v2000 = vadd.f32 %v1770, %v1999
        %v2001 = vpop.f32.mrb[0].mxu0
        %v2002 = vadd.f32 %v1766, %v2001
        %v2003 = vpop.f32.mrb[0].mxu0
        %v2004 = vadd.f32 %v1770, %v2003
        %2005 = vmatprep.mubr.bf16.mxu0 0
        %2006 = vmatmul.mubr.bf16.gmra.mrb[0].mxu0 %v1728
        %v2007 = vpop.f32.mrb[0].mxu0
        %v2008 = vadd.f32 %v1766, %v2007
        %v2009 = vpop.f32.mrb[0].mxu0
        %v2010 = vadd.f32 %v1770, %v2009
        %v2011 = vpop.f32.mrb[0].mxu0
        %v2012 = vadd.f32 %v1766, %v2011
        %v2013 = vpop.f32.mrb[0].mxu0
        %v2014 = vadd.f32 %v1770, %v2013
        %2015 = vdwg.mxu0
        %2016 = vmatprep.subr.bf16.mxu0 %v1882
        %2017 = vmatpush1.bf16.msra.mxu0 %v1881
        %2018 = vmatprep.subr.bf16.mxu0 %v1886
        %2019 = vmatpush1.bf16.msra.mxu0 %v1885
        %2020 = vmatprep.subr.bf16.mxu0 %v1890
        %2021 = vmatpush1.bf16.msra.mxu0 %v1889
        %2022 = vmatprep.subr.bf16.mxu0 %v1894
        %2023 = vmatpush1.bf16.msra.mxu0 %v1893
        %2024 = vmatprep.subr.bf16.mxu0 %v1898
        %2025 = vmatpush1.bf16.msra.mxu0 %v1897
        %2026 = vmatprep.subr.bf16.mxu0 %v1902
        %2027 = vmatpush1.bf16.msra.mxu0 %v1901
        %2028 = vmatprep.subr.bf16.mxu0 %v1906
        %2029 = vmatpush1.bf16.msra.mxu0 %v1905
        %2030 = vmatprep.subr.bf16.mxu0 %v1910
        %2031 = vmatpush1.bf16.msra.mxu0 %v1909
        %2032 = vmatprep.subr.bf16.mxu0 0
        %2033 = vmatpush1.bf16.msra.mxu0 0
        %2034 = vmatprep.subr.bf16.mxu0 0
        %2035 = vmatpush1.bf16.msra.mxu0 0
        %2036 = vmatprep.subr.bf16.mxu0 0
        %2037 = vmatpush1.bf16.msra.mxu0 0
        %2038 = vmatprep.subr.bf16.mxu0 0
        %2039 = vmatpush1.bf16.msra.mxu0 0
        %2040 = vmatprep.subr.bf16.mxu0 0
        %2041 = vmatpush1.bf16.msra.mxu0 0
        %2042 = vmatprep.subr.bf16.mxu0 0
        %2043 = vmatpush1.bf16.msra.mxu0 0
        %2044 = vmatprep.subr.bf16.mxu0 0
        %2045 = vmatpush1.bf16.msra.mxu0 0
        %2046 = vmatprep.subr.bf16.mxu0 0
        %2047 = vmatpush1.bf16.msra.mxu0 0
        %2048 = vmatprep.mubr.bf16.mxu0 0
        %2049 = vmatmul.mubr.bf16.gmra.mrb[0].mxu0 %v1725
        %v2050 = vpop.f32.mrb[0].mxu0
        %v2051 = vadd.f32 %v1774, %v2050
        %v2052 = vpop.f32.mrb[0].mxu0
        %v2053 = vadd.f32 %v1778, %v2052
        %v2054 = vpop.f32.mrb[0].mxu0
        %v2055 = vadd.f32 %v1774, %v2054
        %v2056 = vpop.f32.mrb[0].mxu0
        %v2057 = vadd.f32 %v1778, %v2056
        %2058 = vmatprep.mubr.bf16.mxu0 0
        %2059 = vmatmul.mubr.bf16.gmra.mrb[0].mxu0 %v1726
        %v2060 = vpop.f32.mrb[0].mxu0
        %v2061 = vadd.f32 %v1774, %v2060
        %v2062 = vpop.f32.mrb[0].mxu0
        %v2063 = vadd.f32 %v1778, %v2062
        %v2064 = vpop.f32.mrb[0].mxu0
        %v2065 = vadd.f32 %v1774, %v2064
        %v2066 = vpop.f32.mrb[0].mxu0
        %v2067 = vadd.f32 %v1778, %v2066
        %2068 = vmatprep.mubr.bf16.mxu0 0
        %2069 = vmatmul.mubr.bf16.gmra.mrb[0].mxu0 %v1727
        %v2070 = vpop.f32.mrb[0].mxu0
        %v2071 = vadd.f32 %v1774, %v2070
        %v2072 = vpop.f32.mrb[0].mxu0
        %v2073 = vadd.f32 %v1778, %v2072
        %v2074 = vpop.f32.mrb[0].mxu0
        %v2075 = vadd.f32 %v1774, %v2074
        %v2076 = vpop.f32.mrb[0].mxu0
        %v2077 = vadd.f32 %v1778, %v2076
        %2078 = vmatprep.mubr.bf16.mxu0 0
        %2079 = vmatmul.mubr.bf16.gmra.mrb[0].mxu0 %v1728
        %v2080 = vpop.f32.mrb[0].mxu0
        %v2081 = vadd.f32 %v1774, %v2080
        %v2082 = vpop.f32.mrb[0].mxu0
        %v2083 = vadd.f32 %v1778, %v2082
        %v2084 = vpop.f32.mrb[0].mxu0
        %v2085 = vadd.f32 %v1774, %v2084
        %v2086 = vpop.f32.mrb[0].mxu0
        %v2087 = vadd.f32 %v1778, %v2086
        %2088 = vdwg.mxu0
        %2089 = vst [vmem:[#allocation3] sm:$0xff] %v1978
        %2090 = vst [vmem:[#allocation3 + $0x8] sm:$0xff] %v1980
        %2091 = vst [vmem:[#allocation3 + $0x10] sm:$0xff] %v2051
        %2092 = vst [vmem:[#allocation3 + $0x18] sm:$0xff] %v2053
        %2093 = vst [vmem:[#allocation3 + $0x20] sm:$0xff] %v1982
        %2094 = vst [vmem:[#allocation3 + $0x28] sm:$0xff] %v1984
        %2095 = vst [vmem:[#allocation3 + $0x30] sm:$0xff] %v2055
        %2096 = vst [vmem:[#allocation3 + $0x38] sm:$0xff] %v2057
        %2097 = vst [vmem:[#allocation3 + $0x40] sm:$0xff] %v1988
        %2098 = vst [vmem:[#allocation3 + $0x48] sm:$0xff] %v1990
        %2099 = vst [vmem:[#allocation3 + $0x50] sm:$0xff] %v2061
        %2100 = vst [vmem:[#allocation3 + $0x58] sm:$0xff] %v2063
        %2101 = vst [vmem:[#allocation3 + $0x60] sm:$0xff] %v1992
        %2102 = vst [vmem:[#allocation3 + $0x68] sm:$0xff] %v1994
        %2103 = vst [vmem:[#allocation3 + $0x70] sm:$0xff] %v2065
        %2104 = vst [vmem:[#allocation3 + $0x78] sm:$0xff] %v2067
        %2105 = vst [vmem:[#allocation3 + $0x80] sm:$0xff] %v1998
        %2106 = vst [vmem:[#allocation3 + $0x88] sm:$0xff] %v2000
        %2107 = vst [vmem:[#allocation3 + $0x90] sm:$0xff] %v2071
        %2108 = vst [vmem:[#allocation3 + $0x98] sm:$0xff] %v2073
        %2109 = vst [vmem:[#allocation3 + $0xa0] sm:$0xff] %v2002
        %2110 = vst [vmem:[#allocation3 + $0xa8] sm:$0xff] %v2004
        %2111 = vst [vmem:[#allocation3 + $0xb0] sm:$0xff] %v2075
        %2112 = vst [vmem:[#allocation3 + $0xb8] sm:$0xff] %v2077
        %2113 = vst [vmem:[#allocation3 + $0xc0] sm:$0xff] %v2008
        %2114 = vst [vmem:[#allocation3 + $0xc8] sm:$0xff] %v2010
        %2115 = vst [vmem:[#allocation3 + $0xd0] sm:$0xff] %v2081
        %2116 = vst [vmem:[#allocation3 + $0xd8] sm:$0xff] %v2083
        %2117 = vst [vmem:[#allocation3 + $0xe0] sm:$0xff] %v2012
        %2118 = vst [vmem:[#allocation3 + $0xe8] sm:$0xff] %v2014
        %2119 = vst [vmem:[#allocation3 + $0xf0] sm:$0xff] %v2085
        %2120 = vst [vmem:[#allocation3 + $0xf8] sm:$0xff] %v2087
        %v2121 = vld [vmem:[#allocation6] sm:$0xff]
        %v2122 = vld [vmem:[#allocation6 + $0x8] sm:$0xff]
        %v2123 = vld [vmem:[#allocation7] sm:$0xff]
        %v2124 = vld [vmem:[#allocation7 + $0x8] sm:$0xff]
        %v2125 = vld [vmem:[#allocation3] sm:$0xff]
        %v2126 = vld [vmem:[#allocation3 + $0x8] sm:$0xff]
        %v2127 = vld [vmem:[#allocation3 + $0x10] sm:$0xff]
        %v2128 = vld [vmem:[#allocation3 + $0x18] sm:$0xff]
        %v2129 = vld [vmem:[#allocation3 + $0x20] sm:$0xff]
        %v2130 = vld [vmem:[#allocation3 + $0x28] sm:$0xff]
        %v2131 = vld [vmem:[#allocation3 + $0x30] sm:$0xff]
        %v2132 = vld [vmem:[#allocation3 + $0x38] sm:$0xff]
        %v2133 = vpack.c.bf16 %v2122, %v2121
        %v2134 = vld [vmem:[#allocation14] sm:$0xff]
        %v2135 = vld [vmem:[#allocation14 + $0x8] sm:$0xff]
        %v2136 = vld [vmem:[#allocation14 + $0x10] sm:$0xff]
        %v2137 = vld [vmem:[#allocation14 + $0x18] sm:$0xff]
        %v2138 = vld [vmem:[#allocation14 + $0x20] sm:$0xff]
        %v2139 = vld [vmem:[#allocation14 + $0x28] sm:$0xff]
        %v2140 = vld [vmem:[#allocation14 + $0x30] sm:$0xff]
        %v2141 = vld [vmem:[#allocation14 + $0x38] sm:$0xff]
        %v2142 = vld [vmem:[#allocation14 + $0x40] sm:$0xff]
        %v2143 = vld [vmem:[#allocation14 + $0x48] sm:$0xff]
        %v2144 = vld [vmem:[#allocation14 + $0x50] sm:$0xff]
        %v2145 = vld [vmem:[#allocation14 + $0x58] sm:$0xff]
        %v2146 = vld [vmem:[#allocation14 + $0x60] sm:$0xff]
        %v2147 = vld [vmem:[#allocation14 + $0x68] sm:$0xff]
        %v2148 = vld [vmem:[#allocation14 + $0x70] sm:$0xff]
        %v2149 = vld [vmem:[#allocation14 + $0x78] sm:$0xff]
        %v2150 = vld [vmem:[#allocation14 + $0x80] sm:$0xff]
        %v2151 = vld [vmem:[#allocation14 + $0x88] sm:$0xff]
        %v2152 = vld [vmem:[#allocation14 + $0x90] sm:$0xff]
        %v2153 = vld [vmem:[#allocation14 + $0x98] sm:$0xff]
        %v2154 = vld [vmem:[#allocation14 + $0xa0] sm:$0xff]
        %v2155 = vld [vmem:[#allocation14 + $0xa8] sm:$0xff]
        %v2156 = vld [vmem:[#allocation14 + $0xb0] sm:$0xff]
        %v2157 = vld [vmem:[#allocation14 + $0xb8] sm:$0xff]
        %v2158 = vld [vmem:[#allocation14 + $0xc0] sm:$0xff]
        %v2159 = vld [vmem:[#allocation14 + $0xc8] sm:$0xff]
        %v2160 = vld [vmem:[#allocation14 + $0xd0] sm:$0xff]
        %v2161 = vld [vmem:[#allocation14 + $0xd8] sm:$0xff]
        %v2162 = vld [vmem:[#allocation14 + $0xe0] sm:$0xff]
        %v2163 = vld [vmem:[#allocation14 + $0xe8] sm:$0xff]
        %v2164 = vld [vmem:[#allocation14 + $0xf0] sm:$0xff]
        %v2165 = vld [vmem:[#allocation14 + $0xf8] sm:$0xff]
        %v2198 = vunpack.c.l.b16 %v2134
        %v2199 = vunpack.c.h.b16 %v2134
        %v2200 = vunpack.c.l.b16 %v2135
        %v2201 = vunpack.c.h.b16 %v2135
        %v2202 = vunpack.c.l.b16 %v2136
        %v2203 = vunpack.c.h.b16 %v2136
        %v2204 = vunpack.c.l.b16 %v2137
        %v2205 = vunpack.c.h.b16 %v2137
        %v2206 = vunpack.c.l.b16 %v2138
        %v2207 = vunpack.c.h.b16 %v2138
        %v2208 = vunpack.c.l.b16 %v2139
        %v2209 = vunpack.c.h.b16 %v2139
        %v2210 = vunpack.c.l.b16 %v2140
        %v2211 = vunpack.c.h.b16 %v2140
        %v2212 = vunpack.c.l.b16 %v2141
        %v2213 = vunpack.c.h.b16 %v2141
        %v2214 = vunpack.c.l.b16 %v2142
        %v2215 = vunpack.c.h.b16 %v2142
        %v2216 = vunpack.c.l.b16 %v2143
        %v2217 = vunpack.c.h.b16 %v2143
        %v2218 = vunpack.c.l.b16 %v2144
        %v2219 = vunpack.c.h.b16 %v2144
        %v2220 = vunpack.c.l.b16 %v2145
        %v2221 = vunpack.c.h.b16 %v2145
        %v2222 = vunpack.c.l.b16 %v2146
        %v2223 = vunpack.c.h.b16 %v2146
        %v2224 = vunpack.c.l.b16 %v2147
        %v2225 = vunpack.c.h.b16 %v2147
        %v2226 = vunpack.c.l.b16 %v2148
        %v2227 = vunpack.c.h.b16 %v2148
        %v2228 = vunpack.c.l.b16 %v2149
        %v2229 = vunpack.c.h.b16 %v2149
        %v2230 = vunpack.c.l.b16 %v2150
        %v2231 = vunpack.c.h.b16 %v2150
        %v2232 = vunpack.c.l.b16 %v2151
        %v2233 = vunpack.c.h.b16 %v2151
        %v2234 = vunpack.c.l.b16 %v2152
        %v2235 = vunpack.c.h.b16 %v2152
        %v2236 = vunpack.c.l.b16 %v2153
        %v2237 = vunpack.c.h.b16 %v2153
        %v2238 = vunpack.c.l.b16 %v2154
        %v2239 = vunpack.c.h.b16 %v2154
        %v2240 = vunpack.c.l.b16 %v2155
        %v2241 = vunpack.c.h.b16 %v2155
        %v2242 = vunpack.c.l.b16 %v2156
        %v2243 = vunpack.c.h.b16 %v2156
        %v2244 = vunpack.c.l.b16 %v2157
        %v2245 = vunpack.c.h.b16 %v2157
        %v2246 = vunpack.c.l.b16 %v2158
        %v2247 = vunpack.c.h.b16 %v2158
        %v2248 = vunpack.c.l.b16 %v2159
        %v2249 = vunpack.c.h.b16 %v2159
        %v2250 = vunpack.c.l.b16 %v2160
        %v2251 = vunpack.c.h.b16 %v2160
        %v2252 = vunpack.c.l.b16 %v2161
        %v2253 = vunpack.c.h.b16 %v2161
        %v2254 = vunpack.c.l.b16 %v2162
        %v2255 = vunpack.c.h.b16 %v2162
        %v2256 = vunpack.c.l.b16 %v2163
        %v2257 = vunpack.c.h.b16 %v2163
        %v2258 = vunpack.c.l.b16 %v2164
        %v2259 = vunpack.c.h.b16 %v2164
        %v2260 = vunpack.c.l.b16 %v2165
        %v2261 = vunpack.c.h.b16 %v2165
        %v2262 = vpack.c.b16 %v2202, %v2198
        %v2263 = vpack.c.b16 %v2203, %v2199
        %v2264 = vpack.c.b16 %v2204, %v2200
        %v2265 = vpack.c.b16 %v2205, %v2201
        %v2266 = vpack.c.b16 %v2210, %v2206
        %v2267 = vpack.c.b16 %v2211, %v2207
        %v2268 = vpack.c.b16 %v2212, %v2208
        %v2269 = vpack.c.b16 %v2213, %v2209
        %v2270 = vpack.c.b16 %v2218, %v2214
        %v2271 = vpack.c.b16 %v2219, %v2215
        %v2272 = vpack.c.b16 %v2220, %v2216
        %v2273 = vpack.c.b16 %v2221, %v2217
        %v2274 = vpack.c.b16 %v2226, %v2222
        %v2275 = vpack.c.b16 %v2227, %v2223
        %v2276 = vpack.c.b16 %v2228, %v2224
        %v2277 = vpack.c.b16 %v2229, %v2225
        %v2278 = vpack.c.b16 %v2234, %v2230
        %v2279 = vpack.c.b16 %v2235, %v2231
        %v2280 = vpack.c.b16 %v2236, %v2232
        %v2281 = vpack.c.b16 %v2237, %v2233
        %v2282 = vpack.c.b16 %v2242, %v2238
        %v2283 = vpack.c.b16 %v2243, %v2239
        %v2284 = vpack.c.b16 %v2244, %v2240
        %v2285 = vpack.c.b16 %v2245, %v2241
        %v2286 = vpack.c.b16 %v2250, %v2246
        %v2287 = vpack.c.b16 %v2251, %v2247
        %v2288 = vpack.c.b16 %v2252, %v2248
        %v2289 = vpack.c.b16 %v2253, %v2249
        %v2290 = vpack.c.b16 %v2258, %v2254
        %v2291 = vpack.c.b16 %v2259, %v2255
        %v2292 = vpack.c.b16 %v2260, %v2256
        %v2293 = vpack.c.b16 %v2261, %v2257
        %2326 = vmatprep.subr.bf16.mxu0 %v2263
        %2327 = vmatpush1.bf16.msra.mxu0 %v2262
        %2328 = vmatprep.subr.bf16.mxu0 %v2267
        %2329 = vmatpush1.bf16.msra.mxu0 %v2266
        %2330 = vmatprep.subr.bf16.mxu0 %v2271
        %2331 = vmatpush1.bf16.msra.mxu0 %v2270
        %2332 = vmatprep.subr.bf16.mxu0 %v2275
        %2333 = vmatpush1.bf16.msra.mxu0 %v2274
        %2334 = vmatprep.subr.bf16.mxu0 %v2279
        %2335 = vmatpush1.bf16.msra.mxu0 %v2278
        %2336 = vmatprep.subr.bf16.mxu0 %v2283
        %2337 = vmatpush1.bf16.msra.mxu0 %v2282
        %2338 = vmatprep.subr.bf16.mxu0 %v2287
        %2339 = vmatpush1.bf16.msra.mxu0 %v2286
        %2340 = vmatprep.subr.bf16.mxu0 %v2291
        %2341 = vmatpush1.bf16.msra.mxu0 %v2290
        %2342 = vmatprep.subr.bf16.mxu0 0
        %2343 = vmatpush1.bf16.msra.mxu0 0
        %2344 = vmatprep.subr.bf16.mxu0 0
        %2345 = vmatpush1.bf16.msra.mxu0 0
        %2346 = vmatprep.subr.bf16.mxu0 0
        %2347 = vmatpush1.bf16.msra.mxu0 0
        %2348 = vmatprep.subr.bf16.mxu0 0
        %2349 = vmatpush1.bf16.msra.mxu0 0
        %2350 = vmatprep.subr.bf16.mxu0 0
        %2351 = vmatpush1.bf16.msra.mxu0 0
        %2352 = vmatprep.subr.bf16.mxu0 0
        %2353 = vmatpush1.bf16.msra.mxu0 0
        %2354 = vmatprep.subr.bf16.mxu0 0
        %2355 = vmatpush1.bf16.msra.mxu0 0
        %2356 = vmatprep.subr.bf16.mxu0 0
        %2357 = vmatpush1.bf16.msra.mxu0 0
        %2358 = vmatprep.mubr.bf16.mxu0 0
        %2359 = vmatmul.mubr.bf16.gmra.mrb[0].mxu0 %v2133
        %v2360 = vpop.f32.mrb[0].mxu0
        %v2361 = vadd.f32 0.0, %v2360
        %v2362 = vpop.f32.mrb[0].mxu0
        %v2363 = vadd.f32 0.0, %v2362
        %v2364 = vpop.f32.mrb[0].mxu0
        %v2365 = vadd.f32 0.0, %v2364
        %v2366 = vpop.f32.mrb[0].mxu0
        %v2367 = vadd.f32 0.0, %v2366
        %2368 = vdwg.mxu0
        %2369 = vmatprep.subr.bf16.mxu0 %v2265
        %2370 = vmatpush1.bf16.msra.mxu0 %v2264
        %2371 = vmatprep.subr.bf16.mxu0 %v2269
        %2372 = vmatpush1.bf16.msra.mxu0 %v2268
        %2373 = vmatprep.subr.bf16.mxu0 %v2273
        %2374 = vmatpush1.bf16.msra.mxu0 %v2272
        %2375 = vmatprep.subr.bf16.mxu0 %v2277
        %2376 = vmatpush1.bf16.msra.mxu0 %v2276
        %2377 = vmatprep.subr.bf16.mxu0 %v2281
        %2378 = vmatpush1.bf16.msra.mxu0 %v2280
        %2379 = vmatprep.subr.bf16.mxu0 %v2285
        %2380 = vmatpush1.bf16.msra.mxu0 %v2284
        %2381 = vmatprep.subr.bf16.mxu0 %v2289
        %2382 = vmatpush1.bf16.msra.mxu0 %v2288
        %2383 = vmatprep.subr.bf16.mxu0 %v2293
        %2384 = vmatpush1.bf16.msra.mxu0 %v2292
        %2385 = vmatprep.subr.bf16.mxu0 0
        %2386 = vmatpush1.bf16.msra.mxu0 0
        %2387 = vmatprep.subr.bf16.mxu0 0
        %2388 = vmatpush1.bf16.msra.mxu0 0
        %2389 = vmatprep.subr.bf16.mxu0 0
        %2390 = vmatpush1.bf16.msra.mxu0 0
        %2391 = vmatprep.subr.bf16.mxu0 0
        %2392 = vmatpush1.bf16.msra.mxu0 0
        %2393 = vmatprep.subr.bf16.mxu0 0
        %2394 = vmatpush1.bf16.msra.mxu0 0
        %2395 = vmatprep.subr.bf16.mxu0 0
        %2396 = vmatpush1.bf16.msra.mxu0 0
        %2397 = vmatprep.subr.bf16.mxu0 0
        %2398 = vmatpush1.bf16.msra.mxu0 0
        %2399 = vmatprep.subr.bf16.mxu0 0
        %2400 = vmatpush1.bf16.msra.mxu0 0
        %2401 = vmatprep.mubr.bf16.mxu0 0
        %2402 = vmatmul.mubr.bf16.gmra.mrb[0].mxu0 %v2133
        %v2403 = vpop.f32.mrb[0].mxu0
        %v2404 = vadd.f32 0.0, %v2403
        %v2405 = vpop.f32.mrb[0].mxu0
        %v2406 = vadd.f32 0.0, %v2405
        %v2407 = vpop.f32.mrb[0].mxu0
        %v2408 = vadd.f32 0.0, %v2407
        %v2409 = vpop.f32.mrb[0].mxu0
        %v2410 = vadd.f32 0.0, %v2409
        %2411 = vdwg.mxu0
        %v2412 = vadd.f32 %v2125, %v2361
        %v2413 = vadd.f32 %v2126, %v2363
        %v2414 = vadd.f32 %v2127, %v2404
        %v2415 = vadd.f32 %v2128, %v2406
        %v2416 = vadd.f32 %v2129, %v2365
        %v2417 = vadd.f32 %v2130, %v2367
        %v2418 = vadd.f32 %v2131, %v2408
        %v2419 = vadd.f32 %v2132, %v2410
        %v2420 = vmul.f32 %v2412, 0.5
        %v2421 = vmul.f32 %v2416, 0.5
        %v2422 = vtanh.pop %v2420
        %v2423 = vtanh.pop %v2421
        %v2424 = vmul.f32 %v2422, 0.5
        %v2425 = vmul.f32 %v2423, 0.5
        %v2426 = vadd.f32 %v2424, 0.5
        %v2427 = vadd.f32 %v2425, 0.5
        %v2428 = vmul.f32 %v2413, 0.5
        %v2429 = vmul.f32 %v2417, 0.5
        %v2430 = vtanh.pop %v2428
        %v2431 = vtanh.pop %v2429
        %v2432 = vmul.f32 %v2430, 0.5
        %v2433 = vmul.f32 %v2431, 0.5
        %v2434 = vadd.f32 %v2432, 0.5
        %v2435 = vadd.f32 %v2433, 0.5
        %v2436 = vtanh.pop %v2414
        %v2437 = vtanh.pop %v2418
        %v2438 = vmul.f32 %v2415, 0.5
        %v2439 = vmul.f32 %v2419, 0.5
        %v2440 = vtanh.pop %v2438
        %v2441 = vtanh.pop %v2439
        %v2442 = vmul.f32 %v2440, 0.5
        %v2443 = vmul.f32 %v2441, 0.5
        %v2444 = vadd.f32 %v2442, 0.5
        %v2445 = vadd.f32 %v2443, 0.5
        %v2446 = vmul.f32 %v2434, %v2123
        %v2447 = vmul.f32 %v2435, %v2124
        %v2448 = vmul.f32 %v2426, %v2436
        %v2449 = vmul.f32 %v2427, %v2437
        %v2450 = vadd.f32 %v2446, %v2448
        %v2451 = vadd.f32 %v2447, %v2449
        %v2452 = vtanh.pop %v2450
        %v2453 = vtanh.pop %v2451
        %v2454 = vmul.f32 %v2444, %v2452
        %v2455 = vmul.f32 %v2445, %v2453
        %s2456 = scalar_lea.vmem [#allocation3], 64
        %v2457 = vld [vmem:[%s2456] sm:$0xff]
        %v2458 = vld [vmem:[%s2456 + $0x8] sm:$0xff]
        %v2459 = vld [vmem:[%s2456 + $0x10] sm:$0xff]
        %v2460 = vld [vmem:[%s2456 + $0x18] sm:$0xff]
        %v2461 = vld [vmem:[%s2456 + $0x20] sm:$0xff]
        %v2462 = vld [vmem:[%s2456 + $0x28] sm:$0xff]
        %v2463 = vld [vmem:[%s2456 + $0x30] sm:$0xff]
        %v2464 = vld [vmem:[%s2456 + $0x38] sm:$0xff]
        %v2465 = vpack.c.bf16 %v2455, %v2454
        %2466 = vmatprep.subr.bf16.mxu0 %v2263
        %2467 = vmatpush1.bf16.msra.mxu0 %v2262
        %2468 = vmatprep.subr.bf16.mxu0 %v2267
        %2469 = vmatpush1.bf16.msra.mxu0 %v2266
        %2470 = vmatprep.subr.bf16.mxu0 %v2271
        %2471 = vmatpush1.bf16.msra.mxu0 %v2270
        %2472 = vmatprep.subr.bf16.mxu0 %v2275
        %2473 = vmatpush1.bf16.msra.mxu0 %v2274
        %2474 = vmatprep.subr.bf16.mxu0 %v2279
        %2475 = vmatpush1.bf16.msra.mxu0 %v2278
        %2476 = vmatprep.subr.bf16.mxu0 %v2283
        %2477 = vmatpush1.bf16.msra.mxu0 %v2282
        %2478 = vmatprep.subr.bf16.mxu0 %v2287
        %2479 = vmatpush1.bf16.msra.mxu0 %v2286
        %2480 = vmatprep.subr.bf16.mxu0 %v2291
        %2481 = vmatpush1.bf16.msra.mxu0 %v2290
        %2482 = vmatprep.subr.bf16.mxu0 0
        %2483 = vmatpush1.bf16.msra.mxu0 0
        %2484 = vmatprep.subr.bf16.mxu0 0
        %2485 = vmatpush1.bf16.msra.mxu0 0
        %2486 = vmatprep.subr.bf16.mxu0 0
        %2487 = vmatpush1.bf16.msra.mxu0 0
        %2488 = vmatprep.subr.bf16.mxu0 0
        %2489 = vmatpush1.bf16.msra.mxu0 0
        %2490 = vmatprep.subr.bf16.mxu0 0
        %2491 = vmatpush1.bf16.msra.mxu0 0
        %2492 = vmatprep.subr.bf16.mxu0 0
        %2493 = vmatpush1.bf16.msra.mxu0 0
        %2494 = vmatprep.subr.bf16.mxu0 0
        %2495 = vmatpush1.bf16.msra.mxu0 0
        %2496 = vmatprep.subr.bf16.mxu0 0
        %2497 = vmatpush1.bf16.msra.mxu0 0
        %2498 = vmatprep.mubr.bf16.mxu0 0
        %2499 = vmatmul.mubr.bf16.gmra.mrb[0].mxu0 %v2465
        %v2500 = vpop.f32.mrb[0].mxu0
        %v2501 = vadd.f32 0.0, %v2500
        %v2502 = vpop.f32.mrb[0].mxu0
        %v2503 = vadd.f32 0.0, %v2502
        %v2504 = vpop.f32.mrb[0].mxu0
        %v2505 = vadd.f32 0.0, %v2504
        %v2506 = vpop.f32.mrb[0].mxu0
        %v2507 = vadd.f32 0.0, %v2506
        %2508 = vdwg.mxu0
        %2509 = vmatprep.subr.bf16.mxu0 %v2265
        %2510 = vmatpush1.bf16.msra.mxu0 %v2264
        %2511 = vmatprep.subr.bf16.mxu0 %v2269
        %2512 = vmatpush1.bf16.msra.mxu0 %v2268
        %2513 = vmatprep.subr.bf16.mxu0 %v2273
        %2514 = vmatpush1.bf16.msra.mxu0 %v2272
        %2515 = vmatprep.subr.bf16.mxu0 %v2277
        %2516 = vmatpush1.bf16.msra.mxu0 %v2276
        %2517 = vmatprep.subr.bf16.mxu0 %v2281
        %2518 = vmatpush1.bf16.msra.mxu0 %v2280
        %2519 = vmatprep.subr.bf16.mxu0 %v2285
        %2520 = vmatpush1.bf16.msra.mxu0 %v2284
        %2521 = vmatprep.subr.bf16.mxu0 %v2289
        %2522 = vmatpush1.bf16.msra.mxu0 %v2288
        %2523 = vmatprep.subr.bf16.mxu0 %v2293
        %2524 = vmatpush1.bf16.msra.mxu0 %v2292
        %2525 = vmatprep.subr.bf16.mxu0 0
        %2526 = vmatpush1.bf16.msra.mxu0 0
        %2527 = vmatprep.subr.bf16.mxu0 0
        %2528 = vmatpush1.bf16.msra.mxu0 0
        %2529 = vmatprep.subr.bf16.mxu0 0
        %2530 = vmatpush1.bf16.msra.mxu0 0
        %2531 = vmatprep.subr.bf16.mxu0 0
        %2532 = vmatpush1.bf16.msra.mxu0 0
        %2533 = vmatprep.subr.bf16.mxu0 0
        %2534 = vmatpush1.bf16.msra.mxu0 0
        %2535 = vmatprep.subr.bf16.mxu0 0
        %2536 = vmatpush1.bf16.msra.mxu0 0
        %2537 = vmatprep.subr.bf16.mxu0 0
        %2538 = vmatpush1.bf16.msra.mxu0 0
        %2539 = vmatprep.subr.bf16.mxu0 0
        %2540 = vmatpush1.bf16.msra.mxu0 0
        %2541 = vmatprep.mubr.bf16.mxu0 0
        %2542 = vmatmul.mubr.bf16.gmra.mrb[0].mxu0 %v2465
        %v2543 = vpop.f32.mrb[0].mxu0
        %v2544 = vadd.f32 0.0, %v2543
        %v2545 = vpop.f32.mrb[0].mxu0
        %v2546 = vadd.f32 0.0, %v2545
        %v2547 = vpop.f32.mrb[0].mxu0
        %v2548 = vadd.f32 0.0, %v2547
        %v2549 = vpop.f32.mrb[0].mxu0
        %v2550 = vadd.f32 0.0, %v2549
        %2551 = vdwg.mxu0
        %v2552 = vadd.f32 %v2457, %v2501
        %v2553 = vadd.f32 %v2458, %v2503
        %v2554 = vadd.f32 %v2459, %v2544
        %v2555 = vadd.f32 %v2460, %v2546
        %v2556 = vadd.f32 %v2461, %v2505
        %v2557 = vadd.f32 %v2462, %v2507
        %v2558 = vadd.f32 %v2463, %v2548
        %v2559 = vadd.f32 %v2464, %v2550
        %v2560 = vmul.f32 %v2552, 0.5
        %v2561 = vmul.f32 %v2556, 0.5
        %v2562 = vtanh.pop %v2560
        %v2563 = vtanh.pop %v2561
        %v2564 = vmul.f32 %v2562, 0.5
        %v2565 = vmul.f32 %v2563, 0.5
        %v2566 = vadd.f32 %v2564, 0.5
        %v2567 = vadd.f32 %v2565, 0.5
        %v2568 = vmul.f32 %v2553, 0.5
        %v2569 = vmul.f32 %v2557, 0.5
        %v2570 = vtanh.pop %v2568
        %v2571 = vtanh.pop %v2569
        %v2572 = vmul.f32 %v2570, 0.5
        %v2573 = vmul.f32 %v2571, 0.5
        %v2574 = vadd.f32 %v2572, 0.5
        %v2575 = vadd.f32 %v2573, 0.5
        %v2576 = vtanh.pop %v2554
        %v2577 = vtanh.pop %v2558
        %v2578 = vmul.f32 %v2555, 0.5
        %v2579 = vmul.f32 %v2559, 0.5
        %v2580 = vtanh.pop %v2578
        %v2581 = vtanh.pop %v2579
        %v2582 = vmul.f32 %v2580, 0.5
        %v2583 = vmul.f32 %v2581, 0.5
        %v2584 = vadd.f32 %v2582, 0.5
        %v2585 = vadd.f32 %v2583, 0.5
        %v2586 = vmul.f32 %v2574, %v2450
        %v2587 = vmul.f32 %v2575, %v2451
        %v2588 = vmul.f32 %v2566, %v2576
        %v2589 = vmul.f32 %v2567, %v2577
        %v2590 = vadd.f32 %v2586, %v2588
        %v2591 = vadd.f32 %v2587, %v2589
        %v2592 = vtanh.pop %v2590
        %v2593 = vtanh.pop %v2591
        %v2594 = vmul.f32 %v2584, %v2592
        %v2595 = vmul.f32 %v2585, %v2593
        %s2596 = scalar_lea.vmem [#allocation3], 128
        %v2597 = vld [vmem:[%s2596] sm:$0xff]
        %v2598 = vld [vmem:[%s2596 + $0x8] sm:$0xff]
        %v2599 = vld [vmem:[%s2596 + $0x10] sm:$0xff]
        %v2600 = vld [vmem:[%s2596 + $0x18] sm:$0xff]
        %v2601 = vld [vmem:[%s2596 + $0x20] sm:$0xff]
        %v2602 = vld [vmem:[%s2596 + $0x28] sm:$0xff]
        %v2603 = vld [vmem:[%s2596 + $0x30] sm:$0xff]
        %v2604 = vld [vmem:[%s2596 + $0x38] sm:$0xff]
        %v2605 = vpack.c.bf16 %v2595, %v2594
        %2606 = vmatprep.subr.bf16.mxu0 %v2263
        %2607 = vmatpush1.bf16.msra.mxu0 %v2262
        %2608 = vmatprep.subr.bf16.mxu0 %v2267
        %2609 = vmatpush1.bf16.msra.mxu0 %v2266
        %2610 = vmatprep.subr.bf16.mxu0 %v2271
        %2611 = vmatpush1.bf16.msra.mxu0 %v2270
        %2612 = vmatprep.subr.bf16.mxu0 %v2275
        %2613 = vmatpush1.bf16.msra.mxu0 %v2274
        %2614 = vmatprep.subr.bf16.mxu0 %v2279
        %2615 = vmatpush1.bf16.msra.mxu0 %v2278
        %2616 = vmatprep.subr.bf16.mxu0 %v2283
        %2617 = vmatpush1.bf16.msra.mxu0 %v2282
        %2618 = vmatprep.subr.bf16.mxu0 %v2287
        %2619 = vmatpush1.bf16.msra.mxu0 %v2286
        %2620 = vmatprep.subr.bf16.mxu0 %v2291
        %2621 = vmatpush1.bf16.msra.mxu0 %v2290
        %2622 = vmatprep.subr.bf16.mxu0 0
        %2623 = vmatpush1.bf16.msra.mxu0 0
        %2624 = vmatprep.subr.bf16.mxu0 0
        %2625 = vmatpush1.bf16.msra.mxu0 0
        %2626 = vmatprep.subr.bf16.mxu0 0
        %2627 = vmatpush1.bf16.msra.mxu0 0
        %2628 = vmatprep.subr.bf16.mxu0 0
        %2629 = vmatpush1.bf16.msra.mxu0 0
        %2630 = vmatprep.subr.bf16.mxu0 0
        %2631 = vmatpush1.bf16.msra.mxu0 0
        %2632 = vmatprep.subr.bf16.mxu0 0
        %2633 = vmatpush1.bf16.msra.mxu0 0
        %2634 = vmatprep.subr.bf16.mxu0 0
        %2635 = vmatpush1.bf16.msra.mxu0 0
        %2636 = vmatprep.subr.bf16.mxu0 0
        %2637 = vmatpush1.bf16.msra.mxu0 0
        %2638 = vmatprep.mubr.bf16.mxu0 0
        %2639 = vmatmul.mubr.bf16.gmra.mrb[0].mxu0 %v2605
        %v2640 = vpop.f32.mrb[0].mxu0
        %v2641 = vadd.f32 0.0, %v2640
        %v2642 = vpop.f32.mrb[0].mxu0
        %v2643 = vadd.f32 0.0, %v2642
        %v2644 = vpop.f32.mrb[0].mxu0
        %v2645 = vadd.f32 0.0, %v2644
        %v2646 = vpop.f32.mrb[0].mxu0
        %v2647 = vadd.f32 0.0, %v2646
        %2648 = vdwg.mxu0
        %2649 = vmatprep.subr.bf16.mxu0 %v2265
        %2650 = vmatpush1.bf16.msra.mxu0 %v2264
        %2651 = vmatprep.subr.bf16.mxu0 %v2269
        %2652 = vmatpush1.bf16.msra.mxu0 %v2268
        %2653 = vmatprep.subr.bf16.mxu0 %v2273
        %2654 = vmatpush1.bf16.msra.mxu0 %v2272
        %2655 = vmatprep.subr.bf16.mxu0 %v2277
        %2656 = vmatpush1.bf16.msra.mxu0 %v2276
        %2657 = vmatprep.subr.bf16.mxu0 %v2281
        %2658 = vmatpush1.bf16.msra.mxu0 %v2280
        %2659 = vmatprep.subr.bf16.mxu0 %v2285
        %2660 = vmatpush1.bf16.msra.mxu0 %v2284
        %2661 = vmatprep.subr.bf16.mxu0 %v2289
        %2662 = vmatpush1.bf16.msra.mxu0 %v2288
        %2663 = vmatprep.subr.bf16.mxu0 %v2293
        %2664 = vmatpush1.bf16.msra.mxu0 %v2292
        %2665 = vmatprep.subr.bf16.mxu0 0
        %2666 = vmatpush1.bf16.msra.mxu0 0
        %2667 = vmatprep.subr.bf16.mxu0 0
        %2668 = vmatpush1.bf16.msra.mxu0 0
        %2669 = vmatprep.subr.bf16.mxu0 0
        %2670 = vmatpush1.bf16.msra.mxu0 0
        %2671 = vmatprep.subr.bf16.mxu0 0
        %2672 = vmatpush1.bf16.msra.mxu0 0
        %2673 = vmatprep.subr.bf16.mxu0 0
        %2674 = vmatpush1.bf16.msra.mxu0 0
        %2675 = vmatprep.subr.bf16.mxu0 0
        %2676 = vmatpush1.bf16.msra.mxu0 0
        %2677 = vmatprep.subr.bf16.mxu0 0
        %2678 = vmatpush1.bf16.msra.mxu0 0
        %2679 = vmatprep.subr.bf16.mxu0 0
        %2680 = vmatpush1.bf16.msra.mxu0 0
        %2681 = vmatprep.mubr.bf16.mxu0 0
        %2682 = vmatmul.mubr.bf16.gmra.mrb[0].mxu0 %v2605
        %v2683 = vpop.f32.mrb[0].mxu0
        %v2684 = vadd.f32 0.0, %v2683
        %v2685 = vpop.f32.mrb[0].mxu0
        %v2686 = vadd.f32 0.0, %v2685
        %v2687 = vpop.f32.mrb[0].mxu0
        %v2688 = vadd.f32 0.0, %v2687
        %v2689 = vpop.f32.mrb[0].mxu0
        %v2690 = vadd.f32 0.0, %v2689
        %2691 = vdwg.mxu0
        %v2692 = vadd.f32 %v2597, %v2641
        %v2693 = vadd.f32 %v2598, %v2643
        %v2694 = vadd.f32 %v2599, %v2684
        %v2695 = vadd.f32 %v2600, %v2686
        %v2696 = vadd.f32 %v2601, %v2645
        %v2697 = vadd.f32 %v2602, %v2647
        %v2698 = vadd.f32 %v2603, %v2688
        %v2699 = vadd.f32 %v2604, %v2690
        %v2700 = vmul.f32 %v2692, 0.5
        %v2701 = vmul.f32 %v2696, 0.5
        %v2702 = vtanh.pop %v2700
        %v2703 = vtanh.pop %v2701
        %v2704 = vmul.f32 %v2702, 0.5
        %v2705 = vmul.f32 %v2703, 0.5
        %v2706 = vadd.f32 %v2704, 0.5
        %v2707 = vadd.f32 %v2705, 0.5
        %v2708 = vmul.f32 %v2693, 0.5
        %v2709 = vmul.f32 %v2697, 0.5
        %v2710 = vtanh.pop %v2708
        %v2711 = vtanh.pop %v2709
        %v2712 = vmul.f32 %v2710, 0.5
        %v2713 = vmul.f32 %v2711, 0.5
        %v2714 = vadd.f32 %v2712, 0.5
        %v2715 = vadd.f32 %v2713, 0.5
        %v2716 = vtanh.pop %v2694
        %v2717 = vtanh.pop %v2698
        %v2718 = vmul.f32 %v2695, 0.5
        %v2719 = vmul.f32 %v2699, 0.5
        %v2720 = vtanh.pop %v2718
        %v2721 = vtanh.pop %v2719
        %v2722 = vmul.f32 %v2720, 0.5
        %v2723 = vmul.f32 %v2721, 0.5
        %v2724 = vadd.f32 %v2722, 0.5
        %v2725 = vadd.f32 %v2723, 0.5
        %v2726 = vmul.f32 %v2714, %v2590
        %v2727 = vmul.f32 %v2715, %v2591
        %v2728 = vmul.f32 %v2706, %v2716
        %v2729 = vmul.f32 %v2707, %v2717
        %v2730 = vadd.f32 %v2726, %v2728
        %v2731 = vadd.f32 %v2727, %v2729
        %v2732 = vtanh.pop %v2730
        %v2733 = vtanh.pop %v2731
        %v2734 = vmul.f32 %v2724, %v2732
        %v2735 = vmul.f32 %v2725, %v2733
        %s2736 = scalar_lea.vmem [#allocation3], 192
        %v2737 = vld [vmem:[%s2736] sm:$0xff]
        %v2738 = vld [vmem:[%s2736 + $0x8] sm:$0xff]
        %v2739 = vld [vmem:[%s2736 + $0x10] sm:$0xff]
        %v2740 = vld [vmem:[%s2736 + $0x18] sm:$0xff]
        %v2741 = vld [vmem:[%s2736 + $0x20] sm:$0xff]
        %v2742 = vld [vmem:[%s2736 + $0x28] sm:$0xff]
        %v2743 = vld [vmem:[%s2736 + $0x30] sm:$0xff]
        %v2744 = vld [vmem:[%s2736 + $0x38] sm:$0xff]
        %v2745 = vpack.c.bf16 %v2735, %v2734
        %2746 = vmatprep.subr.bf16.mxu0 %v2263
        %2747 = vmatpush1.bf16.msra.mxu0 %v2262
        %2748 = vmatprep.subr.bf16.mxu0 %v2267
        %2749 = vmatpush1.bf16.msra.mxu0 %v2266
        %2750 = vmatprep.subr.bf16.mxu0 %v2271
        %2751 = vmatpush1.bf16.msra.mxu0 %v2270
        %2752 = vmatprep.subr.bf16.mxu0 %v2275
        %2753 = vmatpush1.bf16.msra.mxu0 %v2274
        %2754 = vmatprep.subr.bf16.mxu0 %v2279
        %2755 = vmatpush1.bf16.msra.mxu0 %v2278
        %2756 = vmatprep.subr.bf16.mxu0 %v2283
        %2757 = vmatpush1.bf16.msra.mxu0 %v2282
        %2758 = vmatprep.subr.bf16.mxu0 %v2287
        %2759 = vmatpush1.bf16.msra.mxu0 %v2286
        %2760 = vmatprep.subr.bf16.mxu0 %v2291
        %2761 = vmatpush1.bf16.msra.mxu0 %v2290
        %2762 = vmatprep.subr.bf16.mxu0 0
        %2763 = vmatpush1.bf16.msra.mxu0 0
        %2764 = vmatprep.subr.bf16.mxu0 0
        %2765 = vmatpush1.bf16.msra.mxu0 0
        %2766 = vmatprep.subr.bf16.mxu0 0
        %2767 = vmatpush1.bf16.msra.mxu0 0
        %2768 = vmatprep.subr.bf16.mxu0 0
        %2769 = vmatpush1.bf16.msra.mxu0 0
        %2770 = vmatprep.subr.bf16.mxu0 0
        %2771 = vmatpush1.bf16.msra.mxu0 0
        %2772 = vmatprep.subr.bf16.mxu0 0
        %2773 = vmatpush1.bf16.msra.mxu0 0
        %2774 = vmatprep.subr.bf16.mxu0 0
        %2775 = vmatpush1.bf16.msra.mxu0 0
        %2776 = vmatprep.subr.bf16.mxu0 0
        %2777 = vmatpush1.bf16.msra.mxu0 0
        %2778 = vmatprep.mubr.bf16.mxu0 0
        %2779 = vmatmul.mubr.bf16.gmra.mrb[0].mxu0 %v2745
        %v2780 = vpop.f32.mrb[0].mxu0
        %v2781 = vadd.f32 0.0, %v2780
        %v2782 = vpop.f32.mrb[0].mxu0
        %v2783 = vadd.f32 0.0, %v2782
        %v2784 = vpop.f32.mrb[0].mxu0
        %v2785 = vadd.f32 0.0, %v2784
        %v2786 = vpop.f32.mrb[0].mxu0
        %v2787 = vadd.f32 0.0, %v2786
        %2788 = vdwg.mxu0
        %2789 = vmatprep.subr.bf16.mxu0 %v2265
        %2790 = vmatpush1.bf16.msra.mxu0 %v2264
        %2791 = vmatprep.subr.bf16.mxu0 %v2269
        %2792 = vmatpush1.bf16.msra.mxu0 %v2268
        %2793 = vmatprep.subr.bf16.mxu0 %v2273
        %2794 = vmatpush1.bf16.msra.mxu0 %v2272
        %2795 = vmatprep.subr.bf16.mxu0 %v2277
        %2796 = vmatpush1.bf16.msra.mxu0 %v2276
        %2797 = vmatprep.subr.bf16.mxu0 %v2281
        %2798 = vmatpush1.bf16.msra.mxu0 %v2280
        %2799 = vmatprep.subr.bf16.mxu0 %v2285
        %2800 = vmatpush1.bf16.msra.mxu0 %v2284
        %2801 = vmatprep.subr.bf16.mxu0 %v2289
        %2802 = vmatpush1.bf16.msra.mxu0 %v2288
        %2803 = vmatprep.subr.bf16.mxu0 %v2293
        %2804 = vmatpush1.bf16.msra.mxu0 %v2292
        %2805 = vmatprep.subr.bf16.mxu0 0
        %2806 = vmatpush1.bf16.msra.mxu0 0
        %2807 = vmatprep.subr.bf16.mxu0 0
        %2808 = vmatpush1.bf16.msra.mxu0 0
        %2809 = vmatprep.subr.bf16.mxu0 0
        %2810 = vmatpush1.bf16.msra.mxu0 0
        %2811 = vmatprep.subr.bf16.mxu0 0
        %2812 = vmatpush1.bf16.msra.mxu0 0
        %2813 = vmatprep.subr.bf16.mxu0 0
        %2814 = vmatpush1.bf16.msra.mxu0 0
        %2815 = vmatprep.subr.bf16.mxu0 0
        %2816 = vmatpush1.bf16.msra.mxu0 0
        %2817 = vmatprep.subr.bf16.mxu0 0
        %2818 = vmatpush1.bf16.msra.mxu0 0
        %2819 = vmatprep.subr.bf16.mxu0 0
        %2820 = vmatpush1.bf16.msra.mxu0 0
        %2821 = vmatprep.mubr.bf16.mxu0 0
        %2822 = vmatmul.mubr.bf16.gmra.mrb[0].mxu0 %v2745
        %v2823 = vpop.f32.mrb[0].mxu0
        %v2824 = vadd.f32 0.0, %v2823
        %v2825 = vpop.f32.mrb[0].mxu0
        %v2826 = vadd.f32 0.0, %v2825
        %v2827 = vpop.f32.mrb[0].mxu0
        %v2828 = vadd.f32 0.0, %v2827
        %v2829 = vpop.f32.mrb[0].mxu0
        %v2830 = vadd.f32 0.0, %v2829
        %2831 = vdwg.mxu0
        %v2832 = vadd.f32 %v2737, %v2781
        %v2833 = vadd.f32 %v2738, %v2783
        %v2834 = vadd.f32 %v2739, %v2824
        %v2835 = vadd.f32 %v2740, %v2826
        %v2836 = vadd.f32 %v2741, %v2785
        %v2837 = vadd.f32 %v2742, %v2787
        %v2838 = vadd.f32 %v2743, %v2828
        %v2839 = vadd.f32 %v2744, %v2830
        %v2840 = vmul.f32 %v2832, 0.5
        %v2841 = vmul.f32 %v2836, 0.5
        %v2842 = vtanh.pop %v2840
        %v2843 = vtanh.pop %v2841
        %v2844 = vmul.f32 %v2842, 0.5
        %v2845 = vmul.f32 %v2843, 0.5
        %v2846 = vadd.f32 %v2844, 0.5
        %v2847 = vadd.f32 %v2845, 0.5
        %v2848 = vmul.f32 %v2833, 0.5
        %v2849 = vmul.f32 %v2837, 0.5
        %v2850 = vtanh.pop %v2848
        %v2851 = vtanh.pop %v2849
        %v2852 = vmul.f32 %v2850, 0.5
        %v2853 = vmul.f32 %v2851, 0.5
        %v2854 = vadd.f32 %v2852, 0.5
        %v2855 = vadd.f32 %v2853, 0.5
        %v2856 = vtanh.pop %v2834
        %v2857 = vtanh.pop %v2838
        %v2858 = vmul.f32 %v2835, 0.5
        %v2859 = vmul.f32 %v2839, 0.5
        %v2860 = vtanh.pop %v2858
        %v2861 = vtanh.pop %v2859
        %v2862 = vmul.f32 %v2860, 0.5
        %v2863 = vmul.f32 %v2861, 0.5
        %v2864 = vadd.f32 %v2862, 0.5
        %v2865 = vadd.f32 %v2863, 0.5
        %v2866 = vmul.f32 %v2854, %v2730
        %v2867 = vmul.f32 %v2855, %v2731
        %v2868 = vmul.f32 %v2846, %v2856
        %v2869 = vmul.f32 %v2847, %v2857
        %v2870 = vadd.f32 %v2866, %v2868
        %v2871 = vadd.f32 %v2867, %v2869
        %v2872 = vtanh.pop %v2870
        %v2873 = vtanh.pop %v2871
        %v2874 = vmul.f32 %v2864, %v2872
        %v2875 = vmul.f32 %v2865, %v2873
        %2876 = vst [vmem:[#allocation6] sm:$0xff] %v2874
        %2877 = vst [vmem:[#allocation6 + $0x8] sm:$0xff] %v2875
        %2878 = vst [vmem:[#allocation7] sm:$0xff] %v2870
        %2879 = vst [vmem:[#allocation7 + $0x8] sm:$0xff] %v2871
        %p2880 = scmp.eq.s32.totalorder %s29, 1
        // Predicated region
        $region73: #{tpu_custom_call.1} parent=47 // pred_check
          %p2881 = pneg %p2880
        $region74: #{tpu_custom_call.1} parent=47 // pred_check_branch
          %2883 = sbr.rel (%p2881) target = $region76
        $region75: #{tpu_custom_call.1} parent=47 // pred_region
          %v2884 = vpack.c.bf16 %v2875, %v2874
          %v2885 = vld [vmem:[#allocation16] sm:$0xf]
          %v2886 = vld [vmem:[#allocation16 + $0x4] sm:$0xf]
          %v2887 = vld [vmem:[#allocation16 + $0x8] sm:$0xf]
          %v2888 = vld [vmem:[#allocation16 + $0xc] sm:$0xf]
          %v2889 = vld [vmem:[#allocation16 + $0x10] sm:$0xf]
          %v2890 = vld [vmem:[#allocation16 + $0x14] sm:$0xf]
          %v2891 = vld [vmem:[#allocation16 + $0x18] sm:$0xf]
          %v2892 = vld [vmem:[#allocation16 + $0x1c] sm:$0xf]
          %v2893 = vld [vmem:[#allocation16 + $0x20] sm:$0xf]
          %v2894 = vld [vmem:[#allocation16 + $0x24] sm:$0xf]
          %v2895 = vld [vmem:[#allocation16 + $0x28] sm:$0xf]
          %v2896 = vld [vmem:[#allocation16 + $0x2c] sm:$0xf]
          %v2897 = vld [vmem:[#allocation16 + $0x30] sm:$0xf]
          %v2898 = vld [vmem:[#allocation16 + $0x34] sm:$0xf]
          %v2899 = vld [vmem:[#allocation16 + $0x38] sm:$0xf]
          %v2900 = vld [vmem:[#allocation16 + $0x3c] sm:$0xf]
          %v2901 = vld [vmem:[%s6] sm:$0x1]
          %v2903 = vlaneseq
          %v2904 = vshrl.u32 %v2903, 7
          %v2905 = vsub.s32 0, %v2904
          %v2906 = vrot.slane %v2901, %v2905
          %v2924 = vunpack.c.l.b16 %v2885
          %v2925 = vunpack.c.l.b16 %v2886
          %v2926 = vunpack.c.l.b16 %v2887
          %v2927 = vunpack.c.l.b16 %v2888
          %v2928 = vunpack.c.l.b16 %v2889
          %v2929 = vunpack.c.l.b16 %v2890
          %v2930 = vunpack.c.l.b16 %v2891
          %v2931 = vunpack.c.l.b16 %v2892
          %v2932 = vunpack.c.l.b16 %v2893
          %v2933 = vunpack.c.l.b16 %v2894
          %v2934 = vunpack.c.l.b16 %v2895
          %v2935 = vunpack.c.l.b16 %v2896
          %v2936 = vunpack.c.l.b16 %v2897
          %v2937 = vunpack.c.l.b16 %v2898
          %v2938 = vunpack.c.l.b16 %v2899
          %v2939 = vunpack.c.l.b16 %v2900
          %v2940 = vpack.c.b16 %v2925, %v2924
          %v2941 = vpack.c.b16 %v2927, %v2926
          %v2942 = vpack.c.b16 %v2929, %v2928
          %v2943 = vpack.c.b16 %v2931, %v2930
          %v2944 = vpack.c.b16 %v2933, %v2932
          %v2945 = vpack.c.b16 %v2935, %v2934
          %v2946 = vpack.c.b16 %v2937, %v2936
          %v2947 = vpack.c.b16 %v2939, %v2938
          %2956 = vmatprep.subr.bf16.mxu0 0
          %2957 = vmatpush1.bf16.msra.mxu0 %v2940
          %2958 = vmatprep.subr.bf16.mxu0 0
          %2959 = vmatpush1.bf16.msra.mxu0 %v2941
          %2960 = vmatprep.subr.bf16.mxu0 0
          %2961 = vmatpush1.bf16.msra.mxu0 %v2942
          %2962 = vmatprep.subr.bf16.mxu0 0
          %2963 = vmatpush1.bf16.msra.mxu0 %v2943
          %2964 = vmatprep.subr.bf16.mxu0 0
          %2965 = vmatpush1.bf16.msra.mxu0 %v2944
          %2966 = vmatprep.subr.bf16.mxu0 0
          %2967 = vmatpush1.bf16.msra.mxu0 %v2945
          %2968 = vmatprep.subr.bf16.mxu0 0
          %2969 = vmatpush1.bf16.msra.mxu0 %v2946
          %2970 = vmatprep.subr.bf16.mxu0 0
          %2971 = vmatpush1.bf16.msra.mxu0 %v2947
          %2972 = vmatprep.subr.bf16.mxu0 0
          %2973 = vmatpush1.bf16.msra.mxu0 0
          %2974 = vmatprep.subr.bf16.mxu0 0
          %2975 = vmatpush1.bf16.msra.mxu0 0
          %2976 = vmatprep.subr.bf16.mxu0 0
          %2977 = vmatpush1.bf16.msra.mxu0 0
          %2978 = vmatprep.subr.bf16.mxu0 0
          %2979 = vmatpush1.bf16.msra.mxu0 0
          %2980 = vmatprep.subr.bf16.mxu0 0
          %2981 = vmatpush1.bf16.msra.mxu0 0
          %2982 = vmatprep.subr.bf16.mxu0 0
          %2983 = vmatpush1.bf16.msra.mxu0 0
          %2984 = vmatprep.subr.bf16.mxu0 0
          %2985 = vmatpush1.bf16.msra.mxu0 0
          %2986 = vmatprep.subr.bf16.mxu0 0
          %2987 = vmatpush1.bf16.msra.mxu0 0
          %2988 = vmatprep.mubr.bf16.mxu0 0
          %2989 = vmatmul.mubr.bf16.gmra.mrb[0].mxu0 %v2884
          %v2990 = vpop.f32.mrb[0].mxu0
          %v2991 = vadd.f32 %v2906, %v2990
          %v2992 = vpop.f32.mrb[0].mxu0
          %v2993 = vpop.f32.mrb[0].mxu0
          %v2994 = vadd.f32 %v2906, %v2993
          %v2995 = vpop.f32.mrb[0].mxu0
          %2996 = vdwg.mxu0
          %2997 = vst [vmem:[#allocation17] sm:$0xff] %v2991
          %2998 = vst [vmem:[#allocation17 + $0x8] sm:$0xff] %v2994
        $region76: #{tpu_custom_call.1} parent=47 // pred_fallthru
          _
        // Predicated region
        $region77: #{tpu_custom_call.1} parent=47 // pred_check
          %p2999 = pneg %p208
        $region78: #{tpu_custom_call.1} parent=47 // pred_check_branch
          %3001 = sbr.rel (%p2999) target = $region80
        $region79: #{tpu_custom_call.1} parent=47 // pred_region
          %s3002 = smul.u32 2, %s28
          %s3004 = ssub.s32 256, 256
          %3005 = vsyncadd [#allocation10], %s3004
          %s3006 = smul.addr %s3002, 128
          %s3007 = scalar_lea.hbm %s7, %s3006
          %s3008 = sshll.u32 [#allocation17], 4
          %s3009 = int_to_ptr.vmem [resolvable:$true] %s3008
          %3014 = dma.vmem_to_hbm [thread:$0]  %s3009, 256, %s3007, [#allocation10], 128, 128, 8
        $region80: #{tpu_custom_call.1} parent=47 // pred_fallthru
          _
        // Predicated region
        $region81: #{tpu_custom_call.1} parent=47 // pred_check
          %p3015 = pneg %p208
        $region82: #{tpu_custom_call.1} parent=47 // pred_check_branch
          %3017 = sbr.rel (%p3015) target = $region84
        $region83: #{tpu_custom_call.1} parent=47 // pred_region
          %3018 = dma.done [#allocation10], 256
        $region84: #{tpu_custom_call.1} parent=47 // pred_fallthru
          _
      $region48: #{tpu_custom_call.1} parent=5 // pred_fallthru
        _
      %p3019 = scmp.le.s32.totalorder 2, %s19
      // Predicated region
      $region85: #{tpu_custom_call.1} parent=5 // pred_check
        %p3020 = pneg %p3019
      $region86: #{tpu_custom_call.1} parent=5 // pred_check_branch
        %3022 = sbr.rel (%p3020) target = $region88
      $region87: #{tpu_custom_call.1} parent=5 // pred_region
        %s3023 = ssub.s32 %s19, 2
      $region88: #{tpu_custom_call.1} parent=5 // pred_fallthru
        _
    $region6: #{tpu_custom_call.1} parent=1 // loop_footer
      %s23 = sadd.s32 1, %s19
    $region7: #{tpu_custom_call.1} parent=1 // loop_footer_branch
      %18 = sbr.rel target = $region3
    $region8: #{tpu_custom_call.1} parent=1 // loop_exit
      _
    %3024 = vsyncpa [#allocation9], 1
    %s3025 = scalar_lea.sflag [#allocation9], 1
    %3026 = vsyncpa %s3025, 1
    %3027 = vsyncpa [#allocation12], 1
    %3028 = vsyncpa [#allocation15], 1
    %3029 = vsyncpa [#allocation10], 1
    %s3030 = scalar_lea.sflag [#allocation10], 1
    %3031 = vsyncpa %s3030, 1

</llo_original>
